<compile_context>
chip_gen: v5e
topology: v5e:2x2
jax: 0.10.0
libtpu: 0.0.40
codegen_flags: <defaults>
</compile_context>

<pallas_src>
import functools
import math

import jax
import jax.numpy as jnp
from jax.experimental import pallas as pl
from jax.experimental.pallas import tpu as pltpu

IN_DIM, H1, H2, OUT_DIM = 784, 1000, 100, 10
H1_PAD, H2_PAD, OUT_PAD = 1024, 128, 128
BN_EPS = 1e-5


def _mlp_kernel(x_ref, w1_ref, w2_hbm, w3_hbm, p1_ref, p2_ref, o_ref,
                w2_buf, w3_buf, sem, *, batch, b_pad):
    inv_b = jnp.float32(1.0 / batch)
    needs_mask = batch != b_pad
    if needs_mask:
        row_ids = jax.lax.broadcasted_iota(jnp.int32, (b_pad, 1), 0)
        row_mask = row_ids < batch

    def bn_relu(h, g, be):
        # Training-mode BatchNorm (biased batch variance, two-pass / centered)
        # fused with ReLU.  h: (b_pad, F) f32, zero in padded batch rows.
        mean = jnp.sum(h, axis=0, keepdims=True) * inv_b
        d = h - mean
        if needs_mask:
            d = jnp.where(row_mask, d, 0.0)      # keep centered sums exact
        var = jnp.sum(d * d, axis=0, keepdims=True) * inv_b
        rstd = jax.lax.rsqrt(var + BN_EPS)       # EUP slot (free vs VPU)
        a = jnp.maximum(d * (g * rstd) + be, 0.0)
        if needs_mask:
            a = jnp.where(row_mask, a, 0.0)      # padded rows -> 0 for next layer
        return a

    # Prefetch w2 / w3 while layer-1 (the big matmul + BN) runs.
    cp_w2 = pltpu.make_async_copy(w2_hbm, w2_buf, sem.at[0])
    cp_w3 = pltpu.make_async_copy(w3_hbm, w3_buf, sem.at[1])
    cp_w2.start()
    cp_w3.start()

    p1 = p1_ref[...]                              # rows: [g1; be1]
    p2 = p2_ref[...]                              # rows: [g2; be2; b3]

    # Layer 1: Linear (bias folded into BN) -> BN -> ReLU
    h1 = jnp.dot(x_ref[...], w1_ref[...], preferred_element_type=jnp.float32)
    a1 = bn_relu(h1, p1[0:1, :], p1[1:2, :]).astype(jnp.bfloat16)

    # Layer 2: Linear (bias folded into BN) -> BN -> ReLU
    cp_w2.wait()
    h2 = jnp.dot(a1, w2_buf[...], preferred_element_type=jnp.float32)
    a2 = bn_relu(h2, p2[0:1, :], p2[1:2, :]).astype(jnp.bfloat16)

    # Layer 3: Linear with bias.  Output slab is lane-dense (b_pad, 128).
    cp_w3.wait()
    o_ref[...] = (jnp.dot(a2, w3_buf[...], preferred_element_type=jnp.float32)
                  + p2[2:3, :])


def pack_params(w1, b1, g1, be1, w2, b2, g2, be2, w3, b3):
    """One-time packing: (out,in)->(in,out) transpose, bf16 cast, lane padding.

    b1/b2 are dropped: an additive bias cancels exactly inside the following
    BatchNorm's (x - mean).
    """
    del b1, b2
    w1_p = jnp.pad(w1.T.astype(jnp.bfloat16), ((0, 0), (0, H1_PAD - H1)))
    w2_p = jnp.pad(w2.T.astype(jnp.bfloat16), ((0, H1_PAD - H1), (0, H2_PAD - H2)))
    w3_p = jnp.pad(w3.T.astype(jnp.bfloat16), ((0, H2_PAD - H2), (0, OUT_PAD - OUT_DIM)))
    p1 = jnp.pad(jnp.stack([g1, be1]).astype(jnp.float32),
                 ((0, 0), (0, H1_PAD - H1)))
    p2 = jnp.stack([
        jnp.pad(g2.astype(jnp.float32), (0, H2_PAD - H2)),
        jnp.pad(be2.astype(jnp.float32), (0, H2_PAD - H2)),
        jnp.pad(b3.astype(jnp.float32), (0, OUT_PAD - OUT_DIM)),
    ])
    return w1_p, w2_p, w3_p, p1, p2


@jax.jit
def batch_net_forward(x, w1_p, w2_p, w3_p, p1, p2):
    """Forward pass matching PyTorch Batch_Net (BatchNorm in training mode).

    x: (B, 784) f32; packed params from `pack_params`.  Returns (B, 10) f32.
    """
    B = x.shape[0]
    b_pad = ((B + 15) // 16) * 16                 # bf16 packs 16 rows / vreg
    x_p = jnp.pad(x.astype(jnp.bfloat16), ((0, b_pad - B), (0, 0)))

    kernel = functools.partial(_mlp_kernel, batch=B, b_pad=b_pad)

    flops = 2 * B * (IN_DIM * H1 + H1 * H2 + H2 * OUT_DIM)
    bytes_accessed = (x_p.size * 2 + w1_p.size * 2 + w2_p.size * 2
                      + w3_p.size * 2 + p1.size * 4 + p2.size * 4
                      + b_pad * OUT_PAD * 4)

    out = pl.pallas_call(
        kernel,
        out_shape=jax.ShapeDtypeStruct((b_pad, OUT_PAD), jnp.float32),
        grid=(1,),
        in_specs=[
            pl.BlockSpec((b_pad, IN_DIM), lambda i: (0, 0)),    # x (full block)
            pl.BlockSpec((IN_DIM, H1_PAD), lambda i: (0, 0)),   # w1
            pl.BlockSpec(memory_space=pl.ANY),                  # w2 (manual DMA)
            pl.BlockSpec(memory_space=pl.ANY),                  # w3 (manual DMA)
            pl.BlockSpec((2, H1_PAD), lambda i: (0, 0)),        # [g1; be1]
            pl.BlockSpec((3, H2_PAD), lambda i: (0, 0)),        # [g2; be2; b3]
        ],
        out_specs=pl.BlockSpec((b_pad, OUT_PAD), lambda i: (0, 0)),
        scratch_shapes=[
            pltpu.VMEM((H1_PAD, H2_PAD), jnp.bfloat16),         # w2 buffer
            pltpu.VMEM((H2_PAD, OUT_PAD), jnp.bfloat16),        # w3 buffer
            pltpu.SemaphoreType.DMA((2,)),
        ],
        compiler_params=pltpu.CompilerParams(
            dimension_semantics=("arbitrary",),
        ),
        cost_estimate=pl.CostEstimate(
            flops=flops,
            transcendentals=H1_PAD + H2_PAD,
            bytes_accessed=bytes_accessed,
        ),
    )(x_p, w1_p, w2_p, w3_p, p1, p2)

    return out[:B, :OUT_DIM]


def _reference_forward(x, w1, b1, g1, be1, w2, b2, g2, be2, w3, b3):
    """Plain-JAX reference with the same bf16-in / f32-accumulate matmul path."""
    def bn(h, g, be):
        mean = jnp.mean(h, axis=0, keepdims=True)
        var = jnp.mean((h - mean) ** 2, axis=0, keepdims=True)
        return (h - mean) * jax.lax.rsqrt(var + BN_EPS) * g + be

    def dot_bf16(a, w):
        return jnp.dot(a.astype(jnp.bfloat16), w.T.astype(jnp.bfloat16),
                       preferred_element_type=jnp.float32)

    h1 = jnp.maximum(bn(dot_bf16(x, w1) + b1, g1, be1), 0.0)
    h2 = jnp.maximum(bn(dot_bf16(h1, w2) + b2, g2, be2), 0.0)
    return dot_bf16(h2, w3) + b3


if __name__ == "__main__":
    key = jax.random.PRNGKey(0)
    ks = jax.random.split(key, 7)
    B = 16  # small batch (multiple of 16; BatchNorm needs batch statistics)

    def linear_init(kw, kb, fan_in, fan_out):
        bound = 1.0 / math.sqrt(fan_in)
        w = jax.random.uniform(kw, (fan_out, fan_in), jnp.float32, -bound, bound)
        b = jax.random.uniform(kb, (fan_out,), jnp.float32, -bound, bound)
        return w, b

    x = jax.random.normal(ks[0], (B, IN_DIM), jnp.float32)
    w1, b1 = linear_init(ks[1], ks[2], IN_DIM, H1)
    w2, b2 = linear_init(ks[3], ks[4], H1, H2)
    w3, b3 = linear_init(ks[5], ks[6], H2, OUT_DIM)
    g1 = jnp.ones((H1,), jnp.float32)
    be1 = jnp.zeros((H1,), jnp.float32)
    g2 = jnp.ones((H2,), jnp.float32)
    be2 = jnp.zeros((H2,), jnp.float32)

    # Pack weights / BN params ONCE (outside the per-step forward).
    packed = pack_params(w1, b1, g1, be1, w2, b2, g2, be2, w3, b3)

    out = batch_net_forward(x, *packed)
    out = jax.block_until_ready(out)

    ref = _reference_forward(x, w1, b1, g1, be1, w2, b2, g2, be2, w3, b3)
    assert out.shape == (B, OUT_DIM)
    assert bool(jnp.allclose(out, ref, atol=2e-2, rtol=2e-2)), \
        float(jnp.max(jnp.abs(out - ref)))

    print("KERNEL_OK")
</pallas_src>

<mosaic_0001>
module attributes {stable_mosaic.version = 11 : i64} {
  func.func @_mlp_kernel(%arg0: i32, %arg1: memref<16x784xbf16, #tpu.memory_space<vmem>>, %arg2: memref<784x1024xbf16, #tpu.memory_space<vmem>>, %arg3: memref<1024x128xbf16, #tpu.memory_space<any>>, %arg4: memref<128x128xbf16, #tpu.memory_space<any>>, %arg5: memref<2x1024xf32, #tpu.memory_space<vmem>>, %arg6: memref<3x128xf32, #tpu.memory_space<vmem>>, %arg7: memref<16x128xf32, #tpu.memory_space<vmem>>, %arg8: memref<1024x128xbf16, #tpu.memory_space<vmem>>, %arg9: memref<128x128xbf16, #tpu.memory_space<vmem>>, %arg10: memref<2x!tpu.dma_semaphore, #tpu.memory_space<semaphore_mem>>) attributes {dimension_semantics = [#tpu.dimension_semantics<arbitrary>], iteration_bounds = array<i64: 1>, scalar_prefetch = 0 : i64, scratch_operands = 3 : i64, tpu.core_type = #tpu.core_type<tc>, window_params = [{pipeline_mode = #tpu.pipeline_mode<synchronous>, transform_indices = @transform_0, window_bounds = array<i64: 16, 784>}, {pipeline_mode = #tpu.pipeline_mode<synchronous>, transform_indices = @transform_1, window_bounds = array<i64: 784, 1024>}, {}, {}, {pipeline_mode = #tpu.pipeline_mode<synchronous>, transform_indices = @transform_4, window_bounds = array<i64: 2, 1024>}, {pipeline_mode = #tpu.pipeline_mode<synchronous>, transform_indices = @transform_5, window_bounds = array<i64: 3, 128>}, {pipeline_mode = #tpu.pipeline_mode<synchronous>, transform_indices = @transform_6, window_bounds = array<i64: 16, 128>}]} {
    %c0_i32 = arith.constant 0 : i32
    %0 = tpu.memref_slice %arg10[%c0_i32] : memref<2x!tpu.dma_semaphore, #tpu.memory_space<semaphore_mem>> -> memref<1x!tpu.dma_semaphore, #tpu.memory_space<semaphore_mem>>
    %1 = tpu.memref_squeeze %0 : memref<1x!tpu.dma_semaphore, #tpu.memory_space<semaphore_mem>> -> memref<!tpu.dma_semaphore, #tpu.memory_space<semaphore_mem>>
    tpu.enqueue_dma source(%arg3 : memref<1024x128xbf16, #tpu.memory_space<any>>) target(%arg8 : memref<1024x128xbf16, #tpu.memory_space<vmem>>) target_semaphore(%1 : memref<!tpu.dma_semaphore, #tpu.memory_space<semaphore_mem>>)
    %c1_i32 = arith.constant 1 : i32
    %2 = tpu.memref_slice %arg10[%c1_i32] : memref<2x!tpu.dma_semaphore, #tpu.memory_space<semaphore_mem>> -> memref<1x!tpu.dma_semaphore, #tpu.memory_space<semaphore_mem>>
    %3 = tpu.memref_squeeze %2 : memref<1x!tpu.dma_semaphore, #tpu.memory_space<semaphore_mem>> -> memref<!tpu.dma_semaphore, #tpu.memory_space<semaphore_mem>>
    tpu.enqueue_dma source(%arg4 : memref<128x128xbf16, #tpu.memory_space<any>>) target(%arg9 : memref<128x128xbf16, #tpu.memory_space<vmem>>) target_semaphore(%3 : memref<!tpu.dma_semaphore, #tpu.memory_space<semaphore_mem>>)
    %c0 = arith.constant 0 : index
    %c0_0 = arith.constant 0 : index
    %4 = vector.load %arg5[%c0, %c0_0] : memref<2x1024xf32, #tpu.memory_space<vmem>>, vector<2x1024xf32>
    %c0_1 = arith.constant 0 : index
    %c0_2 = arith.constant 0 : index
    %5 = vector.load %arg6[%c0_1, %c0_2] : memref<3x128xf32, #tpu.memory_space<vmem>>, vector<3x128xf32>
    %c0_3 = arith.constant 0 : index
    %c0_4 = arith.constant 0 : index
    %6 = vector.load %arg1[%c0_3, %c0_4] : memref<16x784xbf16, #tpu.memory_space<vmem>>, vector<16x784xbf16>
    %c0_5 = arith.constant 0 : index
    %c0_6 = arith.constant 0 : index
    %7 = vector.load %arg2[%c0_5, %c0_6] : memref<784x1024xbf16, #tpu.memory_space<vmem>>, vector<784x1024xbf16>
    %cst = arith.constant dense<0.000000e+00> : vector<16x1024xf32>
    %8 = tpu.matmul %6, %7, %cst {dimension_numbers = #tpu.dot_dimension_numbers<[1], [0], [0], [1], [0, 0, 1, 1], [], []>} : vector<16x784xbf16>, vector<784x1024xbf16>, vector<16x1024xf32> -> vector<16x1024xf32>
    %9 = vector.extract_strided_slice %4 {offsets = [0, 0], sizes = [1, 1024], strides = [1, 1]} : vector<2x1024xf32> to vector<1x1024xf32>
    %10 = vector.extract_strided_slice %4 {offsets = [1, 0], sizes = [1, 1024], strides = [1, 1]} : vector<2x1024xf32> to vector<1x1024xf32>
    %cst_7 = arith.constant dense<0.000000e+00> : vector<1024xf32>
    %11 = vector.multi_reduction <add>, %8, %cst_7 [0] : vector<16x1024xf32> to vector<1024xf32>
    %12 = vector.shape_cast %11 : vector<1024xf32> to vector<1x1024xf32>
    %cst_8 = arith.constant 6.250000e-02 : f32
    %13 = vector.broadcast %cst_8 : f32 to vector<1x1024xf32>
    %14 = arith.mulf %12, %13 : vector<1x1024xf32>
    %15 = vector.broadcast %14 : vector<1x1024xf32> to vector<16x1024xf32>
    %16 = arith.subf %8, %15 : vector<16x1024xf32>
    %17 = arith.mulf %16, %16 : vector<16x1024xf32>
    %cst_9 = arith.constant dense<0.000000e+00> : vector<1024xf32>
    %18 = vector.multi_reduction <add>, %17, %cst_9 [0] : vector<16x1024xf32> to vector<1024xf32>
    %19 = vector.shape_cast %18 : vector<1024xf32> to vector<1x1024xf32>
    %cst_10 = arith.constant 6.250000e-02 : f32
    %20 = vector.broadcast %cst_10 : f32 to vector<1x1024xf32>
    %21 = arith.mulf %19, %20 : vector<1x1024xf32>
    %cst_11 = arith.constant 9.99999974E-6 : f32
    %22 = vector.broadcast %cst_11 : f32 to vector<1x1024xf32>
    %23 = arith.addf %21, %22 : vector<1x1024xf32>
    %24 = math.rsqrt %23 : vector<1x1024xf32>
    %25 = arith.mulf %9, %24 : vector<1x1024xf32>
    %26 = vector.broadcast %25 : vector<1x1024xf32> to vector<16x1024xf32>
    %27 = arith.mulf %16, %26 : vector<16x1024xf32>
    %28 = vector.broadcast %10 : vector<1x1024xf32> to vector<16x1024xf32>
    %29 = arith.addf %27, %28 : vector<16x1024xf32>
    %cst_12 = arith.constant 0.000000e+00 : f32
    %30 = vector.broadcast %cst_12 : f32 to vector<16x1024xf32>
    %31 = arith.maximumf %29, %30 : vector<16x1024xf32>
    %32 = arith.truncf %31 : vector<16x1024xf32> to vector<16x1024xbf16>
    %c0_i32_13 = arith.constant 0 : i32
    %33 = tpu.memref_slice %arg10[%c0_i32_13] : memref<2x!tpu.dma_semaphore, #tpu.memory_space<semaphore_mem>> -> memref<1x!tpu.dma_semaphore, #tpu.memory_space<semaphore_mem>>
    %34 = tpu.memref_squeeze %33 : memref<1x!tpu.dma_semaphore, #tpu.memory_space<semaphore_mem>> -> memref<!tpu.dma_semaphore, #tpu.memory_space<semaphore_mem>>
    tpu.wait_dma2 semaphore(%34 : memref<!tpu.dma_semaphore, #tpu.memory_space<semaphore_mem>>) src(%arg3 : memref<1024x128xbf16, #tpu.memory_space<any>>) dst(%arg8 : memref<1024x128xbf16, #tpu.memory_space<vmem>>)
    %c0_14 = arith.constant 0 : index
    %c0_15 = arith.constant 0 : index
    %35 = vector.load %arg8[%c0_14, %c0_15] : memref<1024x128xbf16, #tpu.memory_space<vmem>>, vector<1024x128xbf16>
    %cst_16 = arith.constant dense<0.000000e+00> : vector<16x128xf32>
    %36 = tpu.matmul %32, %35, %cst_16 {dimension_numbers = #tpu.dot_dimension_numbers<[1], [0], [0], [1], [0, 0, 1, 1], [], []>} : vector<16x1024xbf16>, vector<1024x128xbf16>, vector<16x128xf32> -> vector<16x128xf32>
    %37 = vector.extract_strided_slice %5 {offsets = [0, 0], sizes = [1, 128], strides = [1, 1]} : vector<3x128xf32> to vector<1x128xf32>
    %38 = vector.extract_strided_slice %5 {offsets = [1, 0], sizes = [1, 128], strides = [1, 1]} : vector<3x128xf32> to vector<1x128xf32>
    %cst_17 = arith.constant dense<0.000000e+00> : vector<128xf32>
    %39 = vector.multi_reduction <add>, %36, %cst_17 [0] : vector<16x128xf32> to vector<128xf32>
    %40 = vector.shape_cast %39 : vector<128xf32> to vector<1x128xf32>
    %cst_18 = arith.constant 6.250000e-02 : f32
    %41 = vector.broadcast %cst_18 : f32 to vector<1x128xf32>
    %42 = arith.mulf %40, %41 : vector<1x128xf32>
    %43 = vector.broadcast %42 : vector<1x128xf32> to vector<16x128xf32>
    %44 = arith.subf %36, %43 : vector<16x128xf32>
    %45 = arith.mulf %44, %44 : vector<16x128xf32>
    %cst_19 = arith.constant dense<0.000000e+00> : vector<128xf32>
    %46 = vector.multi_reduction <add>, %45, %cst_19 [0] : vector<16x128xf32> to vector<128xf32>
    %47 = vector.shape_cast %46 : vector<128xf32> to vector<1x128xf32>
    %cst_20 = arith.constant 6.250000e-02 : f32
    %48 = vector.broadcast %cst_20 : f32 to vector<1x128xf32>
    %49 = arith.mulf %47, %48 : vector<1x128xf32>
    %cst_21 = arith.constant 9.99999974E-6 : f32
    %50 = vector.broadcast %cst_21 : f32 to vector<1x128xf32>
    %51 = arith.addf %49, %50 : vector<1x128xf32>
    %52 = math.rsqrt %51 : vector<1x128xf32>
    %53 = arith.mulf %37, %52 : vector<1x128xf32>
    %54 = vector.broadcast %53 : vector<1x128xf32> to vector<16x128xf32>
    %55 = arith.mulf %44, %54 : vector<16x128xf32>
    %56 = vector.broadcast %38 : vector<1x128xf32> to vector<16x128xf32>
    %57 = arith.addf %55, %56 : vector<16x128xf32>
    %cst_22 = arith.constant 0.000000e+00 : f32
    %58 = vector.broadcast %cst_22 : f32 to vector<16x128xf32>
    %59 = arith.maximumf %57, %58 : vector<16x128xf32>
    %60 = arith.truncf %59 : vector<16x128xf32> to vector<16x128xbf16>
    %c1_i32_23 = arith.constant 1 : i32
    %61 = tpu.memref_slice %arg10[%c1_i32_23] : memref<2x!tpu.dma_semaphore, #tpu.memory_space<semaphore_mem>> -> memref<1x!tpu.dma_semaphore, #tpu.memory_space<semaphore_mem>>
    %62 = tpu.memref_squeeze %61 : memref<1x!tpu.dma_semaphore, #tpu.memory_space<semaphore_mem>> -> memref<!tpu.dma_semaphore, #tpu.memory_space<semaphore_mem>>
    tpu.wait_dma2 semaphore(%62 : memref<!tpu.dma_semaphore, #tpu.memory_space<semaphore_mem>>) src(%arg4 : memref<128x128xbf16, #tpu.memory_space<any>>) dst(%arg9 : memref<128x128xbf16, #tpu.memory_space<vmem>>)
    %c0_24 = arith.constant 0 : index
    %c0_25 = arith.constant 0 : index
    %63 = vector.load %arg9[%c0_24, %c0_25] : memref<128x128xbf16, #tpu.memory_space<vmem>>, vector<128x128xbf16>
    %cst_26 = arith.constant dense<0.000000e+00> : vector<16x128xf32>
    %64 = tpu.matmul %60, %63, %cst_26 {dimension_numbers = #tpu.dot_dimension_numbers<[1], [0], [0], [1], [0, 0, 1, 1], [], []>} : vector<16x128xbf16>, vector<128x128xbf16>, vector<16x128xf32> -> vector<16x128xf32>
    %65 = vector.extract_strided_slice %5 {offsets = [2, 0], sizes = [1, 128], strides = [1, 1]} : vector<3x128xf32> to vector<1x128xf32>
    %66 = vector.broadcast %65 : vector<1x128xf32> to vector<16x128xf32>
    %67 = arith.addf %64, %66 : vector<16x128xf32>
    %c0_27 = arith.constant 0 : index
    %c0_28 = arith.constant 0 : index
    %68 = vector.load %arg7[%c0_27, %c0_28] : memref<16x128xf32, #tpu.memory_space<vmem>>, vector<16x128xf32>
    tpu.vector_store %arg7[%c0_27, %c0_28], %67 {strides = array<i32>} : memref<16x128xf32, #tpu.memory_space<vmem>>, vector<16x128xf32>,
    return
  }
  func.func @transform_0(%arg0: i32) -> (i32, i32) {
    %c0_i32 = arith.constant 0 : i32
    %c0_i32_0 = arith.constant 0 : i32
    %c0_i32_1 = arith.constant 0 : i32
    return %c0_i32, %c0_i32_0 : i32, i32
  }
  func.func @transform_1(%arg0: i32) -> (i32, i32) {
    %c0_i32 = arith.constant 0 : i32
    %c0_i32_0 = arith.constant 0 : i32
    %c0_i32_1 = arith.constant 0 : i32
    return %c0_i32, %c0_i32_0 : i32, i32
  }
  func.func @transform_4(%arg0: i32) -> (i32, i32) {
    %c0_i32 = arith.constant 0 : i32
    %c0_i32_0 = arith.constant 0 : i32
    %c0_i32_1 = arith.constant 0 : i32
    return %c0_i32, %c0_i32_0 : i32, i32
  }
  func.func @transform_5(%arg0: i32) -> (i32, i32) {
    %c0_i32 = arith.constant 0 : i32
    %c0_i32_0 = arith.constant 0 : i32
    %c0_i32_1 = arith.constant 0 : i32
    return %c0_i32, %c0_i32_0 : i32, i32
  }
  func.func @transform_6(%arg0: i32) -> (i32, i32) {
    %c0_i32 = arith.constant 0 : i32
    %c0_i32_0 = arith.constant 0 : i32
    %c0_i32_1 = arith.constant 0 : i32
    return %c0_i32, %c0_i32_0 : i32, i32
  }
}

</mosaic_0001>

<llo_original>
// kernel: batch_net_forward.1
$region0: #{batch_net_forward.1}
  #allocation0 [shape = 'u32[]', space=smem, size = 0x4, offset = 0x4, fixed_abs, tag = 'smem constant byte address 0x4 - core index']
  #allocation1 [shape = 'u32[72,128]{1,0:T(1,128)}', space=vmem, size = 0x9000, scoped, tag = 'internal scratch']
  #allocation2 [shape = 'bf16[1024,128]{1,0:T(8,128)(2,1)}', space=vmem, size = 0x40000, scoped, tag = 'scratch operand']
  #allocation3 [shape = 'bf16[128,128]{1,0:T(8,128)(2,1)}', space=vmem, size = 0x8000, scoped, tag = 'scratch operand']
  #allocation4 [shape = 's32[2]{0}', space=sflag, size = 0x8, scoped, tag = 'scratch operand']
  #allocation12 [shape = 's32[]', space=sflag, size = 0x4, offset = 0, fixed_abs, tag = 'sflag constant byte address 0x0 - dummy sync flag']
  #allocation13 [shape = 's32[]', space=sflag, size = 0x4, offset = 0, fixed_abs, tag = 'sflag constant byte address 0x0 - dummy sync flag']
  #allocation14 [shape = 'u32[]', space=smem, size = 0x4, offset = 0x44, fixed_abs, tag = 'smem constant byte address 0x44 - assertion arg 0']
  #allocation15 [shape = 'u32[]', space=smem, size = 0x4, offset = 0x48, fixed_abs, tag = 'smem constant byte address 0x48 - assertion arg 1']
  #allocation16 [shape = 's32[]', space=sflag, size = 0x4, offset = 0, fixed_abs, tag = 'sflag constant byte address 0x0 - dummy sync flag']
  #allocation17 [shape = 's32[]', space=sflag, size = 0x4, offset = 0, fixed_abs, tag = 'sflag constant byte address 0x0 - dummy sync flag']
  %s0 = inlined_call_operand.vmem [shape: bf16[16,784], index: 0, kind: input, shape index: {}]
  %s1 = inlined_call_operand.hbm [shape: bf16[784,1024], index: 1, kind: input, shape index: {}]
  %s2 = inlined_call_operand.hbm [shape: bf16[1024,128], index: 2, kind: input, shape index: {}]
  %s3 = inlined_call_operand.hbm [shape: bf16[128,128], index: 3, kind: input, shape index: {}]
  %s4 = inlined_call_operand.hbm [shape: f32[2,1024], index: 4, kind: input, shape index: {}]
  %s5 = inlined_call_operand.hbm [shape: f32[3,128], index: 5, kind: input, shape index: {}]
  %s6 = inlined_call_operand.hbm [shape: f32[16,128], index: 6, kind: output, shape index: {}]
  %s7 = sld [smem:[#allocation0]]
  $region46: #{batch_net_forward.1} parent=0
    _
  %s9 = ssub.s32 1, %s7
  %s10 = scalar_select 0, %s9, %s7
  $region1: #{batch_net_forward.1} parent=0
    #allocation5 [shape = 'u8[1605632]{0}', space=vmem, size = 0x188000, scoped, tag = 'input window, operand 1, single buffered']
    #allocation6 [shape = 's32[1]{0}', space=sflag, size = 0x4, scoped, tag = 'scoped memory for batch_net_forward.1']
    #allocation7 [shape = 's32[1]{0}', space=sflag, size = 0x4, scoped, tag = 'scoped memory for batch_net_forward.1']
    #allocation8 [shape = 'u8[8192]{0}', space=vmem, size = 0x2000, scoped, tag = 'input window, operand 4, single buffered']
    #allocation9 [shape = 's32[1]{0}', space=sflag, size = 0x4, scoped, tag = 'scoped memory for batch_net_forward.1']
    #allocation10 [shape = 'u8[2048]{0}', space=vmem, size = 0x800, scoped, tag = 'input window, operand 5, single buffered']
    #allocation11 [shape = 'u8[8192]{0}', space=vmem, size = 0x2000, scoped, tag = 'output window, operand 0, single buffered']
    %11 = vsyncpa [#allocation6], 0
    %12 = vsyncpa [#allocation9], 0
    %13 = vsyncpa [#allocation7], 0
    // Predicated region
    $region2: #{batch_net_forward.1} parent=1 // pred_check
      _
    $region3: #{batch_net_forward.1} parent=1 // pred_check_branch
      %15 = sbr.rel (0) target = $region5
    $region4: #{batch_net_forward.1} parent=1 // pred_region
      _
    $region5: #{batch_net_forward.1} parent=1 // pred_fallthru
      _
    // Predicated region
    $region6: #{batch_net_forward.1} parent=1 // pred_check
      _
    $region7: #{batch_net_forward.1} parent=1 // pred_check_branch
      %17 = sbr.rel (0) target = $region9
    $region8: #{batch_net_forward.1} parent=1 // pred_region
      %19 = vsyncadd [#allocation6], 0
      %s20 = sshll.u32 %s1, 4
      %s21 = int_to_ptr.hbm [resolvable:$true] %s20
      %s22 = sshll.u32 [#allocation5], 4
      %s23 = int_to_ptr.vmem [resolvable:$true] %s22
      %28 = dma.hbm_to_vmem [thread:$0]  %s21, 50176, %s23, [#allocation6], 512, 512, 32
    $region9: #{batch_net_forward.1} parent=1 // pred_fallthru
      _
    // Predicated region
    $region10: #{batch_net_forward.1} parent=1 // pred_check
      _
    $region11: #{batch_net_forward.1} parent=1 // pred_check_branch
      %30 = sbr.rel (0) target = $region13
    $region12: #{batch_net_forward.1} parent=1 // pred_region
      %32 = vsyncadd [#allocation9], 0
      %s34 = sshll.u32 %s4, 4
      %s35 = int_to_ptr.hbm [resolvable:$true] %s34
      %s36 = sshll.u32 [#allocation8], 4
      %s37 = int_to_ptr.vmem [resolvable:$true] %s36
      %39 = dma.hbm_to_vmem [thread:$0]  %s35, 256, %s37, [#allocation9]
    $region13: #{batch_net_forward.1} parent=1 // pred_fallthru
      _
    // Predicated region
    $region14: #{batch_net_forward.1} parent=1 // pred_check
      _
    $region15: #{batch_net_forward.1} parent=1 // pred_check_branch
      %41 = sbr.rel (0) target = $region17
    $region16: #{batch_net_forward.1} parent=1 // pred_region
      %43 = vsyncadd [#allocation9], 0
      %s45 = sshll.u32 %s5, 4
      %s46 = int_to_ptr.hbm [resolvable:$true] %s45
      %s47 = sshll.u32 [#allocation10], 4
      %s48 = int_to_ptr.vmem [resolvable:$true] %s47
      %50 = dma.hbm_to_vmem [thread:$0]  %s46, 64, %s48, [#allocation9]
    $region17: #{batch_net_forward.1} parent=1 // pred_fallthru
      _
    // Predicated region
    $region18: #{batch_net_forward.1} parent=1 // pred_check
      _
    $region19: #{batch_net_forward.1} parent=1 // pred_check_branch
      %52 = sbr.rel (0) target = $region21
    $region20: #{batch_net_forward.1} parent=1 // pred_region
      %54 = dma.done [#allocation6], 50176
    $region21: #{batch_net_forward.1} parent=1 // pred_fallthru
      _
    // Predicated region
    $region22: #{batch_net_forward.1} parent=1 // pred_check
      _
    $region23: #{batch_net_forward.1} parent=1 // pred_check_branch
      %56 = sbr.rel (0) target = $region25
    $region24: #{batch_net_forward.1} parent=1 // pred_region
      %58 = dma.done [#allocation9], 256
    $region25: #{batch_net_forward.1} parent=1 // pred_fallthru
      _
    // Predicated region
    $region26: #{batch_net_forward.1} parent=1 // pred_check
      _
    $region27: #{batch_net_forward.1} parent=1 // pred_check_branch
      %60 = sbr.rel (0) target = $region29
    $region28: #{batch_net_forward.1} parent=1 // pred_region
      %62 = dma.done [#allocation9], 64
    $region29: #{batch_net_forward.1} parent=1 // pred_fallthru
      _
    // Predicated region
    $region30: #{batch_net_forward.1} parent=1 // pred_check
      _
    $region31: #{batch_net_forward.1} parent=1 // pred_check_branch
      %65 = sbr.rel target = $region33
    $region32: #{batch_net_forward.1} parent=1 // pred_region
      %66 = sst [smem:[#allocation14]] [#allocation13]
      %67 = sst [smem:[#allocation15]] [#allocation12]
    $region33: #{batch_net_forward.1} parent=1 // pred_fallthru
      _
    %69 = shalt.err (0)
    %s71 = sshll.u32 %s2, 4
    %s72 = int_to_ptr.hbm [resolvable:$true] %s71
    %s73 = sshll.u32 [#allocation2], 4
    %s74 = int_to_ptr.vmem [resolvable:$true] %s73
    %76 = dma.hbm_to_vmem [thread:$0]  %s72, 8192, %s74, [#allocation4]
    %s77 = scalar_lea.sflag [#allocation4], 1
    // Predicated region
    $region34: #{batch_net_forward.1} parent=1 // pred_check
      _
    $region35: #{batch_net_forward.1} parent=1 // pred_check_branch
      %79 = sbr.rel target = $region37
    $region36: #{batch_net_forward.1} parent=1 // pred_region
      %80 = sst [smem:[#allocation14]] [#allocation17]
      %81 = sst [smem:[#allocation15]] [#allocation16]
    $region37: #{batch_net_forward.1} parent=1 // pred_fallthru
      _
    %83 = shalt.err (0)
    %s85 = sshll.u32 %s3, 4
    %s86 = int_to_ptr.hbm [resolvable:$true] %s85
    %s87 = sshll.u32 [#allocation3], 4
    %s88 = int_to_ptr.vmem [resolvable:$true] %s87
    %90 = dma.hbm_to_vmem [thread:$0]  %s86, 1024, %s88, %s77
    %v91 = vld [vmem:[#allocation8] sm:$0xff]
    %v92 = vld [vmem:[#allocation8 + $0x8] sm:$0xff]
    %v93 = vld [vmem:[#allocation10] sm:$0x7]
    %v94 = vld [vmem:[%s0] sm:$0xff]
    %v95 = vld [vmem:[%s0 + $0x8] sm:$0xff]
    %v96 = vld [vmem:[%s0 + $0x10] sm:$0xff]
    %v97 = vld [vmem:[%s0 + $0x18] sm:$0xf]
    %v98 = vld [vmem:[%s0 + $0x1c] sm:$0xff]
    %v99 = vld [vmem:[%s0 + $0x24] sm:$0xff]
    %v100 = vld [vmem:[%s0 + $0x2c] sm:$0xff]
    %v101 = vld [vmem:[%s0 + $0x34] sm:$0xf]
    %v102 = vld [vmem:[#allocation5] sm:$0xff]
    %v103 = vld [vmem:[#allocation5 + $0x8] sm:$0xff]
    %v104 = vld [vmem:[#allocation5 + $0x10] sm:$0xff]
    %v105 = vld [vmem:[#allocation5 + $0x18] sm:$0xff]
    %v106 = vld [vmem:[#allocation5 + $0x20] sm:$0xff]
    %v107 = vld [vmem:[#allocation5 + $0x28] sm:$0xff]
    %v108 = vld [vmem:[#allocation5 + $0x30] sm:$0xff]
    %v109 = vld [vmem:[#allocation5 + $0x38] sm:$0xff]
    %v110 = vld [vmem:[#allocation5 + $0x40] sm:$0xff]
    %v111 = vld [vmem:[#allocation5 + $0x48] sm:$0xff]
    %v112 = vld [vmem:[#allocation5 + $0x50] sm:$0xff]
    %v113 = vld [vmem:[#allocation5 + $0x58] sm:$0xff]
    %v114 = vld [vmem:[#allocation5 + $0x60] sm:$0xff]
    %v115 = vld [vmem:[#allocation5 + $0x68] sm:$0xff]
    %v116 = vld [vmem:[#allocation5 + $0x70] sm:$0xff]
    %v117 = vld [vmem:[#allocation5 + $0x78] sm:$0xff]
    %v118 = vld [vmem:[#allocation5 + $0x80] sm:$0xff]
    %v119 = vld [vmem:[#allocation5 + $0x88] sm:$0xff]
    %v120 = vld [vmem:[#allocation5 + $0x90] sm:$0xff]
    %v121 = vld [vmem:[#allocation5 + $0x98] sm:$0xff]
    %v122 = vld [vmem:[#allocation5 + $0xa0] sm:$0xff]
    %v123 = vld [vmem:[#allocation5 + $0xa8] sm:$0xff]
    %v124 = vld [vmem:[#allocation5 + $0xb0] sm:$0xff]
    %v125 = vld [vmem:[#allocation5 + $0xb8] sm:$0xff]
    %v126 = vld [vmem:[#allocation5 + $0xc0] sm:$0xff]
    %v127 = vld [vmem:[#allocation5 + $0xc8] sm:$0xff]
    %v128 = vld [vmem:[#allocation5 + $0xd0] sm:$0xff]
    %v129 = vld [vmem:[#allocation5 + $0xd8] sm:$0xff]
    %v130 = vld [vmem:[#allocation5 + $0xe0] sm:$0xff]
    %v131 = vld [vmem:[#allocation5 + $0xe8] sm:$0xff]
    %v132 = vld [vmem:[#allocation5 + $0xf0] sm:$0xff]
    %v133 = vld [vmem:[#allocation5 + $0xf8] sm:$0xff]
    %v134 = vld [vmem:[#allocation5 + $0x100] sm:$0xff]
    %v135 = vld [vmem:[#allocation5 + $0x108] sm:$0xff]
    %v136 = vld [vmem:[#allocation5 + $0x110] sm:$0xff]
    %v137 = vld [vmem:[#allocation5 + $0x118] sm:$0xff]
    %v138 = vld [vmem:[#allocation5 + $0x120] sm:$0xff]
    %v139 = vld [vmem:[#allocation5 + $0x128] sm:$0xff]
    %v140 = vld [vmem:[#allocation5 + $0x130] sm:$0xff]
    %v141 = vld [vmem:[#allocation5 + $0x138] sm:$0xff]
    %v142 = vld [vmem:[#allocation5 + $0x140] sm:$0xff]
    %v143 = vld [vmem:[#allocation5 + $0x148] sm:$0xff]
    %v144 = vld [vmem:[#allocation5 + $0x150] sm:$0xff]
    %v145 = vld [vmem:[#allocation5 + $0x158] sm:$0xff]
    %v146 = vld [vmem:[#allocation5 + $0x160] sm:$0xff]
    %v147 = vld [vmem:[#allocation5 + $0x168] sm:$0xff]
    %v148 = vld [vmem:[#allocation5 + $0x170] sm:$0xff]
    %v149 = vld [vmem:[#allocation5 + $0x178] sm:$0xff]
    %v150 = vld [vmem:[#allocation5 + $0x180] sm:$0xff]
    %v151 = vld [vmem:[#allocation5 + $0x188] sm:$0xff]
    %v152 = vld [vmem:[#allocation5 + $0x190] sm:$0xff]
    %v153 = vld [vmem:[#allocation5 + $0x198] sm:$0xff]
    %v154 = vld [vmem:[#allocation5 + $0x1a0] sm:$0xff]
    %v155 = vld [vmem:[#allocation5 + $0x1a8] sm:$0xff]
    %v156 = vld [vmem:[#allocation5 + $0x1b0] sm:$0xff]
    %v157 = vld [vmem:[#allocation5 + $0x1b8] sm:$0xff]
    %v158 = vld [vmem:[#allocation5 + $0x1c0] sm:$0xff]
    %v159 = vld [vmem:[#allocation5 + $0x1c8] sm:$0xff]
    %v160 = vld [vmem:[#allocation5 + $0x1d0] sm:$0xff]
    %v161 = vld [vmem:[#allocation5 + $0x1d8] sm:$0xff]
    %v162 = vld [vmem:[#allocation5 + $0x1e0] sm:$0xff]
    %v163 = vld [vmem:[#allocation5 + $0x1e8] sm:$0xff]
    %v164 = vld [vmem:[#allocation5 + $0x1f0] sm:$0xff]
    %v165 = vld [vmem:[#allocation5 + $0x1f8] sm:$0xff]
    %v166 = vld [vmem:[#allocation5 + $0x200] sm:$0xff]
    %v167 = vld [vmem:[#allocation5 + $0x208] sm:$0xff]
    %v168 = vld [vmem:[#allocation5 + $0x210] sm:$0xff]
    %v169 = vld [vmem:[#allocation5 + $0x218] sm:$0xff]
    %v170 = vld [vmem:[#allocation5 + $0x220] sm:$0xff]
    %v171 = vld [vmem:[#allocation5 + $0x228] sm:$0xff]
    %v172 = vld [vmem:[#allocation5 + $0x230] sm:$0xff]
    %v173 = vld [vmem:[#allocation5 + $0x238] sm:$0xff]
    %v174 = vld [vmem:[#allocation5 + $0x240] sm:$0xff]
    %v175 = vld [vmem:[#allocation5 + $0x248] sm:$0xff]
    %v176 = vld [vmem:[#allocation5 + $0x250] sm:$0xff]
    %v177 = vld [vmem:[#allocation5 + $0x258] sm:$0xff]
    %v178 = vld [vmem:[#allocation5 + $0x260] sm:$0xff]
    %v179 = vld [vmem:[#allocation5 + $0x268] sm:$0xff]
    %v180 = vld [vmem:[#allocation5 + $0x270] sm:$0xff]
    %v181 = vld [vmem:[#allocation5 + $0x278] sm:$0xff]
    %v182 = vld [vmem:[#allocation5 + $0x280] sm:$0xff]
    %v183 = vld [vmem:[#allocation5 + $0x288] sm:$0xff]
    %v184 = vld [vmem:[#allocation5 + $0x290] sm:$0xff]
    %v185 = vld [vmem:[#allocation5 + $0x298] sm:$0xff]
    %v186 = vld [vmem:[#allocation5 + $0x2a0] sm:$0xff]
    %v187 = vld [vmem:[#allocation5 + $0x2a8] sm:$0xff]
    %v188 = vld [vmem:[#allocation5 + $0x2b0] sm:$0xff]
    %v189 = vld [vmem:[#allocation5 + $0x2b8] sm:$0xff]
    %v190 = vld [vmem:[#allocation5 + $0x2c0] sm:$0xff]
    %v191 = vld [vmem:[#allocation5 + $0x2c8] sm:$0xff]
    %v192 = vld [vmem:[#allocation5 + $0x2d0] sm:$0xff]
    %v193 = vld [vmem:[#allocation5 + $0x2d8] sm:$0xff]
    %v194 = vld [vmem:[#allocation5 + $0x2e0] sm:$0xff]
    %v195 = vld [vmem:[#allocation5 + $0x2e8] sm:$0xff]
    %v196 = vld [vmem:[#allocation5 + $0x2f0] sm:$0xff]
    %v197 = vld [vmem:[#allocation5 + $0x2f8] sm:$0xff]
    %v198 = vld [vmem:[#allocation5 + $0x300] sm:$0xff]
    %v199 = vld [vmem:[#allocation5 + $0x308] sm:$0xff]
    %v200 = vld [vmem:[#allocation5 + $0x310] sm:$0xff]
    %v201 = vld [vmem:[#allocation5 + $0x318] sm:$0xff]
    %v202 = vld [vmem:[#allocation5 + $0x320] sm:$0xff]
    %v203 = vld [vmem:[#allocation5 + $0x328] sm:$0xff]
    %v204 = vld [vmem:[#allocation5 + $0x330] sm:$0xff]
    %v205 = vld [vmem:[#allocation5 + $0x338] sm:$0xff]
    %v206 = vld [vmem:[#allocation5 + $0x340] sm:$0xff]
    %v207 = vld [vmem:[#allocation5 + $0x348] sm:$0xff]
    %v208 = vld [vmem:[#allocation5 + $0x350] sm:$0xff]
    %v209 = vld [vmem:[#allocation5 + $0x358] sm:$0xff]
    %v210 = vld [vmem:[#allocation5 + $0x360] sm:$0xff]
    %v211 = vld [vmem:[#allocation5 + $0x368] sm:$0xff]
    %v212 = vld [vmem:[#allocation5 + $0x370] sm:$0xff]
    %v213 = vld [vmem:[#allocation5 + $0x378] sm:$0xff]
    %v214 = vld [vmem:[#allocation5 + $0x380] sm:$0xff]
    %v215 = vld [vmem:[#allocation5 + $0x388] sm:$0xff]
    %v216 = vld [vmem:[#allocation5 + $0x390] sm:$0xff]
    %v217 = vld [vmem:[#allocation5 + $0x398] sm:$0xff]
    %v218 = vld [vmem:[#allocation5 + $0x3a0] sm:$0xff]
    %v219 = vld [vmem:[#allocation5 + $0x3a8] sm:$0xff]
    %v220 = vld [vmem:[#allocation5 + $0x3b0] sm:$0xff]
    %v221 = vld [vmem:[#allocation5 + $0x3b8] sm:$0xff]
    %v222 = vld [vmem:[#allocation5 + $0x3c0] sm:$0xff]
    %v223 = vld [vmem:[#allocation5 + $0x3c8] sm:$0xff]
    %v224 = vld [vmem:[#allocation5 + $0x3d0] sm:$0xff]
    %v225 = vld [vmem:[#allocation5 + $0x3d8] sm:$0xff]
    %v226 = vld [vmem:[#allocation5 + $0x3e0] sm:$0xff]
    %v227 = vld [vmem:[#allocation5 + $0x3e8] sm:$0xff]
    %v228 = vld [vmem:[#allocation5 + $0x3f0] sm:$0xff]
    %v229 = vld [vmem:[#allocation5 + $0x3f8] sm:$0xff]
    %v230 = vld [vmem:[#allocation5 + $0x400] sm:$0xff]
    %v231 = vld [vmem:[#allocation5 + $0x408] sm:$0xff]
    %v232 = vld [vmem:[#allocation5 + $0x410] sm:$0xff]
    %v233 = vld [vmem:[#allocation5 + $0x418] sm:$0xff]
    %v234 = vld [vmem:[#allocation5 + $0x420] sm:$0xff]
    %v235 = vld [vmem:[#allocation5 + $0x428] sm:$0xff]
    %v236 = vld [vmem:[#allocation5 + $0x430] sm:$0xff]
    %v237 = vld [vmem:[#allocation5 + $0x438] sm:$0xff]
    %v238 = vld [vmem:[#allocation5 + $0x440] sm:$0xff]
    %v239 = vld [vmem:[#allocation5 + $0x448] sm:$0xff]
    %v240 = vld [vmem:[#allocation5 + $0x450] sm:$0xff]
    %v241 = vld [vmem:[#allocation5 + $0x458] sm:$0xff]
    %v242 = vld [vmem:[#allocation5 + $0x460] sm:$0xff]
    %v243 = vld [vmem:[#allocation5 + $0x468] sm:$0xff]
    %v244 = vld [vmem:[#allocation5 + $0x470] sm:$0xff]
    %v245 = vld [vmem:[#allocation5 + $0x478] sm:$0xff]
    %v246 = vld [vmem:[#allocation5 + $0x480] sm:$0xff]
    %v247 = vld [vmem:[#allocation5 + $0x488] sm:$0xff]
    %v248 = vld [vmem:[#allocation5 + $0x490] sm:$0xff]
    %v249 = vld [vmem:[#allocation5 + $0x498] sm:$0xff]
    %v250 = vld [vmem:[#allocation5 + $0x4a0] sm:$0xff]
    %v251 = vld [vmem:[#allocation5 + $0x4a8] sm:$0xff]
    %v252 = vld [vmem:[#allocation5 + $0x4b0] sm:$0xff]
    %v253 = vld [vmem:[#allocation5 + $0x4b8] sm:$0xff]
    %v254 = vld [vmem:[#allocation5 + $0x4c0] sm:$0xff]
    %v255 = vld [vmem:[#allocation5 + $0x4c8] sm:$0xff]
    %v256 = vld [vmem:[#allocation5 + $0x4d0] sm:$0xff]
    %v257 = vld [vmem:[#allocation5 + $0x4d8] sm:$0xff]
    %v258 = vld [vmem:[#allocation5 + $0x4e0] sm:$0xff]
    %v259 = vld [vmem:[#allocation5 + $0x4e8] sm:$0xff]
    %v260 = vld [vmem:[#allocation5 + $0x4f0] sm:$0xff]
    %v261 = vld [vmem:[#allocation5 + $0x4f8] sm:$0xff]
    %v262 = vld [vmem:[#allocation5 + $0x500] sm:$0xff]
    %v263 = vld [vmem:[#allocation5 + $0x508] sm:$0xff]
    %v264 = vld [vmem:[#allocation5 + $0x510] sm:$0xff]
    %v265 = vld [vmem:[#allocation5 + $0x518] sm:$0xff]
    %v266 = vld [vmem:[#allocation5 + $0x520] sm:$0xff]
    %v267 = vld [vmem:[#allocation5 + $0x528] sm:$0xff]
    %v268 = vld [vmem:[#allocation5 + $0x530] sm:$0xff]
    %v269 = vld [vmem:[#allocation5 + $0x538] sm:$0xff]
    %v270 = vld [vmem:[#allocation5 + $0x540] sm:$0xff]
    %v271 = vld [vmem:[#allocation5 + $0x548] sm:$0xff]
    %v272 = vld [vmem:[#allocation5 + $0x550] sm:$0xff]
    %v273 = vld [vmem:[#allocation5 + $0x558] sm:$0xff]
    %v274 = vld [vmem:[#allocation5 + $0x560] sm:$0xff]
    %v275 = vld [vmem:[#allocation5 + $0x568] sm:$0xff]
    %v276 = vld [vmem:[#allocation5 + $0x570] sm:$0xff]
    %v277 = vld [vmem:[#allocation5 + $0x578] sm:$0xff]
    %v278 = vld [vmem:[#allocation5 + $0x580] sm:$0xff]
    %v279 = vld [vmem:[#allocation5 + $0x588] sm:$0xff]
    %v280 = vld [vmem:[#allocation5 + $0x590] sm:$0xff]
    %v281 = vld [vmem:[#allocation5 + $0x598] sm:$0xff]
    %v282 = vld [vmem:[#allocation5 + $0x5a0] sm:$0xff]
    %v283 = vld [vmem:[#allocation5 + $0x5a8] sm:$0xff]
    %v284 = vld [vmem:[#allocation5 + $0x5b0] sm:$0xff]
    %v285 = vld [vmem:[#allocation5 + $0x5b8] sm:$0xff]
    %v286 = vld [vmem:[#allocation5 + $0x5c0] sm:$0xff]
    %v287 = vld [vmem:[#allocation5 + $0x5c8] sm:$0xff]
    %v288 = vld [vmem:[#allocation5 + $0x5d0] sm:$0xff]
    %v289 = vld [vmem:[#allocation5 + $0x5d8] sm:$0xff]
    %v290 = vld [vmem:[#allocation5 + $0x5e0] sm:$0xff]
    %v291 = vld [vmem:[#allocation5 + $0x5e8] sm:$0xff]
    %v292 = vld [vmem:[#allocation5 + $0x5f0] sm:$0xff]
    %v293 = vld [vmem:[#allocation5 + $0x5f8] sm:$0xff]
    %v294 = vld [vmem:[#allocation5 + $0x600] sm:$0xff]
    %v295 = vld [vmem:[#allocation5 + $0x608] sm:$0xff]
    %v296 = vld [vmem:[#allocation5 + $0x610] sm:$0xff]
    %v297 = vld [vmem:[#allocation5 + $0x618] sm:$0xff]
    %v298 = vld [vmem:[#allocation5 + $0x620] sm:$0xff]
    %v299 = vld [vmem:[#allocation5 + $0x628] sm:$0xff]
    %v300 = vld [vmem:[#allocation5 + $0x630] sm:$0xff]
    %v301 = vld [vmem:[#allocation5 + $0x638] sm:$0xff]
    %v302 = vld [vmem:[#allocation5 + $0x640] sm:$0xff]
    %v303 = vld [vmem:[#allocation5 + $0x648] sm:$0xff]
    %v304 = vld [vmem:[#allocation5 + $0x650] sm:$0xff]
    %v305 = vld [vmem:[#allocation5 + $0x658] sm:$0xff]
    %v306 = vld [vmem:[#allocation5 + $0x660] sm:$0xff]
    %v307 = vld [vmem:[#allocation5 + $0x668] sm:$0xff]
    %v308 = vld [vmem:[#allocation5 + $0x670] sm:$0xff]
    %v309 = vld [vmem:[#allocation5 + $0x678] sm:$0xff]
    %v310 = vld [vmem:[#allocation5 + $0x680] sm:$0xff]
    %v311 = vld [vmem:[#allocation5 + $0x688] sm:$0xff]
    %v312 = vld [vmem:[#allocation5 + $0x690] sm:$0xff]
    %v313 = vld [vmem:[#allocation5 + $0x698] sm:$0xff]
    %v314 = vld [vmem:[#allocation5 + $0x6a0] sm:$0xff]
    %v315 = vld [vmem:[#allocation5 + $0x6a8] sm:$0xff]
    %v316 = vld [vmem:[#allocation5 + $0x6b0] sm:$0xff]
    %v317 = vld [vmem:[#allocation5 + $0x6b8] sm:$0xff]
    %v318 = vld [vmem:[#allocation5 + $0x6c0] sm:$0xff]
    %v319 = vld [vmem:[#allocation5 + $0x6c8] sm:$0xff]
    %v320 = vld [vmem:[#allocation5 + $0x6d0] sm:$0xff]
    %v321 = vld [vmem:[#allocation5 + $0x6d8] sm:$0xff]
    %v322 = vld [vmem:[#allocation5 + $0x6e0] sm:$0xff]
    %v323 = vld [vmem:[#allocation5 + $0x6e8] sm:$0xff]
    %v324 = vld [vmem:[#allocation5 + $0x6f0] sm:$0xff]
    %v325 = vld [vmem:[#allocation5 + $0x6f8] sm:$0xff]
    %v326 = vld [vmem:[#allocation5 + $0x700] sm:$0xff]
    %v327 = vld [vmem:[#allocation5 + $0x708] sm:$0xff]
    %v328 = vld [vmem:[#allocation5 + $0x710] sm:$0xff]
    %v329 = vld [vmem:[#allocation5 + $0x718] sm:$0xff]
    %v330 = vld [vmem:[#allocation5 + $0x720] sm:$0xff]
    %v331 = vld [vmem:[#allocation5 + $0x728] sm:$0xff]
    %v332 = vld [vmem:[#allocation5 + $0x730] sm:$0xff]
    %v333 = vld [vmem:[#allocation5 + $0x738] sm:$0xff]
    %v334 = vld [vmem:[#allocation5 + $0x740] sm:$0xff]
    %v335 = vld [vmem:[#allocation5 + $0x748] sm:$0xff]
    %v336 = vld [vmem:[#allocation5 + $0x750] sm:$0xff]
    %v337 = vld [vmem:[#allocation5 + $0x758] sm:$0xff]
    %v338 = vld [vmem:[#allocation5 + $0x760] sm:$0xff]
    %v339 = vld [vmem:[#allocation5 + $0x768] sm:$0xff]
    %v340 = vld [vmem:[#allocation5 + $0x770] sm:$0xff]
    %v341 = vld [vmem:[#allocation5 + $0x778] sm:$0xff]
    %v342 = vld [vmem:[#allocation5 + $0x780] sm:$0xff]
    %v343 = vld [vmem:[#allocation5 + $0x788] sm:$0xff]
    %v344 = vld [vmem:[#allocation5 + $0x790] sm:$0xff]
    %v345 = vld [vmem:[#allocation5 + $0x798] sm:$0xff]
    %v346 = vld [vmem:[#allocation5 + $0x7a0] sm:$0xff]
    %v347 = vld [vmem:[#allocation5 + $0x7a8] sm:$0xff]
    %v348 = vld [vmem:[#allocation5 + $0x7b0] sm:$0xff]
    %v349 = vld [vmem:[#allocation5 + $0x7b8] sm:$0xff]
    %v350 = vld [vmem:[#allocation5 + $0x7c0] sm:$0xff]
    %v351 = vld [vmem:[#allocation5 + $0x7c8] sm:$0xff]
    %v352 = vld [vmem:[#allocation5 + $0x7d0] sm:$0xff]
    %v353 = vld [vmem:[#allocation5 + $0x7d8] sm:$0xff]
    %v354 = vld [vmem:[#allocation5 + $0x7e0] sm:$0xff]
    %v355 = vld [vmem:[#allocation5 + $0x7e8] sm:$0xff]
    %v356 = vld [vmem:[#allocation5 + $0x7f0] sm:$0xff]
    %v357 = vld [vmem:[#allocation5 + $0x7f8] sm:$0xff]
    %v358 = vld [vmem:[#allocation5 + $0x800] sm:$0xff]
    %v359 = vld [vmem:[#allocation5 + $0x808] sm:$0xff]
    %v360 = vld [vmem:[#allocation5 + $0x810] sm:$0xff]
    %v361 = vld [vmem:[#allocation5 + $0x818] sm:$0xff]
    %v362 = vld [vmem:[#allocation5 + $0x820] sm:$0xff]
    %v363 = vld [vmem:[#allocation5 + $0x828] sm:$0xff]
    %v364 = vld [vmem:[#allocation5 + $0x830] sm:$0xff]
    %v365 = vld [vmem:[#allocation5 + $0x838] sm:$0xff]
    %v366 = vld [vmem:[#allocation5 + $0x840] sm:$0xff]
    %v367 = vld [vmem:[#allocation5 + $0x848] sm:$0xff]
    %v368 = vld [vmem:[#allocation5 + $0x850] sm:$0xff]
    %v369 = vld [vmem:[#allocation5 + $0x858] sm:$0xff]
    %v370 = vld [vmem:[#allocation5 + $0x860] sm:$0xff]
    %v371 = vld [vmem:[#allocation5 + $0x868] sm:$0xff]
    %v372 = vld [vmem:[#allocation5 + $0x870] sm:$0xff]
    %v373 = vld [vmem:[#allocation5 + $0x878] sm:$0xff]
    %v374 = vld [vmem:[#allocation5 + $0x880] sm:$0xff]
    %v375 = vld [vmem:[#allocation5 + $0x888] sm:$0xff]
    %v376 = vld [vmem:[#allocation5 + $0x890] sm:$0xff]
    %v377 = vld [vmem:[#allocation5 + $0x898] sm:$0xff]
    %v378 = vld [vmem:[#allocation5 + $0x8a0] sm:$0xff]
    %v379 = vld [vmem:[#allocation5 + $0x8a8] sm:$0xff]
    %v380 = vld [vmem:[#allocation5 + $0x8b0] sm:$0xff]
    %v381 = vld [vmem:[#allocation5 + $0x8b8] sm:$0xff]
    %v382 = vld [vmem:[#allocation5 + $0x8c0] sm:$0xff]
    %v383 = vld [vmem:[#allocation5 + $0x8c8] sm:$0xff]
    %v384 = vld [vmem:[#allocation5 + $0x8d0] sm:$0xff]
    %v385 = vld [vmem:[#allocation5 + $0x8d8] sm:$0xff]
    %v386 = vld [vmem:[#allocation5 + $0x8e0] sm:$0xff]
    %v387 = vld [vmem:[#allocation5 + $0x8e8] sm:$0xff]
    %v388 = vld [vmem:[#allocation5 + $0x8f0] sm:$0xff]
    %v389 = vld [vmem:[#allocation5 + $0x8f8] sm:$0xff]
    %v390 = vld [vmem:[#allocation5 + $0x900] sm:$0xff]
    %v391 = vld [vmem:[#allocation5 + $0x908] sm:$0xff]
    %v392 = vld [vmem:[#allocation5 + $0x910] sm:$0xff]
    %v393 = vld [vmem:[#allocation5 + $0x918] sm:$0xff]
    %v394 = vld [vmem:[#allocation5 + $0x920] sm:$0xff]
    %v395 = vld [vmem:[#allocation5 + $0x928] sm:$0xff]
    %v396 = vld [vmem:[#allocation5 + $0x930] sm:$0xff]
    %v397 = vld [vmem:[#allocation5 + $0x938] sm:$0xff]
    %v398 = vld [vmem:[#allocation5 + $0x940] sm:$0xff]
    %v399 = vld [vmem:[#allocation5 + $0x948] sm:$0xff]
    %v400 = vld [vmem:[#allocation5 + $0x950] sm:$0xff]
    %v401 = vld [vmem:[#allocation5 + $0x958] sm:$0xff]
    %v402 = vld [vmem:[#allocation5 + $0x960] sm:$0xff]
    %v403 = vld [vmem:[#allocation5 + $0x968] sm:$0xff]
    %v404 = vld [vmem:[#allocation5 + $0x970] sm:$0xff]
    %v405 = vld [vmem:[#allocation5 + $0x978] sm:$0xff]
    %v406 = vld [vmem:[#allocation5 + $0x980] sm:$0xff]
    %v407 = vld [vmem:[#allocation5 + $0x988] sm:$0xff]
    %v408 = vld [vmem:[#allocation5 + $0x990] sm:$0xff]
    %v409 = vld [vmem:[#allocation5 + $0x998] sm:$0xff]
    %v410 = vld [vmem:[#allocation5 + $0x9a0] sm:$0xff]
    %v411 = vld [vmem:[#allocation5 + $0x9a8] sm:$0xff]
    %v412 = vld [vmem:[#allocation5 + $0x9b0] sm:$0xff]
    %v413 = vld [vmem:[#allocation5 + $0x9b8] sm:$0xff]
    %v414 = vld [vmem:[#allocation5 + $0x9c0] sm:$0xff]
    %v415 = vld [vmem:[#allocation5 + $0x9c8] sm:$0xff]
    %v416 = vld [vmem:[#allocation5 + $0x9d0] sm:$0xff]
    %v417 = vld [vmem:[#allocation5 + $0x9d8] sm:$0xff]
    %v418 = vld [vmem:[#allocation5 + $0x9e0] sm:$0xff]
    %v419 = vld [vmem:[#allocation5 + $0x9e8] sm:$0xff]
    %v420 = vld [vmem:[#allocation5 + $0x9f0] sm:$0xff]
    %v421 = vld [vmem:[#allocation5 + $0x9f8] sm:$0xff]
    %v422 = vld [vmem:[#allocation5 + $0xa00] sm:$0xff]
    %v423 = vld [vmem:[#allocation5 + $0xa08] sm:$0xff]
    %v424 = vld [vmem:[#allocation5 + $0xa10] sm:$0xff]
    %v425 = vld [vmem:[#allocation5 + $0xa18] sm:$0xff]
    %v426 = vld [vmem:[#allocation5 + $0xa20] sm:$0xff]
    %v427 = vld [vmem:[#allocation5 + $0xa28] sm:$0xff]
    %v428 = vld [vmem:[#allocation5 + $0xa30] sm:$0xff]
    %v429 = vld [vmem:[#allocation5 + $0xa38] sm:$0xff]
    %v430 = vld [vmem:[#allocation5 + $0xa40] sm:$0xff]
    %v431 = vld [vmem:[#allocation5 + $0xa48] sm:$0xff]
    %v432 = vld [vmem:[#allocation5 + $0xa50] sm:$0xff]
    %v433 = vld [vmem:[#allocation5 + $0xa58] sm:$0xff]
    %v434 = vld [vmem:[#allocation5 + $0xa60] sm:$0xff]
    %v435 = vld [vmem:[#allocation5 + $0xa68] sm:$0xff]
    %v436 = vld [vmem:[#allocation5 + $0xa70] sm:$0xff]
    %v437 = vld [vmem:[#allocation5 + $0xa78] sm:$0xff]
    %v438 = vld [vmem:[#allocation5 + $0xa80] sm:$0xff]
    %v439 = vld [vmem:[#allocation5 + $0xa88] sm:$0xff]
    %v440 = vld [vmem:[#allocation5 + $0xa90] sm:$0xff]
    %v441 = vld [vmem:[#allocation5 + $0xa98] sm:$0xff]
    %v442 = vld [vmem:[#allocation5 + $0xaa0] sm:$0xff]
    %v443 = vld [vmem:[#allocation5 + $0xaa8] sm:$0xff]
    %v444 = vld [vmem:[#allocation5 + $0xab0] sm:$0xff]
    %v445 = vld [vmem:[#allocation5 + $0xab8] sm:$0xff]
    %v446 = vld [vmem:[#allocation5 + $0xac0] sm:$0xff]
    %v447 = vld [vmem:[#allocation5 + $0xac8] sm:$0xff]
    %v448 = vld [vmem:[#allocation5 + $0xad0] sm:$0xff]
    %v449 = vld [vmem:[#allocation5 + $0xad8] sm:$0xff]
    %v450 = vld [vmem:[#allocation5 + $0xae0] sm:$0xff]
    %v451 = vld [vmem:[#allocation5 + $0xae8] sm:$0xff]
    %v452 = vld [vmem:[#allocation5 + $0xaf0] sm:$0xff]
    %v453 = vld [vmem:[#allocation5 + $0xaf8] sm:$0xff]
    %v454 = vld [vmem:[#allocation5 + $0xb00] sm:$0xff]
    %v455 = vld [vmem:[#allocation5 + $0xb08] sm:$0xff]
    %v456 = vld [vmem:[#allocation5 + $0xb10] sm:$0xff]
    %v457 = vld [vmem:[#allocation5 + $0xb18] sm:$0xff]
    %v458 = vld [vmem:[#allocation5 + $0xb20] sm:$0xff]
    %v459 = vld [vmem:[#allocation5 + $0xb28] sm:$0xff]
    %v460 = vld [vmem:[#allocation5 + $0xb30] sm:$0xff]
    %v461 = vld [vmem:[#allocation5 + $0xb38] sm:$0xff]
    %v462 = vld [vmem:[#allocation5 + $0xb40] sm:$0xff]
    %v463 = vld [vmem:[#allocation5 + $0xb48] sm:$0xff]
    %v464 = vld [vmem:[#allocation5 + $0xb50] sm:$0xff]
    %v465 = vld [vmem:[#allocation5 + $0xb58] sm:$0xff]
    %v466 = vld [vmem:[#allocation5 + $0xb60] sm:$0xff]
    %v467 = vld [vmem:[#allocation5 + $0xb68] sm:$0xff]
    %v468 = vld [vmem:[#allocation5 + $0xb70] sm:$0xff]
    %v469 = vld [vmem:[#allocation5 + $0xb78] sm:$0xff]
    %v470 = vld [vmem:[#allocation5 + $0xb80] sm:$0xff]
    %v471 = vld [vmem:[#allocation5 + $0xb88] sm:$0xff]
    %v472 = vld [vmem:[#allocation5 + $0xb90] sm:$0xff]
    %v473 = vld [vmem:[#allocation5 + $0xb98] sm:$0xff]
    %v474 = vld [vmem:[#allocation5 + $0xba0] sm:$0xff]
    %v475 = vld [vmem:[#allocation5 + $0xba8] sm:$0xff]
    %v476 = vld [vmem:[#allocation5 + $0xbb0] sm:$0xff]
    %v477 = vld [vmem:[#allocation5 + $0xbb8] sm:$0xff]
    %v478 = vld [vmem:[#allocation5 + $0xbc0] sm:$0xff]
    %v479 = vld [vmem:[#allocation5 + $0xbc8] sm:$0xff]
    %v480 = vld [vmem:[#allocation5 + $0xbd0] sm:$0xff]
    %v481 = vld [vmem:[#allocation5 + $0xbd8] sm:$0xff]
    %v482 = vld [vmem:[#allocation5 + $0xbe0] sm:$0xff]
    %v483 = vld [vmem:[#allocation5 + $0xbe8] sm:$0xff]
    %v484 = vld [vmem:[#allocation5 + $0xbf0] sm:$0xff]
    %v485 = vld [vmem:[#allocation5 + $0xbf8] sm:$0xff]
    %v486 = vld [vmem:[#allocation5 + $0xc00] sm:$0xff]
    %v487 = vld [vmem:[#allocation5 + $0xc08] sm:$0xff]
    %v488 = vld [vmem:[#allocation5 + $0xc10] sm:$0xff]
    %v489 = vld [vmem:[#allocation5 + $0xc18] sm:$0xff]
    %v490 = vld [vmem:[#allocation5 + $0xc20] sm:$0xff]
    %v491 = vld [vmem:[#allocation5 + $0xc28] sm:$0xff]
    %v492 = vld [vmem:[#allocation5 + $0xc30] sm:$0xff]
    %v493 = vld [vmem:[#allocation5 + $0xc38] sm:$0xff]
    %v502 = vunpack.c.l.b16 %v94
    %v503 = vunpack.c.h.b16 %v94
    %v504 = vunpack.c.l.b16 %v95
    %v505 = vunpack.c.h.b16 %v95
    %v506 = vunpack.c.l.b16 %v96
    %v507 = vunpack.c.h.b16 %v96
    %v508 = vunpack.c.l.b16 %v97
    %v509 = vunpack.c.l.b16 %v98
    %v510 = vunpack.c.h.b16 %v98
    %v511 = vunpack.c.l.b16 %v99
    %v512 = vunpack.c.h.b16 %v99
    %v513 = vunpack.c.l.b16 %v100
    %v514 = vunpack.c.h.b16 %v100
    %v515 = vunpack.c.l.b16 %v101
    %v516 = vpack.c.b16 %v509, %v502
    %v517 = vpack.c.b16 %v510, %v503
    %v518 = vpack.c.b16 %v511, %v504
    %v519 = vpack.c.b16 %v512, %v505
    %v520 = vpack.c.b16 %v513, %v506
    %v521 = vpack.c.b16 %v514, %v507
    %v522 = vpack.c.b16 %v515, %v508
    %v921 = vunpack.c.l.b16 %v102
    %v922 = vunpack.c.h.b16 %v102
    %v923 = vunpack.c.l.b16 %v103
    %v924 = vunpack.c.h.b16 %v103
    %v925 = vunpack.c.l.b16 %v104
    %v926 = vunpack.c.h.b16 %v104
    %v927 = vunpack.c.l.b16 %v105
    %v928 = vunpack.c.h.b16 %v105
    %v929 = vunpack.c.l.b16 %v106
    %v930 = vunpack.c.h.b16 %v106
    %v931 = vunpack.c.l.b16 %v107
    %v932 = vunpack.c.h.b16 %v107
    %v933 = vunpack.c.l.b16 %v108
    %v934 = vunpack.c.h.b16 %v108
    %v935 = vunpack.c.l.b16 %v109
    %v936 = vunpack.c.h.b16 %v109
    %v937 = vunpack.c.l.b16 %v110
    %v938 = vunpack.c.h.b16 %v110
    %v939 = vunpack.c.l.b16 %v111
    %v940 = vunpack.c.h.b16 %v111
    %v941 = vunpack.c.l.b16 %v112
    %v942 = vunpack.c.h.b16 %v112
    %v943 = vunpack.c.l.b16 %v113
    %v944 = vunpack.c.h.b16 %v113
    %v945 = vunpack.c.l.b16 %v114
    %v946 = vunpack.c.h.b16 %v114
    %v947 = vunpack.c.l.b16 %v115
    %v948 = vunpack.c.h.b16 %v115
    %v949 = vunpack.c.l.b16 %v116
    %v950 = vunpack.c.h.b16 %v116
    %v951 = vunpack.c.l.b16 %v117
    %v952 = vunpack.c.h.b16 %v117
    %v953 = vunpack.c.l.b16 %v118
    %v954 = vunpack.c.h.b16 %v118
    %v955 = vunpack.c.l.b16 %v119
    %v956 = vunpack.c.h.b16 %v119
    %v957 = vunpack.c.l.b16 %v120
    %v958 = vunpack.c.h.b16 %v120
    %v959 = vunpack.c.l.b16 %v121
    %v960 = vunpack.c.h.b16 %v121
    %v961 = vunpack.c.l.b16 %v122
    %v962 = vunpack.c.h.b16 %v122
    %v963 = vunpack.c.l.b16 %v123
    %v964 = vunpack.c.h.b16 %v123
    %v965 = vunpack.c.l.b16 %v124
    %v966 = vunpack.c.h.b16 %v124
    %v967 = vunpack.c.l.b16 %v125
    %v968 = vunpack.c.h.b16 %v125
    %v969 = vunpack.c.l.b16 %v126
    %v970 = vunpack.c.h.b16 %v126
    %v971 = vunpack.c.l.b16 %v127
    %v972 = vunpack.c.h.b16 %v127
    %v973 = vunpack.c.l.b16 %v128
    %v974 = vunpack.c.h.b16 %v128
    %v975 = vunpack.c.l.b16 %v129
    %v976 = vunpack.c.h.b16 %v129
    %v977 = vunpack.c.l.b16 %v130
    %v978 = vunpack.c.h.b16 %v130
    %v979 = vunpack.c.l.b16 %v131
    %v980 = vunpack.c.h.b16 %v131
    %v981 = vunpack.c.l.b16 %v132
    %v982 = vunpack.c.h.b16 %v132
    %v983 = vunpack.c.l.b16 %v133
    %v984 = vunpack.c.h.b16 %v133
    %v985 = vunpack.c.l.b16 %v134
    %v986 = vunpack.c.h.b16 %v134
    %v987 = vunpack.c.l.b16 %v135
    %v988 = vunpack.c.h.b16 %v135
    %v989 = vunpack.c.l.b16 %v136
    %v990 = vunpack.c.h.b16 %v136
    %v991 = vunpack.c.l.b16 %v137
    %v992 = vunpack.c.h.b16 %v137
    %v993 = vunpack.c.l.b16 %v138
    %v994 = vunpack.c.h.b16 %v138
    %v995 = vunpack.c.l.b16 %v139
    %v996 = vunpack.c.h.b16 %v139
    %v997 = vunpack.c.l.b16 %v140
    %v998 = vunpack.c.h.b16 %v140
    %v999 = vunpack.c.l.b16 %v141
    %v1000 = vunpack.c.h.b16 %v141
    %v1001 = vunpack.c.l.b16 %v142
    %v1002 = vunpack.c.h.b16 %v142
    %v1003 = vunpack.c.l.b16 %v143
    %v1004 = vunpack.c.h.b16 %v143
    %v1005 = vunpack.c.l.b16 %v144
    %v1006 = vunpack.c.h.b16 %v144
    %v1007 = vunpack.c.l.b16 %v145
    %v1008 = vunpack.c.h.b16 %v145
    %v1009 = vunpack.c.l.b16 %v146
    %v1010 = vunpack.c.h.b16 %v146
    %v1011 = vunpack.c.l.b16 %v147
    %v1012 = vunpack.c.h.b16 %v147
    %v1013 = vunpack.c.l.b16 %v148
    %v1014 = vunpack.c.h.b16 %v148
    %v1015 = vunpack.c.l.b16 %v149
    %v1016 = vunpack.c.h.b16 %v149
    %v1017 = vunpack.c.l.b16 %v150
    %v1018 = vunpack.c.h.b16 %v150
    %v1019 = vunpack.c.l.b16 %v151
    %v1020 = vunpack.c.h.b16 %v151
    %v1021 = vunpack.c.l.b16 %v152
    %v1022 = vunpack.c.h.b16 %v152
    %v1023 = vunpack.c.l.b16 %v153
    %v1024 = vunpack.c.h.b16 %v153
    %v1025 = vunpack.c.l.b16 %v154
    %v1026 = vunpack.c.h.b16 %v154
    %v1027 = vunpack.c.l.b16 %v155
    %v1028 = vunpack.c.h.b16 %v155
    %v1029 = vunpack.c.l.b16 %v156
    %v1030 = vunpack.c.h.b16 %v156
    %v1031 = vunpack.c.l.b16 %v157
    %v1032 = vunpack.c.h.b16 %v157
    %v1033 = vunpack.c.l.b16 %v158
    %v1034 = vunpack.c.h.b16 %v158
    %v1035 = vunpack.c.l.b16 %v159
    %v1036 = vunpack.c.h.b16 %v159
    %v1037 = vunpack.c.l.b16 %v160
    %v1038 = vunpack.c.h.b16 %v160
    %v1039 = vunpack.c.l.b16 %v161
    %v1040 = vunpack.c.h.b16 %v161
    %v1041 = vunpack.c.l.b16 %v162
    %v1042 = vunpack.c.h.b16 %v162
    %v1043 = vunpack.c.l.b16 %v163
    %v1044 = vunpack.c.h.b16 %v163
    %v1045 = vunpack.c.l.b16 %v164
    %v1046 = vunpack.c.h.b16 %v164
    %v1047 = vunpack.c.l.b16 %v165
    %v1048 = vunpack.c.h.b16 %v165
    %v1049 = vunpack.c.l.b16 %v166
    %v1050 = vunpack.c.h.b16 %v166
    %v1051 = vunpack.c.l.b16 %v167
    %v1052 = vunpack.c.h.b16 %v167
    %v1053 = vunpack.c.l.b16 %v168
    %v1054 = vunpack.c.h.b16 %v168
    %v1055 = vunpack.c.l.b16 %v169
    %v1056 = vunpack.c.h.b16 %v169
    %v1057 = vunpack.c.l.b16 %v170
    %v1058 = vunpack.c.h.b16 %v170
    %v1059 = vunpack.c.l.b16 %v171
    %v1060 = vunpack.c.h.b16 %v171
    %v1061 = vunpack.c.l.b16 %v172
    %v1062 = vunpack.c.h.b16 %v172
    %v1063 = vunpack.c.l.b16 %v173
    %v1064 = vunpack.c.h.b16 %v173
    %v1065 = vunpack.c.l.b16 %v174
    %v1066 = vunpack.c.h.b16 %v174
    %v1067 = vunpack.c.l.b16 %v175
    %v1068 = vunpack.c.h.b16 %v175
    %v1069 = vunpack.c.l.b16 %v176
    %v1070 = vunpack.c.h.b16 %v176
    %v1071 = vunpack.c.l.b16 %v177
    %v1072 = vunpack.c.h.b16 %v177
    %v1073 = vunpack.c.l.b16 %v178
    %v1074 = vunpack.c.h.b16 %v178
    %v1075 = vunpack.c.l.b16 %v179
    %v1076 = vunpack.c.h.b16 %v179
    %v1077 = vunpack.c.l.b16 %v180
    %v1078 = vunpack.c.h.b16 %v180
    %v1079 = vunpack.c.l.b16 %v181
    %v1080 = vunpack.c.h.b16 %v181
    %v1081 = vunpack.c.l.b16 %v182
    %v1082 = vunpack.c.h.b16 %v182
    %v1083 = vunpack.c.l.b16 %v183
    %v1084 = vunpack.c.h.b16 %v183
    %v1085 = vunpack.c.l.b16 %v184
    %v1086 = vunpack.c.h.b16 %v184
    %v1087 = vunpack.c.l.b16 %v185
    %v1088 = vunpack.c.h.b16 %v185
    %v1089 = vunpack.c.l.b16 %v186
    %v1090 = vunpack.c.h.b16 %v186
    %v1091 = vunpack.c.l.b16 %v187
    %v1092 = vunpack.c.h.b16 %v187
    %v1093 = vunpack.c.l.b16 %v188
    %v1094 = vunpack.c.h.b16 %v188
    %v1095 = vunpack.c.l.b16 %v189
    %v1096 = vunpack.c.h.b16 %v189
    %v1097 = vunpack.c.l.b16 %v190
    %v1098 = vunpack.c.h.b16 %v190
    %v1099 = vunpack.c.l.b16 %v191
    %v1100 = vunpack.c.h.b16 %v191
    %v1101 = vunpack.c.l.b16 %v192
    %v1102 = vunpack.c.h.b16 %v192
    %v1103 = vunpack.c.l.b16 %v193
    %v1104 = vunpack.c.h.b16 %v193
    %v1105 = vunpack.c.l.b16 %v194
    %v1106 = vunpack.c.h.b16 %v194
    %v1107 = vunpack.c.l.b16 %v195
    %v1108 = vunpack.c.h.b16 %v195
    %v1109 = vunpack.c.l.b16 %v196
    %v1110 = vunpack.c.h.b16 %v196
    %v1111 = vunpack.c.l.b16 %v197
    %v1112 = vunpack.c.h.b16 %v197
    %v1113 = vunpack.c.l.b16 %v198
    %v1114 = vunpack.c.h.b16 %v198
    %v1115 = vunpack.c.l.b16 %v199
    %v1116 = vunpack.c.h.b16 %v199
    %v1117 = vunpack.c.l.b16 %v200
    %v1118 = vunpack.c.h.b16 %v200
    %v1119 = vunpack.c.l.b16 %v201
    %v1120 = vunpack.c.h.b16 %v201
    %v1121 = vunpack.c.l.b16 %v202
    %v1122 = vunpack.c.h.b16 %v202
    %v1123 = vunpack.c.l.b16 %v203
    %v1124 = vunpack.c.h.b16 %v203
    %v1125 = vunpack.c.l.b16 %v204
    %v1126 = vunpack.c.h.b16 %v204
    %v1127 = vunpack.c.l.b16 %v205
    %v1128 = vunpack.c.h.b16 %v205
    %v1129 = vunpack.c.l.b16 %v206
    %v1130 = vunpack.c.h.b16 %v206
    %v1131 = vunpack.c.l.b16 %v207
    %v1132 = vunpack.c.h.b16 %v207
    %v1133 = vunpack.c.l.b16 %v208
    %v1134 = vunpack.c.h.b16 %v208
    %v1135 = vunpack.c.l.b16 %v209
    %v1136 = vunpack.c.h.b16 %v209
    %v1137 = vunpack.c.l.b16 %v210
    %v1138 = vunpack.c.h.b16 %v210
    %v1139 = vunpack.c.l.b16 %v211
    %v1140 = vunpack.c.h.b16 %v211
    %v1141 = vunpack.c.l.b16 %v212
    %v1142 = vunpack.c.h.b16 %v212
    %v1143 = vunpack.c.l.b16 %v213
    %v1144 = vunpack.c.h.b16 %v213
    %v1145 = vunpack.c.l.b16 %v214
    %v1146 = vunpack.c.h.b16 %v214
    %v1147 = vunpack.c.l.b16 %v215
    %v1148 = vunpack.c.h.b16 %v215
    %v1149 = vunpack.c.l.b16 %v216
    %v1150 = vunpack.c.h.b16 %v216
    %v1151 = vunpack.c.l.b16 %v217
    %v1152 = vunpack.c.h.b16 %v217
    %v1153 = vunpack.c.l.b16 %v218
    %v1154 = vunpack.c.h.b16 %v218
    %v1155 = vunpack.c.l.b16 %v219
    %v1156 = vunpack.c.h.b16 %v219
    %v1157 = vunpack.c.l.b16 %v220
    %v1158 = vunpack.c.h.b16 %v220
    %v1159 = vunpack.c.l.b16 %v221
    %v1160 = vunpack.c.h.b16 %v221
    %v1161 = vunpack.c.l.b16 %v222
    %v1162 = vunpack.c.h.b16 %v222
    %v1163 = vunpack.c.l.b16 %v223
    %v1164 = vunpack.c.h.b16 %v223
    %v1165 = vunpack.c.l.b16 %v224
    %v1166 = vunpack.c.h.b16 %v224
    %v1167 = vunpack.c.l.b16 %v225
    %v1168 = vunpack.c.h.b16 %v225
    %v1169 = vunpack.c.l.b16 %v226
    %v1170 = vunpack.c.h.b16 %v226
    %v1171 = vunpack.c.l.b16 %v227
    %v1172 = vunpack.c.h.b16 %v227
    %v1173 = vunpack.c.l.b16 %v228
    %v1174 = vunpack.c.h.b16 %v228
    %v1175 = vunpack.c.l.b16 %v229
    %v1176 = vunpack.c.h.b16 %v229
    %v1177 = vunpack.c.l.b16 %v230
    %v1178 = vunpack.c.h.b16 %v230
    %v1179 = vunpack.c.l.b16 %v231
    %v1180 = vunpack.c.h.b16 %v231
    %v1181 = vunpack.c.l.b16 %v232
    %v1182 = vunpack.c.h.b16 %v232
    %v1183 = vunpack.c.l.b16 %v233
    %v1184 = vunpack.c.h.b16 %v233
    %v1185 = vunpack.c.l.b16 %v234
    %v1186 = vunpack.c.h.b16 %v234
    %v1187 = vunpack.c.l.b16 %v235
    %v1188 = vunpack.c.h.b16 %v235
    %v1189 = vunpack.c.l.b16 %v236
    %v1190 = vunpack.c.h.b16 %v236
    %v1191 = vunpack.c.l.b16 %v237
    %v1192 = vunpack.c.h.b16 %v237
    %v1193 = vunpack.c.l.b16 %v238
    %v1194 = vunpack.c.h.b16 %v238
    %v1195 = vunpack.c.l.b16 %v239
    %v1196 = vunpack.c.h.b16 %v239
    %v1197 = vunpack.c.l.b16 %v240
    %v1198 = vunpack.c.h.b16 %v240
    %v1199 = vunpack.c.l.b16 %v241
    %v1200 = vunpack.c.h.b16 %v241
    %v1201 = vunpack.c.l.b16 %v242
    %v1202 = vunpack.c.h.b16 %v242
    %v1203 = vunpack.c.l.b16 %v243
    %v1204 = vunpack.c.h.b16 %v243
    %v1205 = vunpack.c.l.b16 %v244
    %v1206 = vunpack.c.h.b16 %v244
    %v1207 = vunpack.c.l.b16 %v245
    %v1208 = vunpack.c.h.b16 %v245
    %v1209 = vunpack.c.l.b16 %v246
    %v1210 = vunpack.c.h.b16 %v246
    %v1211 = vunpack.c.l.b16 %v247
    %v1212 = vunpack.c.h.b16 %v247
    %v1213 = vunpack.c.l.b16 %v248
    %v1214 = vunpack.c.h.b16 %v248
    %v1215 = vunpack.c.l.b16 %v249
    %v1216 = vunpack.c.h.b16 %v249
    %v1217 = vunpack.c.l.b16 %v250
    %v1218 = vunpack.c.h.b16 %v250
    %v1219 = vunpack.c.l.b16 %v251
    %v1220 = vunpack.c.h.b16 %v251
    %v1221 = vunpack.c.l.b16 %v252
    %v1222 = vunpack.c.h.b16 %v252
    %v1223 = vunpack.c.l.b16 %v253
    %v1224 = vunpack.c.h.b16 %v253
    %v1225 = vunpack.c.l.b16 %v254
    %v1226 = vunpack.c.h.b16 %v254
    %v1227 = vunpack.c.l.b16 %v255
    %v1228 = vunpack.c.h.b16 %v255
    %v1229 = vunpack.c.l.b16 %v256
    %v1230 = vunpack.c.h.b16 %v256
    %v1231 = vunpack.c.l.b16 %v257
    %v1232 = vunpack.c.h.b16 %v257
    %v1233 = vunpack.c.l.b16 %v258
    %v1234 = vunpack.c.h.b16 %v258
    %v1235 = vunpack.c.l.b16 %v259
    %v1236 = vunpack.c.h.b16 %v259
    %v1237 = vunpack.c.l.b16 %v260
    %v1238 = vunpack.c.h.b16 %v260
    %v1239 = vunpack.c.l.b16 %v261
    %v1240 = vunpack.c.h.b16 %v261
    %v1241 = vunpack.c.l.b16 %v262
    %v1242 = vunpack.c.h.b16 %v262
    %v1243 = vunpack.c.l.b16 %v263
    %v1244 = vunpack.c.h.b16 %v263
    %v1245 = vunpack.c.l.b16 %v264
    %v1246 = vunpack.c.h.b16 %v264
    %v1247 = vunpack.c.l.b16 %v265
    %v1248 = vunpack.c.h.b16 %v265
    %v1249 = vunpack.c.l.b16 %v266
    %v1250 = vunpack.c.h.b16 %v266
    %v1251 = vunpack.c.l.b16 %v267
    %v1252 = vunpack.c.h.b16 %v267
    %v1253 = vunpack.c.l.b16 %v268
    %v1254 = vunpack.c.h.b16 %v268
    %v1255 = vunpack.c.l.b16 %v269
    %v1256 = vunpack.c.h.b16 %v269
    %v1257 = vunpack.c.l.b16 %v270
    %v1258 = vunpack.c.h.b16 %v270
    %v1259 = vunpack.c.l.b16 %v271
    %v1260 = vunpack.c.h.b16 %v271
    %v1261 = vunpack.c.l.b16 %v272
    %v1262 = vunpack.c.h.b16 %v272
    %v1263 = vunpack.c.l.b16 %v273
    %v1264 = vunpack.c.h.b16 %v273
    %v1265 = vunpack.c.l.b16 %v274
    %v1266 = vunpack.c.h.b16 %v274
    %v1267 = vunpack.c.l.b16 %v275
    %v1268 = vunpack.c.h.b16 %v275
    %v1269 = vunpack.c.l.b16 %v276
    %v1270 = vunpack.c.h.b16 %v276
    %v1271 = vunpack.c.l.b16 %v277
    %v1272 = vunpack.c.h.b16 %v277
    %v1273 = vunpack.c.l.b16 %v278
    %v1274 = vunpack.c.h.b16 %v278
    %v1275 = vunpack.c.l.b16 %v279
    %v1276 = vunpack.c.h.b16 %v279
    %v1277 = vunpack.c.l.b16 %v280
    %v1278 = vunpack.c.h.b16 %v280
    %v1279 = vunpack.c.l.b16 %v281
    %v1280 = vunpack.c.h.b16 %v281
    %v1281 = vunpack.c.l.b16 %v282
    %v1282 = vunpack.c.h.b16 %v282
    %v1283 = vunpack.c.l.b16 %v283
    %v1284 = vunpack.c.h.b16 %v283
    %v1285 = vunpack.c.l.b16 %v284
    %v1286 = vunpack.c.h.b16 %v284
    %v1287 = vunpack.c.l.b16 %v285
    %v1288 = vunpack.c.h.b16 %v285
    %v1289 = vunpack.c.l.b16 %v286
    %v1290 = vunpack.c.h.b16 %v286
    %v1291 = vunpack.c.l.b16 %v287
    %v1292 = vunpack.c.h.b16 %v287
    %v1293 = vunpack.c.l.b16 %v288
    %v1294 = vunpack.c.h.b16 %v288
    %v1295 = vunpack.c.l.b16 %v289
    %v1296 = vunpack.c.h.b16 %v289
    %v1297 = vunpack.c.l.b16 %v290
    %v1298 = vunpack.c.h.b16 %v290
    %v1299 = vunpack.c.l.b16 %v291
    %v1300 = vunpack.c.h.b16 %v291
    %v1301 = vunpack.c.l.b16 %v292
    %v1302 = vunpack.c.h.b16 %v292
    %v1303 = vunpack.c.l.b16 %v293
    %v1304 = vunpack.c.h.b16 %v293
    %v1305 = vunpack.c.l.b16 %v294
    %v1306 = vunpack.c.h.b16 %v294
    %v1307 = vunpack.c.l.b16 %v295
    %v1308 = vunpack.c.h.b16 %v295
    %v1309 = vunpack.c.l.b16 %v296
    %v1310 = vunpack.c.h.b16 %v296
    %v1311 = vunpack.c.l.b16 %v297
    %v1312 = vunpack.c.h.b16 %v297
    %v1313 = vunpack.c.l.b16 %v298
    %v1314 = vunpack.c.h.b16 %v298
    %v1315 = vunpack.c.l.b16 %v299
    %v1316 = vunpack.c.h.b16 %v299
    %v1317 = vunpack.c.l.b16 %v300
    %v1318 = vunpack.c.h.b16 %v300
    %v1319 = vunpack.c.l.b16 %v301
    %v1320 = vunpack.c.h.b16 %v301
    %v1321 = vunpack.c.l.b16 %v302
    %v1322 = vunpack.c.h.b16 %v302
    %v1323 = vunpack.c.l.b16 %v303
    %v1324 = vunpack.c.h.b16 %v303
    %v1325 = vunpack.c.l.b16 %v304
    %v1326 = vunpack.c.h.b16 %v304
    %v1327 = vunpack.c.l.b16 %v305
    %v1328 = vunpack.c.h.b16 %v305
    %v1329 = vunpack.c.l.b16 %v306
    %v1330 = vunpack.c.h.b16 %v306
    %v1331 = vunpack.c.l.b16 %v307
    %v1332 = vunpack.c.h.b16 %v307
    %v1333 = vunpack.c.l.b16 %v308
    %v1334 = vunpack.c.h.b16 %v308
    %v1335 = vunpack.c.l.b16 %v309
    %v1336 = vunpack.c.h.b16 %v309
    %v1337 = vunpack.c.l.b16 %v310
    %v1338 = vunpack.c.h.b16 %v310
    %v1339 = vunpack.c.l.b16 %v311
    %v1340 = vunpack.c.h.b16 %v311
    %v1341 = vunpack.c.l.b16 %v312
    %v1342 = vunpack.c.h.b16 %v312
    %v1343 = vunpack.c.l.b16 %v313
    %v1344 = vunpack.c.h.b16 %v313
    %v1345 = vunpack.c.l.b16 %v314
    %v1346 = vunpack.c.h.b16 %v314
    %v1347 = vunpack.c.l.b16 %v315
    %v1348 = vunpack.c.h.b16 %v315
    %v1349 = vunpack.c.l.b16 %v316
    %v1350 = vunpack.c.h.b16 %v316
    %v1351 = vunpack.c.l.b16 %v317
    %v1352 = vunpack.c.h.b16 %v317
    %v1353 = vunpack.c.l.b16 %v318
    %v1354 = vunpack.c.h.b16 %v318
    %v1355 = vunpack.c.l.b16 %v319
    %v1356 = vunpack.c.h.b16 %v319
    %v1357 = vunpack.c.l.b16 %v320
    %v1358 = vunpack.c.h.b16 %v320
    %v1359 = vunpack.c.l.b16 %v321
    %v1360 = vunpack.c.h.b16 %v321
    %v1361 = vunpack.c.l.b16 %v322
    %v1362 = vunpack.c.h.b16 %v322
    %v1363 = vunpack.c.l.b16 %v323
    %v1364 = vunpack.c.h.b16 %v323
    %v1365 = vunpack.c.l.b16 %v324
    %v1366 = vunpack.c.h.b16 %v324
    %v1367 = vunpack.c.l.b16 %v325
    %v1368 = vunpack.c.h.b16 %v325
    %v1369 = vunpack.c.l.b16 %v326
    %v1370 = vunpack.c.h.b16 %v326
    %v1371 = vunpack.c.l.b16 %v327
    %v1372 = vunpack.c.h.b16 %v327
    %v1373 = vunpack.c.l.b16 %v328
    %v1374 = vunpack.c.h.b16 %v328
    %v1375 = vunpack.c.l.b16 %v329
    %v1376 = vunpack.c.h.b16 %v329
    %v1377 = vunpack.c.l.b16 %v330
    %v1378 = vunpack.c.h.b16 %v330
    %v1379 = vunpack.c.l.b16 %v331
    %v1380 = vunpack.c.h.b16 %v331
    %v1381 = vunpack.c.l.b16 %v332
    %v1382 = vunpack.c.h.b16 %v332
    %v1383 = vunpack.c.l.b16 %v333
    %v1384 = vunpack.c.h.b16 %v333
    %v1385 = vunpack.c.l.b16 %v334
    %v1386 = vunpack.c.h.b16 %v334
    %v1387 = vunpack.c.l.b16 %v335
    %v1388 = vunpack.c.h.b16 %v335
    %v1389 = vunpack.c.l.b16 %v336
    %v1390 = vunpack.c.h.b16 %v336
    %v1391 = vunpack.c.l.b16 %v337
    %v1392 = vunpack.c.h.b16 %v337
    %v1393 = vunpack.c.l.b16 %v338
    %v1394 = vunpack.c.h.b16 %v338
    %v1395 = vunpack.c.l.b16 %v339
    %v1396 = vunpack.c.h.b16 %v339
    %v1397 = vunpack.c.l.b16 %v340
    %v1398 = vunpack.c.h.b16 %v340
    %v1399 = vunpack.c.l.b16 %v341
    %v1400 = vunpack.c.h.b16 %v341
    %v1401 = vunpack.c.l.b16 %v342
    %v1402 = vunpack.c.h.b16 %v342
    %v1403 = vunpack.c.l.b16 %v343
    %v1404 = vunpack.c.h.b16 %v343
    %v1405 = vunpack.c.l.b16 %v344
    %v1406 = vunpack.c.h.b16 %v344
    %v1407 = vunpack.c.l.b16 %v345
    %v1408 = vunpack.c.h.b16 %v345
    %v1409 = vunpack.c.l.b16 %v346
    %v1410 = vunpack.c.h.b16 %v346
    %v1411 = vunpack.c.l.b16 %v347
    %v1412 = vunpack.c.h.b16 %v347
    %v1413 = vunpack.c.l.b16 %v348
    %v1414 = vunpack.c.h.b16 %v348
    %v1415 = vunpack.c.l.b16 %v349
    %v1416 = vunpack.c.h.b16 %v349
    %v1417 = vunpack.c.l.b16 %v350
    %v1418 = vunpack.c.h.b16 %v350
    %v1419 = vunpack.c.l.b16 %v351
    %v1420 = vunpack.c.h.b16 %v351
    %v1421 = vunpack.c.l.b16 %v352
    %v1422 = vunpack.c.h.b16 %v352
    %v1423 = vunpack.c.l.b16 %v353
    %v1424 = vunpack.c.h.b16 %v353
    %v1425 = vunpack.c.l.b16 %v354
    %v1426 = vunpack.c.h.b16 %v354
    %v1427 = vunpack.c.l.b16 %v355
    %v1428 = vunpack.c.h.b16 %v355
    %v1429 = vunpack.c.l.b16 %v356
    %v1430 = vunpack.c.h.b16 %v356
    %v1431 = vunpack.c.l.b16 %v357
    %v1432 = vunpack.c.h.b16 %v357
    %v1433 = vunpack.c.l.b16 %v358
    %v1434 = vunpack.c.h.b16 %v358
    %v1435 = vunpack.c.l.b16 %v359
    %v1436 = vunpack.c.h.b16 %v359
    %v1437 = vunpack.c.l.b16 %v360
    %v1438 = vunpack.c.h.b16 %v360
    %v1439 = vunpack.c.l.b16 %v361
    %v1440 = vunpack.c.h.b16 %v361
    %v1441 = vunpack.c.l.b16 %v362
    %v1442 = vunpack.c.h.b16 %v362
    %v1443 = vunpack.c.l.b16 %v363
    %v1444 = vunpack.c.h.b16 %v363
    %v1445 = vunpack.c.l.b16 %v364
    %v1446 = vunpack.c.h.b16 %v364
    %v1447 = vunpack.c.l.b16 %v365
    %v1448 = vunpack.c.h.b16 %v365
    %v1449 = vunpack.c.l.b16 %v366
    %v1450 = vunpack.c.h.b16 %v366
    %v1451 = vunpack.c.l.b16 %v367
    %v1452 = vunpack.c.h.b16 %v367
    %v1453 = vunpack.c.l.b16 %v368
    %v1454 = vunpack.c.h.b16 %v368
    %v1455 = vunpack.c.l.b16 %v369
    %v1456 = vunpack.c.h.b16 %v369
    %v1457 = vunpack.c.l.b16 %v370
    %v1458 = vunpack.c.h.b16 %v370
    %v1459 = vunpack.c.l.b16 %v371
    %v1460 = vunpack.c.h.b16 %v371
    %v1461 = vunpack.c.l.b16 %v372
    %v1462 = vunpack.c.h.b16 %v372
    %v1463 = vunpack.c.l.b16 %v373
    %v1464 = vunpack.c.h.b16 %v373
    %v1465 = vunpack.c.l.b16 %v374
    %v1466 = vunpack.c.h.b16 %v374
    %v1467 = vunpack.c.l.b16 %v375
    %v1468 = vunpack.c.h.b16 %v375
    %v1469 = vunpack.c.l.b16 %v376
    %v1470 = vunpack.c.h.b16 %v376
    %v1471 = vunpack.c.l.b16 %v377
    %v1472 = vunpack.c.h.b16 %v377
    %v1473 = vunpack.c.l.b16 %v378
    %v1474 = vunpack.c.h.b16 %v378
    %v1475 = vunpack.c.l.b16 %v379
    %v1476 = vunpack.c.h.b16 %v379
    %v1477 = vunpack.c.l.b16 %v380
    %v1478 = vunpack.c.h.b16 %v380
    %v1479 = vunpack.c.l.b16 %v381
    %v1480 = vunpack.c.h.b16 %v381
    %v1481 = vunpack.c.l.b16 %v382
    %v1482 = vunpack.c.h.b16 %v382
    %v1483 = vunpack.c.l.b16 %v383
    %v1484 = vunpack.c.h.b16 %v383
    %v1485 = vunpack.c.l.b16 %v384
    %v1486 = vunpack.c.h.b16 %v384
    %v1487 = vunpack.c.l.b16 %v385
    %v1488 = vunpack.c.h.b16 %v385
    %v1489 = vunpack.c.l.b16 %v386
    %v1490 = vunpack.c.h.b16 %v386
    %v1491 = vunpack.c.l.b16 %v387
    %v1492 = vunpack.c.h.b16 %v387
    %v1493 = vunpack.c.l.b16 %v388
    %v1494 = vunpack.c.h.b16 %v388
    %v1495 = vunpack.c.l.b16 %v389
    %v1496 = vunpack.c.h.b16 %v389
    %v1497 = vunpack.c.l.b16 %v390
    %v1498 = vunpack.c.h.b16 %v390
    %v1499 = vunpack.c.l.b16 %v391
    %v1500 = vunpack.c.h.b16 %v391
    %v1501 = vunpack.c.l.b16 %v392
    %v1502 = vunpack.c.h.b16 %v392
    %v1503 = vunpack.c.l.b16 %v393
    %v1504 = vunpack.c.h.b16 %v393
    %v1505 = vunpack.c.l.b16 %v394
    %v1506 = vunpack.c.h.b16 %v394
    %v1507 = vunpack.c.l.b16 %v395
    %v1508 = vunpack.c.h.b16 %v395
    %v1509 = vunpack.c.l.b16 %v396
    %v1510 = vunpack.c.h.b16 %v396
    %v1511 = vunpack.c.l.b16 %v397
    %v1512 = vunpack.c.h.b16 %v397
    %v1513 = vunpack.c.l.b16 %v398
    %v1514 = vunpack.c.h.b16 %v398
    %v1515 = vunpack.c.l.b16 %v399
    %v1516 = vunpack.c.h.b16 %v399
    %v1517 = vunpack.c.l.b16 %v400
    %v1518 = vunpack.c.h.b16 %v400
    %v1519 = vunpack.c.l.b16 %v401
    %v1520 = vunpack.c.h.b16 %v401
    %v1521 = vunpack.c.l.b16 %v402
    %v1522 = vunpack.c.h.b16 %v402
    %v1523 = vunpack.c.l.b16 %v403
    %v1524 = vunpack.c.h.b16 %v403
    %v1525 = vunpack.c.l.b16 %v404
    %v1526 = vunpack.c.h.b16 %v404
    %v1527 = vunpack.c.l.b16 %v405
    %v1528 = vunpack.c.h.b16 %v405
    %v1529 = vunpack.c.l.b16 %v406
    %v1530 = vunpack.c.h.b16 %v406
    %v1531 = vunpack.c.l.b16 %v407
    %v1532 = vunpack.c.h.b16 %v407
    %v1533 = vunpack.c.l.b16 %v408
    %v1534 = vunpack.c.h.b16 %v408
    %v1535 = vunpack.c.l.b16 %v409
    %v1536 = vunpack.c.h.b16 %v409
    %v1537 = vunpack.c.l.b16 %v410
    %v1538 = vunpack.c.h.b16 %v410
    %v1539 = vunpack.c.l.b16 %v411
    %v1540 = vunpack.c.h.b16 %v411
    %v1541 = vunpack.c.l.b16 %v412
    %v1542 = vunpack.c.h.b16 %v412
    %v1543 = vunpack.c.l.b16 %v413
    %v1544 = vunpack.c.h.b16 %v413
    %v1545 = vunpack.c.l.b16 %v414
    %v1546 = vunpack.c.h.b16 %v414
    %v1547 = vunpack.c.l.b16 %v415
    %v1548 = vunpack.c.h.b16 %v415
    %v1549 = vunpack.c.l.b16 %v416
    %v1550 = vunpack.c.h.b16 %v416
    %v1551 = vunpack.c.l.b16 %v417
    %v1552 = vunpack.c.h.b16 %v417
    %v1553 = vunpack.c.l.b16 %v418
    %v1554 = vunpack.c.h.b16 %v418
    %v1555 = vunpack.c.l.b16 %v419
    %v1556 = vunpack.c.h.b16 %v419
    %v1557 = vunpack.c.l.b16 %v420
    %v1558 = vunpack.c.h.b16 %v420
    %v1559 = vunpack.c.l.b16 %v421
    %v1560 = vunpack.c.h.b16 %v421
    %v1561 = vunpack.c.l.b16 %v422
    %v1562 = vunpack.c.h.b16 %v422
    %v1563 = vunpack.c.l.b16 %v423
    %v1564 = vunpack.c.h.b16 %v423
    %v1565 = vunpack.c.l.b16 %v424
    %v1566 = vunpack.c.h.b16 %v424
    %v1567 = vunpack.c.l.b16 %v425
    %v1568 = vunpack.c.h.b16 %v425
    %v1569 = vunpack.c.l.b16 %v426
    %v1570 = vunpack.c.h.b16 %v426
    %v1571 = vunpack.c.l.b16 %v427
    %v1572 = vunpack.c.h.b16 %v427
    %v1573 = vunpack.c.l.b16 %v428
    %v1574 = vunpack.c.h.b16 %v428
    %v1575 = vunpack.c.l.b16 %v429
    %v1576 = vunpack.c.h.b16 %v429
    %v1577 = vunpack.c.l.b16 %v430
    %v1578 = vunpack.c.h.b16 %v430
    %v1579 = vunpack.c.l.b16 %v431
    %v1580 = vunpack.c.h.b16 %v431
    %v1581 = vunpack.c.l.b16 %v432
    %v1582 = vunpack.c.h.b16 %v432
    %v1583 = vunpack.c.l.b16 %v433
    %v1584 = vunpack.c.h.b16 %v433
    %v1585 = vunpack.c.l.b16 %v434
    %v1586 = vunpack.c.h.b16 %v434
    %v1587 = vunpack.c.l.b16 %v435
    %v1588 = vunpack.c.h.b16 %v435
    %v1589 = vunpack.c.l.b16 %v436
    %v1590 = vunpack.c.h.b16 %v436
    %v1591 = vunpack.c.l.b16 %v437
    %v1592 = vunpack.c.h.b16 %v437
    %v1593 = vunpack.c.l.b16 %v438
    %v1594 = vunpack.c.h.b16 %v438
    %v1595 = vunpack.c.l.b16 %v439
    %v1596 = vunpack.c.h.b16 %v439
    %v1597 = vunpack.c.l.b16 %v440
    %v1598 = vunpack.c.h.b16 %v440
    %v1599 = vunpack.c.l.b16 %v441
    %v1600 = vunpack.c.h.b16 %v441
    %v1601 = vunpack.c.l.b16 %v442
    %v1602 = vunpack.c.h.b16 %v442
    %v1603 = vunpack.c.l.b16 %v443
    %v1604 = vunpack.c.h.b16 %v443
    %v1605 = vunpack.c.l.b16 %v444
    %v1606 = vunpack.c.h.b16 %v444
    %v1607 = vunpack.c.l.b16 %v445
    %v1608 = vunpack.c.h.b16 %v445
    %v1609 = vunpack.c.l.b16 %v446
    %v1610 = vunpack.c.h.b16 %v446
    %v1611 = vunpack.c.l.b16 %v447
    %v1612 = vunpack.c.h.b16 %v447
    %v1613 = vunpack.c.l.b16 %v448
    %v1614 = vunpack.c.h.b16 %v448
    %v1615 = vunpack.c.l.b16 %v449
    %v1616 = vunpack.c.h.b16 %v449
    %v1617 = vunpack.c.l.b16 %v450
    %v1618 = vunpack.c.h.b16 %v450
    %v1619 = vunpack.c.l.b16 %v451
    %v1620 = vunpack.c.h.b16 %v451
    %v1621 = vunpack.c.l.b16 %v452
    %v1622 = vunpack.c.h.b16 %v452
    %v1623 = vunpack.c.l.b16 %v453
    %v1624 = vunpack.c.h.b16 %v453
    %v1625 = vunpack.c.l.b16 %v454
    %v1626 = vunpack.c.h.b16 %v454
    %v1627 = vunpack.c.l.b16 %v455
    %v1628 = vunpack.c.h.b16 %v455
    %v1629 = vunpack.c.l.b16 %v456
    %v1630 = vunpack.c.h.b16 %v456
    %v1631 = vunpack.c.l.b16 %v457
    %v1632 = vunpack.c.h.b16 %v457
    %v1633 = vunpack.c.l.b16 %v458
    %v1634 = vunpack.c.h.b16 %v458
    %v1635 = vunpack.c.l.b16 %v459
    %v1636 = vunpack.c.h.b16 %v459
    %v1637 = vunpack.c.l.b16 %v460
    %v1638 = vunpack.c.h.b16 %v460
    %v1639 = vunpack.c.l.b16 %v461
    %v1640 = vunpack.c.h.b16 %v461
    %v1641 = vunpack.c.l.b16 %v462
    %v1642 = vunpack.c.h.b16 %v462
    %v1643 = vunpack.c.l.b16 %v463
    %v1644 = vunpack.c.h.b16 %v463
    %v1645 = vunpack.c.l.b16 %v464
    %v1646 = vunpack.c.h.b16 %v464
    %v1647 = vunpack.c.l.b16 %v465
    %v1648 = vunpack.c.h.b16 %v465
    %v1649 = vunpack.c.l.b16 %v466
    %v1650 = vunpack.c.h.b16 %v466
    %v1651 = vunpack.c.l.b16 %v467
    %v1652 = vunpack.c.h.b16 %v467
    %v1653 = vunpack.c.l.b16 %v468
    %v1654 = vunpack.c.h.b16 %v468
    %v1655 = vunpack.c.l.b16 %v469
    %v1656 = vunpack.c.h.b16 %v469
    %v1657 = vunpack.c.l.b16 %v470
    %v1658 = vunpack.c.h.b16 %v470
    %v1659 = vunpack.c.l.b16 %v471
    %v1660 = vunpack.c.h.b16 %v471
    %v1661 = vunpack.c.l.b16 %v472
    %v1662 = vunpack.c.h.b16 %v472
    %v1663 = vunpack.c.l.b16 %v473
    %v1664 = vunpack.c.h.b16 %v473
    %v1665 = vunpack.c.l.b16 %v474
    %v1666 = vunpack.c.h.b16 %v474
    %v1667 = vunpack.c.l.b16 %v475
    %v1668 = vunpack.c.h.b16 %v475
    %v1669 = vunpack.c.l.b16 %v476
    %v1670 = vunpack.c.h.b16 %v476
    %v1671 = vunpack.c.l.b16 %v477
    %v1672 = vunpack.c.h.b16 %v477
    %v1673 = vunpack.c.l.b16 %v478
    %v1674 = vunpack.c.h.b16 %v478
    %v1675 = vunpack.c.l.b16 %v479
    %v1676 = vunpack.c.h.b16 %v479
    %v1677 = vunpack.c.l.b16 %v480
    %v1678 = vunpack.c.h.b16 %v480
    %v1679 = vunpack.c.l.b16 %v481
    %v1680 = vunpack.c.h.b16 %v481
    %v1681 = vunpack.c.l.b16 %v482
    %v1682 = vunpack.c.h.b16 %v482
    %v1683 = vunpack.c.l.b16 %v483
    %v1684 = vunpack.c.h.b16 %v483
    %v1685 = vunpack.c.l.b16 %v484
    %v1686 = vunpack.c.h.b16 %v484
    %v1687 = vunpack.c.l.b16 %v485
    %v1688 = vunpack.c.h.b16 %v485
    %v1689 = vunpack.c.l.b16 %v486
    %v1690 = vunpack.c.h.b16 %v486
    %v1691 = vunpack.c.l.b16 %v487
    %v1692 = vunpack.c.h.b16 %v487
    %v1693 = vunpack.c.l.b16 %v488
    %v1694 = vunpack.c.h.b16 %v488
    %v1695 = vunpack.c.l.b16 %v489
    %v1696 = vunpack.c.h.b16 %v489
    %v1697 = vunpack.c.l.b16 %v490
    %v1698 = vunpack.c.h.b16 %v490
    %v1699 = vunpack.c.l.b16 %v491
    %v1700 = vunpack.c.h.b16 %v491
    %v1701 = vunpack.c.l.b16 %v492
    %v1702 = vunpack.c.h.b16 %v492
    %v1703 = vunpack.c.l.b16 %v493
    %v1704 = vunpack.c.h.b16 %v493
    %v1705 = vpack.c.b16 %v929, %v921
    %v1706 = vpack.c.b16 %v930, %v922
    %v1707 = vpack.c.b16 %v931, %v923
    %v1708 = vpack.c.b16 %v932, %v924
    %v1709 = vpack.c.b16 %v933, %v925
    %v1710 = vpack.c.b16 %v934, %v926
    %v1711 = vpack.c.b16 %v935, %v927
    %v1712 = vpack.c.b16 %v936, %v928
    %v1713 = vpack.c.b16 %v945, %v937
    %v1714 = vpack.c.b16 %v946, %v938
    %v1715 = vpack.c.b16 %v947, %v939
    %v1716 = vpack.c.b16 %v948, %v940
    %v1717 = vpack.c.b16 %v949, %v941
    %v1718 = vpack.c.b16 %v950, %v942
    %v1719 = vpack.c.b16 %v951, %v943
    %v1720 = vpack.c.b16 %v952, %v944
    %v1721 = vpack.c.b16 %v961, %v953
    %v1722 = vpack.c.b16 %v962, %v954
    %v1723 = vpack.c.b16 %v963, %v955
    %v1724 = vpack.c.b16 %v964, %v956
    %v1725 = vpack.c.b16 %v965, %v957
    %v1726 = vpack.c.b16 %v966, %v958
    %v1727 = vpack.c.b16 %v967, %v959
    %v1728 = vpack.c.b16 %v968, %v960
    %v1729 = vpack.c.b16 %v977, %v969
    %v1730 = vpack.c.b16 %v978, %v970
    %v1731 = vpack.c.b16 %v979, %v971
    %v1732 = vpack.c.b16 %v980, %v972
    %v1733 = vpack.c.b16 %v981, %v973
    %v1734 = vpack.c.b16 %v982, %v974
    %v1735 = vpack.c.b16 %v983, %v975
    %v1736 = vpack.c.b16 %v984, %v976
    %v1737 = vpack.c.b16 %v993, %v985
    %v1738 = vpack.c.b16 %v994, %v986
    %v1739 = vpack.c.b16 %v995, %v987
    %v1740 = vpack.c.b16 %v996, %v988
    %v1741 = vpack.c.b16 %v997, %v989
    %v1742 = vpack.c.b16 %v998, %v990
    %v1743 = vpack.c.b16 %v999, %v991
    %v1744 = vpack.c.b16 %v1000, %v992
    %v1745 = vpack.c.b16 %v1009, %v1001
    %v1746 = vpack.c.b16 %v1010, %v1002
    %v1747 = vpack.c.b16 %v1011, %v1003
    %v1748 = vpack.c.b16 %v1012, %v1004
    %v1749 = vpack.c.b16 %v1013, %v1005
    %v1750 = vpack.c.b16 %v1014, %v1006
    %v1751 = vpack.c.b16 %v1015, %v1007
    %v1752 = vpack.c.b16 %v1016, %v1008
    %v1753 = vpack.c.b16 %v1025, %v1017
    %v1754 = vpack.c.b16 %v1026, %v1018
    %v1755 = vpack.c.b16 %v1027, %v1019
    %v1756 = vpack.c.b16 %v1028, %v1020
    %v1757 = vpack.c.b16 %v1029, %v1021
    %v1758 = vpack.c.b16 %v1030, %v1022
    %v1759 = vpack.c.b16 %v1031, %v1023
    %v1760 = vpack.c.b16 %v1032, %v1024
    %v1761 = vpack.c.b16 %v1041, %v1033
    %v1762 = vpack.c.b16 %v1042, %v1034
    %v1763 = vpack.c.b16 %v1043, %v1035
    %v1764 = vpack.c.b16 %v1044, %v1036
    %v1765 = vpack.c.b16 %v1045, %v1037
    %v1766 = vpack.c.b16 %v1046, %v1038
    %v1767 = vpack.c.b16 %v1047, %v1039
    %v1768 = vpack.c.b16 %v1048, %v1040
    %v1769 = vpack.c.b16 %v1057, %v1049
    %v1770 = vpack.c.b16 %v1058, %v1050
    %v1771 = vpack.c.b16 %v1059, %v1051
    %v1772 = vpack.c.b16 %v1060, %v1052
    %v1773 = vpack.c.b16 %v1061, %v1053
    %v1774 = vpack.c.b16 %v1062, %v1054
    %v1775 = vpack.c.b16 %v1063, %v1055
    %v1776 = vpack.c.b16 %v1064, %v1056
    %v1777 = vpack.c.b16 %v1073, %v1065
    %v1778 = vpack.c.b16 %v1074, %v1066
    %v1779 = vpack.c.b16 %v1075, %v1067
    %v1780 = vpack.c.b16 %v1076, %v1068
    %v1781 = vpack.c.b16 %v1077, %v1069
    %v1782 = vpack.c.b16 %v1078, %v1070
    %v1783 = vpack.c.b16 %v1079, %v1071
    %v1784 = vpack.c.b16 %v1080, %v1072
    %v1785 = vpack.c.b16 %v1089, %v1081
    %v1786 = vpack.c.b16 %v1090, %v1082
    %v1787 = vpack.c.b16 %v1091, %v1083
    %v1788 = vpack.c.b16 %v1092, %v1084
    %v1789 = vpack.c.b16 %v1093, %v1085
    %v1790 = vpack.c.b16 %v1094, %v1086
    %v1791 = vpack.c.b16 %v1095, %v1087
    %v1792 = vpack.c.b16 %v1096, %v1088
    %v1793 = vpack.c.b16 %v1105, %v1097
    %v1794 = vpack.c.b16 %v1106, %v1098
    %v1795 = vpack.c.b16 %v1107, %v1099
    %v1796 = vpack.c.b16 %v1108, %v1100
    %v1797 = vpack.c.b16 %v1109, %v1101
    %v1798 = vpack.c.b16 %v1110, %v1102
    %v1799 = vpack.c.b16 %v1111, %v1103
    %v1800 = vpack.c.b16 %v1112, %v1104
    %v1801 = vpack.c.b16 %v1121, %v1113
    %v1802 = vpack.c.b16 %v1122, %v1114
    %v1803 = vpack.c.b16 %v1123, %v1115
    %v1804 = vpack.c.b16 %v1124, %v1116
    %v1805 = vpack.c.b16 %v1125, %v1117
    %v1806 = vpack.c.b16 %v1126, %v1118
    %v1807 = vpack.c.b16 %v1127, %v1119
    %v1808 = vpack.c.b16 %v1128, %v1120
    %v1809 = vpack.c.b16 %v1137, %v1129
    %v1810 = vpack.c.b16 %v1138, %v1130
    %v1811 = vpack.c.b16 %v1139, %v1131
    %v1812 = vpack.c.b16 %v1140, %v1132
    %v1813 = vpack.c.b16 %v1141, %v1133
    %v1814 = vpack.c.b16 %v1142, %v1134
    %v1815 = vpack.c.b16 %v1143, %v1135
    %v1816 = vpack.c.b16 %v1144, %v1136
    %v1817 = vpack.c.b16 %v1153, %v1145
    %v1818 = vpack.c.b16 %v1154, %v1146
    %v1819 = vpack.c.b16 %v1155, %v1147
    %v1820 = vpack.c.b16 %v1156, %v1148
    %v1821 = vpack.c.b16 %v1157, %v1149
    %v1822 = vpack.c.b16 %v1158, %v1150
    %v1823 = vpack.c.b16 %v1159, %v1151
    %v1824 = vpack.c.b16 %v1160, %v1152
    %v1825 = vpack.c.b16 %v1169, %v1161
    %v1826 = vpack.c.b16 %v1170, %v1162
    %v1827 = vpack.c.b16 %v1171, %v1163
    %v1828 = vpack.c.b16 %v1172, %v1164
    %v1829 = vpack.c.b16 %v1173, %v1165
    %v1830 = vpack.c.b16 %v1174, %v1166
    %v1831 = vpack.c.b16 %v1175, %v1167
    %v1832 = vpack.c.b16 %v1176, %v1168
    %v1833 = vpack.c.b16 %v1185, %v1177
    %v1834 = vpack.c.b16 %v1186, %v1178
    %v1835 = vpack.c.b16 %v1187, %v1179
    %v1836 = vpack.c.b16 %v1188, %v1180
    %v1837 = vpack.c.b16 %v1189, %v1181
    %v1838 = vpack.c.b16 %v1190, %v1182
    %v1839 = vpack.c.b16 %v1191, %v1183
    %v1840 = vpack.c.b16 %v1192, %v1184
    %v1841 = vpack.c.b16 %v1201, %v1193
    %v1842 = vpack.c.b16 %v1202, %v1194
    %v1843 = vpack.c.b16 %v1203, %v1195
    %v1844 = vpack.c.b16 %v1204, %v1196
    %v1845 = vpack.c.b16 %v1205, %v1197
    %v1846 = vpack.c.b16 %v1206, %v1198
    %v1847 = vpack.c.b16 %v1207, %v1199
    %v1848 = vpack.c.b16 %v1208, %v1200
    %v1849 = vpack.c.b16 %v1217, %v1209
    %v1850 = vpack.c.b16 %v1218, %v1210
    %v1851 = vpack.c.b16 %v1219, %v1211
    %v1852 = vpack.c.b16 %v1220, %v1212
    %v1853 = vpack.c.b16 %v1221, %v1213
    %v1854 = vpack.c.b16 %v1222, %v1214
    %v1855 = vpack.c.b16 %v1223, %v1215
    %v1856 = vpack.c.b16 %v1224, %v1216
    %v1857 = vpack.c.b16 %v1233, %v1225
    %v1858 = vpack.c.b16 %v1234, %v1226
    %v1859 = vpack.c.b16 %v1235, %v1227
    %v1860 = vpack.c.b16 %v1236, %v1228
    %v1861 = vpack.c.b16 %v1237, %v1229
    %v1862 = vpack.c.b16 %v1238, %v1230
    %v1863 = vpack.c.b16 %v1239, %v1231
    %v1864 = vpack.c.b16 %v1240, %v1232
    %v1865 = vpack.c.b16 %v1249, %v1241
    %v1866 = vpack.c.b16 %v1250, %v1242
    %v1867 = vpack.c.b16 %v1251, %v1243
    %v1868 = vpack.c.b16 %v1252, %v1244
    %v1869 = vpack.c.b16 %v1253, %v1245
    %v1870 = vpack.c.b16 %v1254, %v1246
    %v1871 = vpack.c.b16 %v1255, %v1247
    %v1872 = vpack.c.b16 %v1256, %v1248
    %v1873 = vpack.c.b16 %v1265, %v1257
    %v1874 = vpack.c.b16 %v1266, %v1258
    %v1875 = vpack.c.b16 %v1267, %v1259
    %v1876 = vpack.c.b16 %v1268, %v1260
    %v1877 = vpack.c.b16 %v1269, %v1261
    %v1878 = vpack.c.b16 %v1270, %v1262
    %v1879 = vpack.c.b16 %v1271, %v1263
    %v1880 = vpack.c.b16 %v1272, %v1264
    %v1881 = vpack.c.b16 %v1281, %v1273
    %v1882 = vpack.c.b16 %v1282, %v1274
    %v1883 = vpack.c.b16 %v1283, %v1275
    %v1884 = vpack.c.b16 %v1284, %v1276
    %v1885 = vpack.c.b16 %v1285, %v1277
    %v1886 = vpack.c.b16 %v1286, %v1278
    %v1887 = vpack.c.b16 %v1287, %v1279
    %v1888 = vpack.c.b16 %v1288, %v1280
    %v1889 = vpack.c.b16 %v1297, %v1289
    %v1890 = vpack.c.b16 %v1298, %v1290
    %v1891 = vpack.c.b16 %v1299, %v1291
    %v1892 = vpack.c.b16 %v1300, %v1292
    %v1893 = vpack.c.b16 %v1301, %v1293
    %v1894 = vpack.c.b16 %v1302, %v1294
    %v1895 = vpack.c.b16 %v1303, %v1295
    %v1896 = vpack.c.b16 %v1304, %v1296
    %v1897 = vpack.c.b16 %v1313, %v1305
    %v1898 = vpack.c.b16 %v1314, %v1306
    %v1899 = vpack.c.b16 %v1315, %v1307
    %v1900 = vpack.c.b16 %v1316, %v1308
    %v1901 = vpack.c.b16 %v1317, %v1309
    %v1902 = vpack.c.b16 %v1318, %v1310
    %v1903 = vpack.c.b16 %v1319, %v1311
    %v1904 = vpack.c.b16 %v1320, %v1312
    %v1905 = vpack.c.b16 %v1329, %v1321
    %v1906 = vpack.c.b16 %v1330, %v1322
    %v1907 = vpack.c.b16 %v1331, %v1323
    %v1908 = vpack.c.b16 %v1332, %v1324
    %v1909 = vpack.c.b16 %v1333, %v1325
    %v1910 = vpack.c.b16 %v1334, %v1326
    %v1911 = vpack.c.b16 %v1335, %v1327
    %v1912 = vpack.c.b16 %v1336, %v1328
    %v1913 = vpack.c.b16 %v1345, %v1337
    %v1914 = vpack.c.b16 %v1346, %v1338
    %v1915 = vpack.c.b16 %v1347, %v1339
    %v1916 = vpack.c.b16 %v1348, %v1340
    %v1917 = vpack.c.b16 %v1349, %v1341
    %v1918 = vpack.c.b16 %v1350, %v1342
    %v1919 = vpack.c.b16 %v1351, %v1343
    %v1920 = vpack.c.b16 %v1352, %v1344
    %v1921 = vpack.c.b16 %v1361, %v1353
    %v1922 = vpack.c.b16 %v1362, %v1354
    %v1923 = vpack.c.b16 %v1363, %v1355
    %v1924 = vpack.c.b16 %v1364, %v1356
    %v1925 = vpack.c.b16 %v1365, %v1357
    %v1926 = vpack.c.b16 %v1366, %v1358
    %v1927 = vpack.c.b16 %v1367, %v1359
    %v1928 = vpack.c.b16 %v1368, %v1360
    %v1929 = vpack.c.b16 %v1377, %v1369
    %v1930 = vpack.c.b16 %v1378, %v1370
    %v1931 = vpack.c.b16 %v1379, %v1371
    %v1932 = vpack.c.b16 %v1380, %v1372
    %v1933 = vpack.c.b16 %v1381, %v1373
    %v1934 = vpack.c.b16 %v1382, %v1374
    %v1935 = vpack.c.b16 %v1383, %v1375
    %v1936 = vpack.c.b16 %v1384, %v1376
    %v1937 = vpack.c.b16 %v1393, %v1385
    %v1938 = vpack.c.b16 %v1394, %v1386
    %v1939 = vpack.c.b16 %v1395, %v1387
    %v1940 = vpack.c.b16 %v1396, %v1388
    %v1941 = vpack.c.b16 %v1397, %v1389
    %v1942 = vpack.c.b16 %v1398, %v1390
    %v1943 = vpack.c.b16 %v1399, %v1391
    %v1944 = vpack.c.b16 %v1400, %v1392
    %v1945 = vpack.c.b16 %v1409, %v1401
    %v1946 = vpack.c.b16 %v1410, %v1402
    %v1947 = vpack.c.b16 %v1411, %v1403
    %v1948 = vpack.c.b16 %v1412, %v1404
    %v1949 = vpack.c.b16 %v1413, %v1405
    %v1950 = vpack.c.b16 %v1414, %v1406
    %v1951 = vpack.c.b16 %v1415, %v1407
    %v1952 = vpack.c.b16 %v1416, %v1408
    %v1953 = vpack.c.b16 %v1425, %v1417
    %v1954 = vpack.c.b16 %v1426, %v1418
    %v1955 = vpack.c.b16 %v1427, %v1419
    %v1956 = vpack.c.b16 %v1428, %v1420
    %v1957 = vpack.c.b16 %v1429, %v1421
    %v1958 = vpack.c.b16 %v1430, %v1422
    %v1959 = vpack.c.b16 %v1431, %v1423
    %v1960 = vpack.c.b16 %v1432, %v1424
    %v1961 = vpack.c.b16 %v1441, %v1433
    %v1962 = vpack.c.b16 %v1442, %v1434
    %v1963 = vpack.c.b16 %v1443, %v1435
    %v1964 = vpack.c.b16 %v1444, %v1436
    %v1965 = vpack.c.b16 %v1445, %v1437
    %v1966 = vpack.c.b16 %v1446, %v1438
    %v1967 = vpack.c.b16 %v1447, %v1439
    %v1968 = vpack.c.b16 %v1448, %v1440
    %v1969 = vpack.c.b16 %v1457, %v1449
    %v1970 = vpack.c.b16 %v1458, %v1450
    %v1971 = vpack.c.b16 %v1459, %v1451
    %v1972 = vpack.c.b16 %v1460, %v1452
    %v1973 = vpack.c.b16 %v1461, %v1453
    %v1974 = vpack.c.b16 %v1462, %v1454
    %v1975 = vpack.c.b16 %v1463, %v1455
    %v1976 = vpack.c.b16 %v1464, %v1456
    %v1977 = vpack.c.b16 %v1473, %v1465
    %v1978 = vpack.c.b16 %v1474, %v1466
    %v1979 = vpack.c.b16 %v1475, %v1467
    %v1980 = vpack.c.b16 %v1476, %v1468
    %v1981 = vpack.c.b16 %v1477, %v1469
    %v1982 = vpack.c.b16 %v1478, %v1470
    %v1983 = vpack.c.b16 %v1479, %v1471
    %v1984 = vpack.c.b16 %v1480, %v1472
    %v1985 = vpack.c.b16 %v1489, %v1481
    %v1986 = vpack.c.b16 %v1490, %v1482
    %v1987 = vpack.c.b16 %v1491, %v1483
    %v1988 = vpack.c.b16 %v1492, %v1484
    %v1989 = vpack.c.b16 %v1493, %v1485
    %v1990 = vpack.c.b16 %v1494, %v1486
    %v1991 = vpack.c.b16 %v1495, %v1487
    %v1992 = vpack.c.b16 %v1496, %v1488
    %v1993 = vpack.c.b16 %v1505, %v1497
    %v1994 = vpack.c.b16 %v1506, %v1498
    %v1995 = vpack.c.b16 %v1507, %v1499
    %v1996 = vpack.c.b16 %v1508, %v1500
    %v1997 = vpack.c.b16 %v1509, %v1501
    %v1998 = vpack.c.b16 %v1510, %v1502
    %v1999 = vpack.c.b16 %v1511, %v1503
    %v2000 = vpack.c.b16 %v1512, %v1504
    %v2001 = vpack.c.b16 %v1521, %v1513
    %v2002 = vpack.c.b16 %v1522, %v1514
    %v2003 = vpack.c.b16 %v1523, %v1515
    %v2004 = vpack.c.b16 %v1524, %v1516
    %v2005 = vpack.c.b16 %v1525, %v1517
    %v2006 = vpack.c.b16 %v1526, %v1518
    %v2007 = vpack.c.b16 %v1527, %v1519
    %v2008 = vpack.c.b16 %v1528, %v1520
    %v2009 = vpack.c.b16 %v1537, %v1529
    %v2010 = vpack.c.b16 %v1538, %v1530
    %v2011 = vpack.c.b16 %v1539, %v1531
    %v2012 = vpack.c.b16 %v1540, %v1532
    %v2013 = vpack.c.b16 %v1541, %v1533
    %v2014 = vpack.c.b16 %v1542, %v1534
    %v2015 = vpack.c.b16 %v1543, %v1535
    %v2016 = vpack.c.b16 %v1544, %v1536
    %v2017 = vpack.c.b16 %v1553, %v1545
    %v2018 = vpack.c.b16 %v1554, %v1546
    %v2019 = vpack.c.b16 %v1555, %v1547
    %v2020 = vpack.c.b16 %v1556, %v1548
    %v2021 = vpack.c.b16 %v1557, %v1549
    %v2022 = vpack.c.b16 %v1558, %v1550
    %v2023 = vpack.c.b16 %v1559, %v1551
    %v2024 = vpack.c.b16 %v1560, %v1552
    %v2025 = vpack.c.b16 %v1569, %v1561
    %v2026 = vpack.c.b16 %v1570, %v1562
    %v2027 = vpack.c.b16 %v1571, %v1563
    %v2028 = vpack.c.b16 %v1572, %v1564
    %v2029 = vpack.c.b16 %v1573, %v1565
    %v2030 = vpack.c.b16 %v1574, %v1566
    %v2031 = vpack.c.b16 %v1575, %v1567
    %v2032 = vpack.c.b16 %v1576, %v1568
    %v2033 = vpack.c.b16 %v1585, %v1577
    %v2034 = vpack.c.b16 %v1586, %v1578
    %v2035 = vpack.c.b16 %v1587, %v1579
    %v2036 = vpack.c.b16 %v1588, %v1580
    %v2037 = vpack.c.b16 %v1589, %v1581
    %v2038 = vpack.c.b16 %v1590, %v1582
    %v2039 = vpack.c.b16 %v1591, %v1583
    %v2040 = vpack.c.b16 %v1592, %v1584
    %v2041 = vpack.c.b16 %v1601, %v1593
    %v2042 = vpack.c.b16 %v1602, %v1594
    %v2043 = vpack.c.b16 %v1603, %v1595
    %v2044 = vpack.c.b16 %v1604, %v1596
    %v2045 = vpack.c.b16 %v1605, %v1597
    %v2046 = vpack.c.b16 %v1606, %v1598
    %v2047 = vpack.c.b16 %v1607, %v1599
    %v2048 = vpack.c.b16 %v1608, %v1600
    %v2049 = vpack.c.b16 %v1617, %v1609
    %v2050 = vpack.c.b16 %v1618, %v1610
    %v2051 = vpack.c.b16 %v1619, %v1611
    %v2052 = vpack.c.b16 %v1620, %v1612
    %v2053 = vpack.c.b16 %v1621, %v1613
    %v2054 = vpack.c.b16 %v1622, %v1614
    %v2055 = vpack.c.b16 %v1623, %v1615
    %v2056 = vpack.c.b16 %v1624, %v1616
    %v2057 = vpack.c.b16 %v1633, %v1625
    %v2058 = vpack.c.b16 %v1634, %v1626
    %v2059 = vpack.c.b16 %v1635, %v1627
    %v2060 = vpack.c.b16 %v1636, %v1628
    %v2061 = vpack.c.b16 %v1637, %v1629
    %v2062 = vpack.c.b16 %v1638, %v1630
    %v2063 = vpack.c.b16 %v1639, %v1631
    %v2064 = vpack.c.b16 %v1640, %v1632
    %v2065 = vpack.c.b16 %v1649, %v1641
    %v2066 = vpack.c.b16 %v1650, %v1642
    %v2067 = vpack.c.b16 %v1651, %v1643
    %v2068 = vpack.c.b16 %v1652, %v1644
    %v2069 = vpack.c.b16 %v1653, %v1645
    %v2070 = vpack.c.b16 %v1654, %v1646
    %v2071 = vpack.c.b16 %v1655, %v1647
    %v2072 = vpack.c.b16 %v1656, %v1648
    %v2073 = vpack.c.b16 %v1665, %v1657
    %v2074 = vpack.c.b16 %v1666, %v1658
    %v2075 = vpack.c.b16 %v1667, %v1659
    %v2076 = vpack.c.b16 %v1668, %v1660
    %v2077 = vpack.c.b16 %v1669, %v1661
    %v2078 = vpack.c.b16 %v1670, %v1662
    %v2079 = vpack.c.b16 %v1671, %v1663
    %v2080 = vpack.c.b16 %v1672, %v1664
    %v2081 = vpack.c.b16 %v1681, %v1673
    %v2082 = vpack.c.b16 %v1682, %v1674
    %v2083 = vpack.c.b16 %v1683, %v1675
    %v2084 = vpack.c.b16 %v1684, %v1676
    %v2085 = vpack.c.b16 %v1685, %v1677
    %v2086 = vpack.c.b16 %v1686, %v1678
    %v2087 = vpack.c.b16 %v1687, %v1679
    %v2088 = vpack.c.b16 %v1688, %v1680
    %v2089 = vpack.c.b16 %v1697, %v1689
    %v2090 = vpack.c.b16 %v1698, %v1690
    %v2091 = vpack.c.b16 %v1699, %v1691
    %v2092 = vpack.c.b16 %v1700, %v1692
    %v2093 = vpack.c.b16 %v1701, %v1693
    %v2094 = vpack.c.b16 %v1702, %v1694
    %v2095 = vpack.c.b16 %v1703, %v1695
    %v2096 = vpack.c.b16 %v1704, %v1696
    %vm2489 = vcmask 130048
    %v2491 = vsel %vm2489, %v522, 0
    %2493 = vmatpush.bf16.msra.mxu0 %v1761
    %2494 = vmatpush.bf16.msra.mxu0 %v1753
    %2495 = vmatpush.bf16.msra.mxu0 %v1745
    %2496 = vmatpush.bf16.msra.mxu0 %v1737
    %2497 = vmatpush.bf16.msra.mxu0 %v1729
    %2498 = vmatpush.bf16.msra.mxu0 %v1721
    %2499 = vmatpush.bf16.msra.mxu0 %v1713
    %2500 = vmatpush.bf16.msra.mxu0 %v1705
    %2501 = vmatmul.bf16.gmra.mxu0 %v516
    %v2502 = vpop.f32.mrf.mxu0
    %v2503 = vadd.f32 0.0, %v2502
    %v2504 = vpop.f32.mrf.mxu0
    %v2505 = vadd.f32 0.0, %v2504
    %2506 = vdwg.mxu0
    %2507 = vmatpush.bf16.msra.mxu0 %v1825
    %2508 = vmatpush.bf16.msra.mxu0 %v1817
    %2509 = vmatpush.bf16.msra.mxu0 %v1809
    %2510 = vmatpush.bf16.msra.mxu0 %v1801
    %2511 = vmatpush.bf16.msra.mxu0 %v1793
    %2512 = vmatpush.bf16.msra.mxu0 %v1785
    %2513 = vmatpush.bf16.msra.mxu0 %v1777
    %2514 = vmatpush.bf16.msra.mxu0 %v1769
    %2515 = vmatmul.bf16.gmra.mxu0 %v517
    %v2516 = vpop.f32.mrf.mxu0
    %v2517 = vadd.f32 %v2503, %v2516
    %v2518 = vpop.f32.mrf.mxu0
    %v2519 = vadd.f32 %v2505, %v2518
    %2520 = vdwg.mxu0
    %2521 = vmatpush.bf16.msra.mxu0 %v1889
    %2522 = vmatpush.bf16.msra.mxu0 %v1881
    %2523 = vmatpush.bf16.msra.mxu0 %v1873
    %2524 = vmatpush.bf16.msra.mxu0 %v1865
    %2525 = vmatpush.bf16.msra.mxu0 %v1857
    %2526 = vmatpush.bf16.msra.mxu0 %v1849
    %2527 = vmatpush.bf16.msra.mxu0 %v1841
    %2528 = vmatpush.bf16.msra.mxu0 %v1833
    %2529 = vmatmul.bf16.gmra.mxu0 %v518
    %v2530 = vpop.f32.mrf.mxu0
    %v2531 = vadd.f32 %v2517, %v2530
    %v2532 = vpop.f32.mrf.mxu0
    %v2533 = vadd.f32 %v2519, %v2532
    %2534 = vdwg.mxu0
    %2535 = vmatpush.bf16.msra.mxu0 %v1953
    %2536 = vmatpush.bf16.msra.mxu0 %v1945
    %2537 = vmatpush.bf16.msra.mxu0 %v1937
    %2538 = vmatpush.bf16.msra.mxu0 %v1929
    %2539 = vmatpush.bf16.msra.mxu0 %v1921
    %2540 = vmatpush.bf16.msra.mxu0 %v1913
    %2541 = vmatpush.bf16.msra.mxu0 %v1905
    %2542 = vmatpush.bf16.msra.mxu0 %v1897
    %2543 = vmatmul.bf16.gmra.mxu0 %v519
    %v2544 = vpop.f32.mrf.mxu0
    %v2545 = vadd.f32 %v2531, %v2544
    %v2546 = vpop.f32.mrf.mxu0
    %v2547 = vadd.f32 %v2533, %v2546
    %2548 = vdwg.mxu0
    %2549 = vmatpush.bf16.msra.mxu0 %v2017
    %2550 = vmatpush.bf16.msra.mxu0 %v2009
    %2551 = vmatpush.bf16.msra.mxu0 %v2001
    %2552 = vmatpush.bf16.msra.mxu0 %v1993
    %2553 = vmatpush.bf16.msra.mxu0 %v1985
    %2554 = vmatpush.bf16.msra.mxu0 %v1977
    %2555 = vmatpush.bf16.msra.mxu0 %v1969
    %2556 = vmatpush.bf16.msra.mxu0 %v1961
    %2557 = vmatmul.bf16.gmra.mxu0 %v520
    %v2558 = vpop.f32.mrf.mxu0
    %v2559 = vadd.f32 %v2545, %v2558
    %v2560 = vpop.f32.mrf.mxu0
    %v2561 = vadd.f32 %v2547, %v2560
    %2562 = vdwg.mxu0
    %2563 = vmatpush.bf16.msra.mxu0 %v2081
    %2564 = vmatpush.bf16.msra.mxu0 %v2073
    %2565 = vmatpush.bf16.msra.mxu0 %v2065
    %2566 = vmatpush.bf16.msra.mxu0 %v2057
    %2567 = vmatpush.bf16.msra.mxu0 %v2049
    %2568 = vmatpush.bf16.msra.mxu0 %v2041
    %2569 = vmatpush.bf16.msra.mxu0 %v2033
    %2570 = vmatpush.bf16.msra.mxu0 %v2025
    %2571 = vmatmul.bf16.gmra.mxu0 %v521
    %v2572 = vpop.f32.mrf.mxu0
    %v2573 = vadd.f32 %v2559, %v2572
    %v2574 = vpop.f32.mrf.mxu0
    %v2575 = vadd.f32 %v2561, %v2574
    %2576 = vdwg.mxu0
    %2577 = vmatpush.bf16.msra.mxu0 0
    %2578 = vmatpush.bf16.msra.mxu0 0
    %2579 = vmatpush.bf16.msra.mxu0 0
    %2580 = vmatpush.bf16.msra.mxu0 0
    %2581 = vmatpush.bf16.msra.mxu0 0
    %2582 = vmatpush.bf16.msra.mxu0 0
    %2583 = vmatpush.bf16.msra.mxu0 0
    %2584 = vmatpush.bf16.msra.mxu0 %v2089
    %2585 = vmatmul.bf16.gmra.mxu0 %v2491
    %v2586 = vpop.f32.mrf.mxu0
    %v2587 = vadd.f32 %v2573, %v2586
    %v2588 = vpop.f32.mrf.mxu0
    %v2589 = vadd.f32 %v2575, %v2588
    %2590 = vdwg.mxu0
    %2591 = vmatpush.bf16.msra.mxu0 %v1762
    %2592 = vmatpush.bf16.msra.mxu0 %v1754
    %2593 = vmatpush.bf16.msra.mxu0 %v1746
    %2594 = vmatpush.bf16.msra.mxu0 %v1738
    %2595 = vmatpush.bf16.msra.mxu0 %v1730
    %2596 = vmatpush.bf16.msra.mxu0 %v1722
    %2597 = vmatpush.bf16.msra.mxu0 %v1714
    %2598 = vmatpush.bf16.msra.mxu0 %v1706
    %2599 = vmatmul.bf16.gmra.mxu0 %v516
    %v2600 = vpop.f32.mrf.mxu0
    %v2601 = vadd.f32 0.0, %v2600
    %v2602 = vpop.f32.mrf.mxu0
    %v2603 = vadd.f32 0.0, %v2602
    %2604 = vdwg.mxu0
    %2605 = vmatpush.bf16.msra.mxu0 %v1826
    %2606 = vmatpush.bf16.msra.mxu0 %v1818
    %2607 = vmatpush.bf16.msra.mxu0 %v1810
    %2608 = vmatpush.bf16.msra.mxu0 %v1802
    %2609 = vmatpush.bf16.msra.mxu0 %v1794
    %2610 = vmatpush.bf16.msra.mxu0 %v1786
    %2611 = vmatpush.bf16.msra.mxu0 %v1778
    %2612 = vmatpush.bf16.msra.mxu0 %v1770
    %2613 = vmatmul.bf16.gmra.mxu0 %v517
    %v2614 = vpop.f32.mrf.mxu0
    %v2615 = vadd.f32 %v2601, %v2614
    %v2616 = vpop.f32.mrf.mxu0
    %v2617 = vadd.f32 %v2603, %v2616
    %2618 = vdwg.mxu0
    %2619 = vmatpush.bf16.msra.mxu0 %v1890
    %2620 = vmatpush.bf16.msra.mxu0 %v1882
    %2621 = vmatpush.bf16.msra.mxu0 %v1874
    %2622 = vmatpush.bf16.msra.mxu0 %v1866
    %2623 = vmatpush.bf16.msra.mxu0 %v1858
    %2624 = vmatpush.bf16.msra.mxu0 %v1850
    %2625 = vmatpush.bf16.msra.mxu0 %v1842
    %2626 = vmatpush.bf16.msra.mxu0 %v1834
    %2627 = vmatmul.bf16.gmra.mxu0 %v518
    %v2628 = vpop.f32.mrf.mxu0
    %v2629 = vadd.f32 %v2615, %v2628
    %v2630 = vpop.f32.mrf.mxu0
    %v2631 = vadd.f32 %v2617, %v2630
    %2632 = vdwg.mxu0
    %2633 = vmatpush.bf16.msra.mxu0 %v1954
    %2634 = vmatpush.bf16.msra.mxu0 %v1946
    %2635 = vmatpush.bf16.msra.mxu0 %v1938
    %2636 = vmatpush.bf16.msra.mxu0 %v1930
    %2637 = vmatpush.bf16.msra.mxu0 %v1922
    %2638 = vmatpush.bf16.msra.mxu0 %v1914
    %2639 = vmatpush.bf16.msra.mxu0 %v1906
    %2640 = vmatpush.bf16.msra.mxu0 %v1898
    %2641 = vmatmul.bf16.gmra.mxu0 %v519
    %v2642 = vpop.f32.mrf.mxu0
    %v2643 = vadd.f32 %v2629, %v2642
    %v2644 = vpop.f32.mrf.mxu0
    %v2645 = vadd.f32 %v2631, %v2644
    %2646 = vdwg.mxu0
    %2647 = vmatpush.bf16.msra.mxu0 %v2018
    %2648 = vmatpush.bf16.msra.mxu0 %v2010
    %2649 = vmatpush.bf16.msra.mxu0 %v2002
    %2650 = vmatpush.bf16.msra.mxu0 %v1994
    %2651 = vmatpush.bf16.msra.mxu0 %v1986
    %2652 = vmatpush.bf16.msra.mxu0 %v1978
    %2653 = vmatpush.bf16.msra.mxu0 %v1970
    %2654 = vmatpush.bf16.msra.mxu0 %v1962
    %2655 = vmatmul.bf16.gmra.mxu0 %v520
    %v2656 = vpop.f32.mrf.mxu0
    %v2657 = vadd.f32 %v2643, %v2656
    %v2658 = vpop.f32.mrf.mxu0
    %v2659 = vadd.f32 %v2645, %v2658
    %2660 = vdwg.mxu0
    %2661 = vmatpush.bf16.msra.mxu0 %v2082
    %2662 = vmatpush.bf16.msra.mxu0 %v2074
    %2663 = vmatpush.bf16.msra.mxu0 %v2066
    %2664 = vmatpush.bf16.msra.mxu0 %v2058
    %2665 = vmatpush.bf16.msra.mxu0 %v2050
    %2666 = vmatpush.bf16.msra.mxu0 %v2042
    %2667 = vmatpush.bf16.msra.mxu0 %v2034
    %2668 = vmatpush.bf16.msra.mxu0 %v2026
    %2669 = vmatmul.bf16.gmra.mxu0 %v521
    %v2670 = vpop.f32.mrf.mxu0
    %v2671 = vadd.f32 %v2657, %v2670
    %v2672 = vpop.f32.mrf.mxu0
    %v2673 = vadd.f32 %v2659, %v2672
    %2674 = vdwg.mxu0
    %2675 = vmatpush.bf16.msra.mxu0 0
    %2676 = vmatpush.bf16.msra.mxu0 0
    %2677 = vmatpush.bf16.msra.mxu0 0
    %2678 = vmatpush.bf16.msra.mxu0 0
    %2679 = vmatpush.bf16.msra.mxu0 0
    %2680 = vmatpush.bf16.msra.mxu0 0
    %2681 = vmatpush.bf16.msra.mxu0 0
    %2682 = vmatpush.bf16.msra.mxu0 %v2090
    %2683 = vmatmul.bf16.gmra.mxu0 %v2491
    %v2684 = vpop.f32.mrf.mxu0
    %v2685 = vadd.f32 %v2671, %v2684
    %v2686 = vpop.f32.mrf.mxu0
    %v2687 = vadd.f32 %v2673, %v2686
    %2688 = vdwg.mxu0
    %2689 = vmatpush.bf16.msra.mxu0 %v1763
    %2690 = vmatpush.bf16.msra.mxu0 %v1755
    %2691 = vmatpush.bf16.msra.mxu0 %v1747
    %2692 = vmatpush.bf16.msra.mxu0 %v1739
    %2693 = vmatpush.bf16.msra.mxu0 %v1731
    %2694 = vmatpush.bf16.msra.mxu0 %v1723
    %2695 = vmatpush.bf16.msra.mxu0 %v1715
    %2696 = vmatpush.bf16.msra.mxu0 %v1707
    %2697 = vmatmul.bf16.gmra.mxu0 %v516
    %v2698 = vpop.f32.mrf.mxu0
    %v2699 = vadd.f32 0.0, %v2698
    %v2700 = vpop.f32.mrf.mxu0
    %v2701 = vadd.f32 0.0, %v2700
    %2702 = vdwg.mxu0
    %2703 = vmatpush.bf16.msra.mxu0 %v1827
    %2704 = vmatpush.bf16.msra.mxu0 %v1819
    %2705 = vmatpush.bf16.msra.mxu0 %v1811
    %2706 = vmatpush.bf16.msra.mxu0 %v1803
    %2707 = vmatpush.bf16.msra.mxu0 %v1795
    %2708 = vmatpush.bf16.msra.mxu0 %v1787
    %2709 = vmatpush.bf16.msra.mxu0 %v1779
    %2710 = vmatpush.bf16.msra.mxu0 %v1771
    %2711 = vmatmul.bf16.gmra.mxu0 %v517
    %v2712 = vpop.f32.mrf.mxu0
    %v2713 = vadd.f32 %v2699, %v2712
    %v2714 = vpop.f32.mrf.mxu0
    %v2715 = vadd.f32 %v2701, %v2714
    %2716 = vdwg.mxu0
    %2717 = vmatpush.bf16.msra.mxu0 %v1891
    %2718 = vmatpush.bf16.msra.mxu0 %v1883
    %2719 = vmatpush.bf16.msra.mxu0 %v1875
    %2720 = vmatpush.bf16.msra.mxu0 %v1867
    %2721 = vmatpush.bf16.msra.mxu0 %v1859
    %2722 = vmatpush.bf16.msra.mxu0 %v1851
    %2723 = vmatpush.bf16.msra.mxu0 %v1843
    %2724 = vmatpush.bf16.msra.mxu0 %v1835
    %2725 = vmatmul.bf16.gmra.mxu0 %v518
    %v2726 = vpop.f32.mrf.mxu0
    %v2727 = vadd.f32 %v2713, %v2726
    %v2728 = vpop.f32.mrf.mxu0
    %v2729 = vadd.f32 %v2715, %v2728
    %2730 = vdwg.mxu0
    %2731 = vmatpush.bf16.msra.mxu0 %v1955
    %2732 = vmatpush.bf16.msra.mxu0 %v1947
    %2733 = vmatpush.bf16.msra.mxu0 %v1939
    %2734 = vmatpush.bf16.msra.mxu0 %v1931
    %2735 = vmatpush.bf16.msra.mxu0 %v1923
    %2736 = vmatpush.bf16.msra.mxu0 %v1915
    %2737 = vmatpush.bf16.msra.mxu0 %v1907
    %2738 = vmatpush.bf16.msra.mxu0 %v1899
    %2739 = vmatmul.bf16.gmra.mxu0 %v519
    %v2740 = vpop.f32.mrf.mxu0
    %v2741 = vadd.f32 %v2727, %v2740
    %v2742 = vpop.f32.mrf.mxu0
    %v2743 = vadd.f32 %v2729, %v2742
    %2744 = vdwg.mxu0
    %2745 = vmatpush.bf16.msra.mxu0 %v2019
    %2746 = vmatpush.bf16.msra.mxu0 %v2011
    %2747 = vmatpush.bf16.msra.mxu0 %v2003
    %2748 = vmatpush.bf16.msra.mxu0 %v1995
    %2749 = vmatpush.bf16.msra.mxu0 %v1987
    %2750 = vmatpush.bf16.msra.mxu0 %v1979
    %2751 = vmatpush.bf16.msra.mxu0 %v1971
    %2752 = vmatpush.bf16.msra.mxu0 %v1963
    %2753 = vmatmul.bf16.gmra.mxu0 %v520
    %v2754 = vpop.f32.mrf.mxu0
    %v2755 = vadd.f32 %v2741, %v2754
    %v2756 = vpop.f32.mrf.mxu0
    %v2757 = vadd.f32 %v2743, %v2756
    %2758 = vdwg.mxu0
    %2759 = vmatpush.bf16.msra.mxu0 %v2083
    %2760 = vmatpush.bf16.msra.mxu0 %v2075
    %2761 = vmatpush.bf16.msra.mxu0 %v2067
    %2762 = vmatpush.bf16.msra.mxu0 %v2059
    %2763 = vmatpush.bf16.msra.mxu0 %v2051
    %2764 = vmatpush.bf16.msra.mxu0 %v2043
    %2765 = vmatpush.bf16.msra.mxu0 %v2035
    %2766 = vmatpush.bf16.msra.mxu0 %v2027
    %2767 = vmatmul.bf16.gmra.mxu0 %v521
    %v2768 = vpop.f32.mrf.mxu0
    %v2769 = vadd.f32 %v2755, %v2768
    %v2770 = vpop.f32.mrf.mxu0
    %v2771 = vadd.f32 %v2757, %v2770
    %2772 = vdwg.mxu0
    %2773 = vmatpush.bf16.msra.mxu0 0
    %2774 = vmatpush.bf16.msra.mxu0 0
    %2775 = vmatpush.bf16.msra.mxu0 0
    %2776 = vmatpush.bf16.msra.mxu0 0
    %2777 = vmatpush.bf16.msra.mxu0 0
    %2778 = vmatpush.bf16.msra.mxu0 0
    %2779 = vmatpush.bf16.msra.mxu0 0
    %2780 = vmatpush.bf16.msra.mxu0 %v2091
    %2781 = vmatmul.bf16.gmra.mxu0 %v2491
    %v2782 = vpop.f32.mrf.mxu0
    %v2783 = vadd.f32 %v2769, %v2782
    %v2784 = vpop.f32.mrf.mxu0
    %v2785 = vadd.f32 %v2771, %v2784
    %2786 = vdwg.mxu0
    %2787 = vmatpush.bf16.msra.mxu0 %v1764
    %2788 = vmatpush.bf16.msra.mxu0 %v1756
    %2789 = vmatpush.bf16.msra.mxu0 %v1748
    %2790 = vmatpush.bf16.msra.mxu0 %v1740
    %2791 = vmatpush.bf16.msra.mxu0 %v1732
    %2792 = vmatpush.bf16.msra.mxu0 %v1724
    %2793 = vmatpush.bf16.msra.mxu0 %v1716
    %2794 = vmatpush.bf16.msra.mxu0 %v1708
    %2795 = vmatmul.bf16.gmra.mxu0 %v516
    %v2796 = vpop.f32.mrf.mxu0
    %v2797 = vadd.f32 0.0, %v2796
    %v2798 = vpop.f32.mrf.mxu0
    %v2799 = vadd.f32 0.0, %v2798
    %2800 = vdwg.mxu0
    %2801 = vmatpush.bf16.msra.mxu0 %v1828
    %2802 = vmatpush.bf16.msra.mxu0 %v1820
    %2803 = vmatpush.bf16.msra.mxu0 %v1812
    %2804 = vmatpush.bf16.msra.mxu0 %v1804
    %2805 = vmatpush.bf16.msra.mxu0 %v1796
    %2806 = vmatpush.bf16.msra.mxu0 %v1788
    %2807 = vmatpush.bf16.msra.mxu0 %v1780
    %2808 = vmatpush.bf16.msra.mxu0 %v1772
    %2809 = vmatmul.bf16.gmra.mxu0 %v517
    %v2810 = vpop.f32.mrf.mxu0
    %v2811 = vadd.f32 %v2797, %v2810
    %v2812 = vpop.f32.mrf.mxu0
    %v2813 = vadd.f32 %v2799, %v2812
    %2814 = vdwg.mxu0
    %2815 = vmatpush.bf16.msra.mxu0 %v1892
    %2816 = vmatpush.bf16.msra.mxu0 %v1884
    %2817 = vmatpush.bf16.msra.mxu0 %v1876
    %2818 = vmatpush.bf16.msra.mxu0 %v1868
    %2819 = vmatpush.bf16.msra.mxu0 %v1860
    %2820 = vmatpush.bf16.msra.mxu0 %v1852
    %2821 = vmatpush.bf16.msra.mxu0 %v1844
    %2822 = vmatpush.bf16.msra.mxu0 %v1836
    %2823 = vmatmul.bf16.gmra.mxu0 %v518
    %v2824 = vpop.f32.mrf.mxu0
    %v2825 = vadd.f32 %v2811, %v2824
    %v2826 = vpop.f32.mrf.mxu0
    %v2827 = vadd.f32 %v2813, %v2826
    %2828 = vdwg.mxu0
    %2829 = vmatpush.bf16.msra.mxu0 %v1956
    %2830 = vmatpush.bf16.msra.mxu0 %v1948
    %2831 = vmatpush.bf16.msra.mxu0 %v1940
    %2832 = vmatpush.bf16.msra.mxu0 %v1932
    %2833 = vmatpush.bf16.msra.mxu0 %v1924
    %2834 = vmatpush.bf16.msra.mxu0 %v1916
    %2835 = vmatpush.bf16.msra.mxu0 %v1908
    %2836 = vmatpush.bf16.msra.mxu0 %v1900
    %2837 = vmatmul.bf16.gmra.mxu0 %v519
    %v2838 = vpop.f32.mrf.mxu0
    %v2839 = vadd.f32 %v2825, %v2838
    %v2840 = vpop.f32.mrf.mxu0
    %v2841 = vadd.f32 %v2827, %v2840
    %2842 = vdwg.mxu0
    %2843 = vmatpush.bf16.msra.mxu0 %v2020
    %2844 = vmatpush.bf16.msra.mxu0 %v2012
    %2845 = vmatpush.bf16.msra.mxu0 %v2004
    %2846 = vmatpush.bf16.msra.mxu0 %v1996
    %2847 = vmatpush.bf16.msra.mxu0 %v1988
    %2848 = vmatpush.bf16.msra.mxu0 %v1980
    %2849 = vmatpush.bf16.msra.mxu0 %v1972
    %2850 = vmatpush.bf16.msra.mxu0 %v1964
    %2851 = vmatmul.bf16.gmra.mxu0 %v520
    %v2852 = vpop.f32.mrf.mxu0
    %v2853 = vadd.f32 %v2839, %v2852
    %v2854 = vpop.f32.mrf.mxu0
    %v2855 = vadd.f32 %v2841, %v2854
    %2856 = vdwg.mxu0
    %2857 = vmatpush.bf16.msra.mxu0 %v2084
    %2858 = vmatpush.bf16.msra.mxu0 %v2076
    %2859 = vmatpush.bf16.msra.mxu0 %v2068
    %2860 = vmatpush.bf16.msra.mxu0 %v2060
    %2861 = vmatpush.bf16.msra.mxu0 %v2052
    %2862 = vmatpush.bf16.msra.mxu0 %v2044
    %2863 = vmatpush.bf16.msra.mxu0 %v2036
    %2864 = vmatpush.bf16.msra.mxu0 %v2028
    %2865 = vmatmul.bf16.gmra.mxu0 %v521
    %v2866 = vpop.f32.mrf.mxu0
    %v2867 = vadd.f32 %v2853, %v2866
    %v2868 = vpop.f32.mrf.mxu0
    %v2869 = vadd.f32 %v2855, %v2868
    %2870 = vdwg.mxu0
    %2871 = vmatpush.bf16.msra.mxu0 0
    %2872 = vmatpush.bf16.msra.mxu0 0
    %2873 = vmatpush.bf16.msra.mxu0 0
    %2874 = vmatpush.bf16.msra.mxu0 0
    %2875 = vmatpush.bf16.msra.mxu0 0
    %2876 = vmatpush.bf16.msra.mxu0 0
    %2877 = vmatpush.bf16.msra.mxu0 0
    %2878 = vmatpush.bf16.msra.mxu0 %v2092
    %2879 = vmatmul.bf16.gmra.mxu0 %v2491
    %v2880 = vpop.f32.mrf.mxu0
    %v2881 = vadd.f32 %v2867, %v2880
    %v2882 = vpop.f32.mrf.mxu0
    %v2883 = vadd.f32 %v2869, %v2882
    %2884 = vdwg.mxu0
    %2885 = vmatpush.bf16.msra.mxu0 %v1765
    %2886 = vmatpush.bf16.msra.mxu0 %v1757
    %2887 = vmatpush.bf16.msra.mxu0 %v1749
    %2888 = vmatpush.bf16.msra.mxu0 %v1741
    %2889 = vmatpush.bf16.msra.mxu0 %v1733
    %2890 = vmatpush.bf16.msra.mxu0 %v1725
    %2891 = vmatpush.bf16.msra.mxu0 %v1717
    %2892 = vmatpush.bf16.msra.mxu0 %v1709
    %2893 = vmatmul.bf16.gmra.mxu0 %v516
    %v2894 = vpop.f32.mrf.mxu0
    %v2895 = vadd.f32 0.0, %v2894
    %v2896 = vpop.f32.mrf.mxu0
    %v2897 = vadd.f32 0.0, %v2896
    %2898 = vdwg.mxu0
    %2899 = vmatpush.bf16.msra.mxu0 %v1829
    %2900 = vmatpush.bf16.msra.mxu0 %v1821
    %2901 = vmatpush.bf16.msra.mxu0 %v1813
    %2902 = vmatpush.bf16.msra.mxu0 %v1805
    %2903 = vmatpush.bf16.msra.mxu0 %v1797
    %2904 = vmatpush.bf16.msra.mxu0 %v1789
    %2905 = vmatpush.bf16.msra.mxu0 %v1781
    %2906 = vmatpush.bf16.msra.mxu0 %v1773
    %2907 = vmatmul.bf16.gmra.mxu0 %v517
    %v2908 = vpop.f32.mrf.mxu0
    %v2909 = vadd.f32 %v2895, %v2908
    %v2910 = vpop.f32.mrf.mxu0
    %v2911 = vadd.f32 %v2897, %v2910
    %2912 = vdwg.mxu0
    %2913 = vmatpush.bf16.msra.mxu0 %v1893
    %2914 = vmatpush.bf16.msra.mxu0 %v1885
    %2915 = vmatpush.bf16.msra.mxu0 %v1877
    %2916 = vmatpush.bf16.msra.mxu0 %v1869
    %2917 = vmatpush.bf16.msra.mxu0 %v1861
    %2918 = vmatpush.bf16.msra.mxu0 %v1853
    %2919 = vmatpush.bf16.msra.mxu0 %v1845
    %2920 = vmatpush.bf16.msra.mxu0 %v1837
    %2921 = vmatmul.bf16.gmra.mxu0 %v518
    %v2922 = vpop.f32.mrf.mxu0
    %v2923 = vadd.f32 %v2909, %v2922
    %v2924 = vpop.f32.mrf.mxu0
    %v2925 = vadd.f32 %v2911, %v2924
    %2926 = vdwg.mxu0
    %2927 = vmatpush.bf16.msra.mxu0 %v1957
    %2928 = vmatpush.bf16.msra.mxu0 %v1949
    %2929 = vmatpush.bf16.msra.mxu0 %v1941
    %2930 = vmatpush.bf16.msra.mxu0 %v1933
    %2931 = vmatpush.bf16.msra.mxu0 %v1925
    %2932 = vmatpush.bf16.msra.mxu0 %v1917
    %2933 = vmatpush.bf16.msra.mxu0 %v1909
    %2934 = vmatpush.bf16.msra.mxu0 %v1901
    %2935 = vmatmul.bf16.gmra.mxu0 %v519
    %v2936 = vpop.f32.mrf.mxu0
    %v2937 = vadd.f32 %v2923, %v2936
    %v2938 = vpop.f32.mrf.mxu0
    %v2939 = vadd.f32 %v2925, %v2938
    %2940 = vdwg.mxu0
    %2941 = vmatpush.bf16.msra.mxu0 %v2021
    %2942 = vmatpush.bf16.msra.mxu0 %v2013
    %2943 = vmatpush.bf16.msra.mxu0 %v2005
    %2944 = vmatpush.bf16.msra.mxu0 %v1997
    %2945 = vmatpush.bf16.msra.mxu0 %v1989
    %2946 = vmatpush.bf16.msra.mxu0 %v1981
    %2947 = vmatpush.bf16.msra.mxu0 %v1973
    %2948 = vmatpush.bf16.msra.mxu0 %v1965
    %2949 = vmatmul.bf16.gmra.mxu0 %v520
    %v2950 = vpop.f32.mrf.mxu0
    %v2951 = vadd.f32 %v2937, %v2950
    %v2952 = vpop.f32.mrf.mxu0
    %v2953 = vadd.f32 %v2939, %v2952
    %2954 = vdwg.mxu0
    %2955 = vmatpush.bf16.msra.mxu0 %v2085
    %2956 = vmatpush.bf16.msra.mxu0 %v2077
    %2957 = vmatpush.bf16.msra.mxu0 %v2069
    %2958 = vmatpush.bf16.msra.mxu0 %v2061
    %2959 = vmatpush.bf16.msra.mxu0 %v2053
    %2960 = vmatpush.bf16.msra.mxu0 %v2045
    %2961 = vmatpush.bf16.msra.mxu0 %v2037
    %2962 = vmatpush.bf16.msra.mxu0 %v2029
    %2963 = vmatmul.bf16.gmra.mxu0 %v521
    %v2964 = vpop.f32.mrf.mxu0
    %v2965 = vadd.f32 %v2951, %v2964
    %v2966 = vpop.f32.mrf.mxu0
    %v2967 = vadd.f32 %v2953, %v2966
    %2968 = vdwg.mxu0
    %2969 = vmatpush.bf16.msra.mxu0 0
    %2970 = vmatpush.bf16.msra.mxu0 0
    %2971 = vmatpush.bf16.msra.mxu0 0
    %2972 = vmatpush.bf16.msra.mxu0 0
    %2973 = vmatpush.bf16.msra.mxu0 0
    %2974 = vmatpush.bf16.msra.mxu0 0
    %2975 = vmatpush.bf16.msra.mxu0 0
    %2976 = vmatpush.bf16.msra.mxu0 %v2093
    %2977 = vmatmul.bf16.gmra.mxu0 %v2491
    %v2978 = vpop.f32.mrf.mxu0
    %v2979 = vadd.f32 %v2965, %v2978
    %v2980 = vpop.f32.mrf.mxu0
    %v2981 = vadd.f32 %v2967, %v2980
    %2982 = vdwg.mxu0
    %2983 = vmatpush.bf16.msra.mxu0 %v1766
    %2984 = vmatpush.bf16.msra.mxu0 %v1758
    %2985 = vmatpush.bf16.msra.mxu0 %v1750
    %2986 = vmatpush.bf16.msra.mxu0 %v1742
    %2987 = vmatpush.bf16.msra.mxu0 %v1734
    %2988 = vmatpush.bf16.msra.mxu0 %v1726
    %2989 = vmatpush.bf16.msra.mxu0 %v1718
    %2990 = vmatpush.bf16.msra.mxu0 %v1710
    %2991 = vmatmul.bf16.gmra.mxu0 %v516
    %v2992 = vpop.f32.mrf.mxu0
    %v2993 = vadd.f32 0.0, %v2992
    %v2994 = vpop.f32.mrf.mxu0
    %v2995 = vadd.f32 0.0, %v2994
    %2996 = vdwg.mxu0
    %2997 = vmatpush.bf16.msra.mxu0 %v1830
    %2998 = vmatpush.bf16.msra.mxu0 %v1822
    %2999 = vmatpush.bf16.msra.mxu0 %v1814
    %3000 = vmatpush.bf16.msra.mxu0 %v1806
    %3001 = vmatpush.bf16.msra.mxu0 %v1798
    %3002 = vmatpush.bf16.msra.mxu0 %v1790
    %3003 = vmatpush.bf16.msra.mxu0 %v1782
    %3004 = vmatpush.bf16.msra.mxu0 %v1774
    %3005 = vmatmul.bf16.gmra.mxu0 %v517
    %v3006 = vpop.f32.mrf.mxu0
    %v3007 = vadd.f32 %v2993, %v3006
    %v3008 = vpop.f32.mrf.mxu0
    %v3009 = vadd.f32 %v2995, %v3008
    %3010 = vdwg.mxu0
    %3011 = vmatpush.bf16.msra.mxu0 %v1894
    %3012 = vmatpush.bf16.msra.mxu0 %v1886
    %3013 = vmatpush.bf16.msra.mxu0 %v1878
    %3014 = vmatpush.bf16.msra.mxu0 %v1870
    %3015 = vmatpush.bf16.msra.mxu0 %v1862
    %3016 = vmatpush.bf16.msra.mxu0 %v1854
    %3017 = vmatpush.bf16.msra.mxu0 %v1846
    %3018 = vmatpush.bf16.msra.mxu0 %v1838
    %3019 = vmatmul.bf16.gmra.mxu0 %v518
    %v3020 = vpop.f32.mrf.mxu0
    %v3021 = vadd.f32 %v3007, %v3020
    %v3022 = vpop.f32.mrf.mxu0
    %v3023 = vadd.f32 %v3009, %v3022
    %3024 = vdwg.mxu0
    %3025 = vmatpush.bf16.msra.mxu0 %v1958
    %3026 = vmatpush.bf16.msra.mxu0 %v1950
    %3027 = vmatpush.bf16.msra.mxu0 %v1942
    %3028 = vmatpush.bf16.msra.mxu0 %v1934
    %3029 = vmatpush.bf16.msra.mxu0 %v1926
    %3030 = vmatpush.bf16.msra.mxu0 %v1918
    %3031 = vmatpush.bf16.msra.mxu0 %v1910
    %3032 = vmatpush.bf16.msra.mxu0 %v1902
    %3033 = vmatmul.bf16.gmra.mxu0 %v519
    %v3034 = vpop.f32.mrf.mxu0
    %v3035 = vadd.f32 %v3021, %v3034
    %v3036 = vpop.f32.mrf.mxu0
    %v3037 = vadd.f32 %v3023, %v3036
    %3038 = vdwg.mxu0
    %3039 = vmatpush.bf16.msra.mxu0 %v2022
    %3040 = vmatpush.bf16.msra.mxu0 %v2014
    %3041 = vmatpush.bf16.msra.mxu0 %v2006
    %3042 = vmatpush.bf16.msra.mxu0 %v1998
    %3043 = vmatpush.bf16.msra.mxu0 %v1990
    %3044 = vmatpush.bf16.msra.mxu0 %v1982
    %3045 = vmatpush.bf16.msra.mxu0 %v1974
    %3046 = vmatpush.bf16.msra.mxu0 %v1966
    %3047 = vmatmul.bf16.gmra.mxu0 %v520
    %v3048 = vpop.f32.mrf.mxu0
    %v3049 = vadd.f32 %v3035, %v3048
    %v3050 = vpop.f32.mrf.mxu0
    %v3051 = vadd.f32 %v3037, %v3050
    %3052 = vdwg.mxu0
    %3053 = vmatpush.bf16.msra.mxu0 %v2086
    %3054 = vmatpush.bf16.msra.mxu0 %v2078
    %3055 = vmatpush.bf16.msra.mxu0 %v2070
    %3056 = vmatpush.bf16.msra.mxu0 %v2062
    %3057 = vmatpush.bf16.msra.mxu0 %v2054
    %3058 = vmatpush.bf16.msra.mxu0 %v2046
    %3059 = vmatpush.bf16.msra.mxu0 %v2038
    %3060 = vmatpush.bf16.msra.mxu0 %v2030
    %3061 = vmatmul.bf16.gmra.mxu0 %v521
    %v3062 = vpop.f32.mrf.mxu0
    %v3063 = vadd.f32 %v3049, %v3062
    %v3064 = vpop.f32.mrf.mxu0
    %v3065 = vadd.f32 %v3051, %v3064
    %3066 = vdwg.mxu0
    %3067 = vmatpush.bf16.msra.mxu0 0
    %3068 = vmatpush.bf16.msra.mxu0 0
    %3069 = vmatpush.bf16.msra.mxu0 0
    %3070 = vmatpush.bf16.msra.mxu0 0
    %3071 = vmatpush.bf16.msra.mxu0 0
    %3072 = vmatpush.bf16.msra.mxu0 0
    %3073 = vmatpush.bf16.msra.mxu0 0
    %3074 = vmatpush.bf16.msra.mxu0 %v2094
    %3075 = vmatmul.bf16.gmra.mxu0 %v2491
    %v3076 = vpop.f32.mrf.mxu0
    %v3077 = vadd.f32 %v3063, %v3076
    %v3078 = vpop.f32.mrf.mxu0
    %v3079 = vadd.f32 %v3065, %v3078
    %3080 = vdwg.mxu0
    %3081 = vmatpush.bf16.msra.mxu0 %v1767
    %3082 = vmatpush.bf16.msra.mxu0 %v1759
    %3083 = vmatpush.bf16.msra.mxu0 %v1751
    %3084 = vmatpush.bf16.msra.mxu0 %v1743
    %3085 = vmatpush.bf16.msra.mxu0 %v1735
    %3086 = vmatpush.bf16.msra.mxu0 %v1727
    %3087 = vmatpush.bf16.msra.mxu0 %v1719
    %3088 = vmatpush.bf16.msra.mxu0 %v1711
    %3089 = vmatmul.bf16.gmra.mxu0 %v516
    %v3090 = vpop.f32.mrf.mxu0
    %v3091 = vadd.f32 0.0, %v3090
    %v3092 = vpop.f32.mrf.mxu0
    %v3093 = vadd.f32 0.0, %v3092
    %3094 = vdwg.mxu0
    %3095 = vmatpush.bf16.msra.mxu0 %v1831
    %3096 = vmatpush.bf16.msra.mxu0 %v1823
    %3097 = vmatpush.bf16.msra.mxu0 %v1815
    %3098 = vmatpush.bf16.msra.mxu0 %v1807
    %3099 = vmatpush.bf16.msra.mxu0 %v1799
    %3100 = vmatpush.bf16.msra.mxu0 %v1791
    %3101 = vmatpush.bf16.msra.mxu0 %v1783
    %3102 = vmatpush.bf16.msra.mxu0 %v1775
    %3103 = vmatmul.bf16.gmra.mxu0 %v517
    %v3104 = vpop.f32.mrf.mxu0
    %v3105 = vadd.f32 %v3091, %v3104
    %v3106 = vpop.f32.mrf.mxu0
    %v3107 = vadd.f32 %v3093, %v3106
    %3108 = vdwg.mxu0
    %3109 = vmatpush.bf16.msra.mxu0 %v1895
    %3110 = vmatpush.bf16.msra.mxu0 %v1887
    %3111 = vmatpush.bf16.msra.mxu0 %v1879
    %3112 = vmatpush.bf16.msra.mxu0 %v1871
    %3113 = vmatpush.bf16.msra.mxu0 %v1863
    %3114 = vmatpush.bf16.msra.mxu0 %v1855
    %3115 = vmatpush.bf16.msra.mxu0 %v1847
    %3116 = vmatpush.bf16.msra.mxu0 %v1839
    %3117 = vmatmul.bf16.gmra.mxu0 %v518
    %v3118 = vpop.f32.mrf.mxu0
    %v3119 = vadd.f32 %v3105, %v3118
    %v3120 = vpop.f32.mrf.mxu0
    %v3121 = vadd.f32 %v3107, %v3120
    %3122 = vdwg.mxu0
    %3123 = vmatpush.bf16.msra.mxu0 %v1959
    %3124 = vmatpush.bf16.msra.mxu0 %v1951
    %3125 = vmatpush.bf16.msra.mxu0 %v1943
    %3126 = vmatpush.bf16.msra.mxu0 %v1935
    %3127 = vmatpush.bf16.msra.mxu0 %v1927
    %3128 = vmatpush.bf16.msra.mxu0 %v1919
    %3129 = vmatpush.bf16.msra.mxu0 %v1911
    %3130 = vmatpush.bf16.msra.mxu0 %v1903
    %3131 = vmatmul.bf16.gmra.mxu0 %v519
    %v3132 = vpop.f32.mrf.mxu0
    %v3133 = vadd.f32 %v3119, %v3132
    %v3134 = vpop.f32.mrf.mxu0
    %v3135 = vadd.f32 %v3121, %v3134
    %3136 = vdwg.mxu0
    %3137 = vmatpush.bf16.msra.mxu0 %v2023
    %3138 = vmatpush.bf16.msra.mxu0 %v2015
    %3139 = vmatpush.bf16.msra.mxu0 %v2007
    %3140 = vmatpush.bf16.msra.mxu0 %v1999
    %3141 = vmatpush.bf16.msra.mxu0 %v1991
    %3142 = vmatpush.bf16.msra.mxu0 %v1983
    %3143 = vmatpush.bf16.msra.mxu0 %v1975
    %3144 = vmatpush.bf16.msra.mxu0 %v1967
    %3145 = vmatmul.bf16.gmra.mxu0 %v520
    %v3146 = vpop.f32.mrf.mxu0
    %v3147 = vadd.f32 %v3133, %v3146
    %v3148 = vpop.f32.mrf.mxu0
    %v3149 = vadd.f32 %v3135, %v3148
    %3150 = vdwg.mxu0
    %3151 = vmatpush.bf16.msra.mxu0 %v2087
    %3152 = vmatpush.bf16.msra.mxu0 %v2079
    %3153 = vmatpush.bf16.msra.mxu0 %v2071
    %3154 = vmatpush.bf16.msra.mxu0 %v2063
    %3155 = vmatpush.bf16.msra.mxu0 %v2055
    %3156 = vmatpush.bf16.msra.mxu0 %v2047
    %3157 = vmatpush.bf16.msra.mxu0 %v2039
    %3158 = vmatpush.bf16.msra.mxu0 %v2031
    %3159 = vmatmul.bf16.gmra.mxu0 %v521
    %v3160 = vpop.f32.mrf.mxu0
    %v3161 = vadd.f32 %v3147, %v3160
    %v3162 = vpop.f32.mrf.mxu0
    %v3163 = vadd.f32 %v3149, %v3162
    %3164 = vdwg.mxu0
    %3165 = vmatpush.bf16.msra.mxu0 0
    %3166 = vmatpush.bf16.msra.mxu0 0
    %3167 = vmatpush.bf16.msra.mxu0 0
    %3168 = vmatpush.bf16.msra.mxu0 0
    %3169 = vmatpush.bf16.msra.mxu0 0
    %3170 = vmatpush.bf16.msra.mxu0 0
    %3171 = vmatpush.bf16.msra.mxu0 0
    %3172 = vmatpush.bf16.msra.mxu0 %v2095
    %3173 = vmatmul.bf16.gmra.mxu0 %v2491
    %v3174 = vpop.f32.mrf.mxu0
    %v3175 = vadd.f32 %v3161, %v3174
    %v3176 = vpop.f32.mrf.mxu0
    %v3177 = vadd.f32 %v3163, %v3176
    %3178 = vdwg.mxu0
    %3179 = vmatpush.bf16.msra.mxu0 %v1768
    %3180 = vmatpush.bf16.msra.mxu0 %v1760
    %3181 = vmatpush.bf16.msra.mxu0 %v1752
    %3182 = vmatpush.bf16.msra.mxu0 %v1744
    %3183 = vmatpush.bf16.msra.mxu0 %v1736
    %3184 = vmatpush.bf16.msra.mxu0 %v1728
    %3185 = vmatpush.bf16.msra.mxu0 %v1720
    %3186 = vmatpush.bf16.msra.mxu0 %v1712
    %3187 = vmatmul.bf16.gmra.mxu0 %v516
    %v3188 = vpop.f32.mrf.mxu0
    %v3189 = vadd.f32 0.0, %v3188
    %v3190 = vpop.f32.mrf.mxu0
    %v3191 = vadd.f32 0.0, %v3190
    %3192 = vdwg.mxu0
    %3193 = vmatpush.bf16.msra.mxu0 %v1832
    %3194 = vmatpush.bf16.msra.mxu0 %v1824
    %3195 = vmatpush.bf16.msra.mxu0 %v1816
    %3196 = vmatpush.bf16.msra.mxu0 %v1808
    %3197 = vmatpush.bf16.msra.mxu0 %v1800
    %3198 = vmatpush.bf16.msra.mxu0 %v1792
    %3199 = vmatpush.bf16.msra.mxu0 %v1784
    %3200 = vmatpush.bf16.msra.mxu0 %v1776
    %3201 = vmatmul.bf16.gmra.mxu0 %v517
    %v3202 = vpop.f32.mrf.mxu0
    %v3203 = vadd.f32 %v3189, %v3202
    %v3204 = vpop.f32.mrf.mxu0
    %v3205 = vadd.f32 %v3191, %v3204
    %3206 = vdwg.mxu0
    %3207 = vmatpush.bf16.msra.mxu0 %v1896
    %3208 = vmatpush.bf16.msra.mxu0 %v1888
    %3209 = vmatpush.bf16.msra.mxu0 %v1880
    %3210 = vmatpush.bf16.msra.mxu0 %v1872
    %3211 = vmatpush.bf16.msra.mxu0 %v1864
    %3212 = vmatpush.bf16.msra.mxu0 %v1856
    %3213 = vmatpush.bf16.msra.mxu0 %v1848
    %3214 = vmatpush.bf16.msra.mxu0 %v1840
    %3215 = vmatmul.bf16.gmra.mxu0 %v518
    %v3216 = vpop.f32.mrf.mxu0
    %v3217 = vadd.f32 %v3203, %v3216
    %v3218 = vpop.f32.mrf.mxu0
    %v3219 = vadd.f32 %v3205, %v3218
    %3220 = vdwg.mxu0
    %3221 = vmatpush.bf16.msra.mxu0 %v1960
    %3222 = vmatpush.bf16.msra.mxu0 %v1952
    %3223 = vmatpush.bf16.msra.mxu0 %v1944
    %3224 = vmatpush.bf16.msra.mxu0 %v1936
    %3225 = vmatpush.bf16.msra.mxu0 %v1928
    %3226 = vmatpush.bf16.msra.mxu0 %v1920
    %3227 = vmatpush.bf16.msra.mxu0 %v1912
    %3228 = vmatpush.bf16.msra.mxu0 %v1904
    %3229 = vmatmul.bf16.gmra.mxu0 %v519
    %v3230 = vpop.f32.mrf.mxu0
    %v3231 = vadd.f32 %v3217, %v3230
    %v3232 = vpop.f32.mrf.mxu0
    %v3233 = vadd.f32 %v3219, %v3232
    %3234 = vdwg.mxu0
    %3235 = vmatpush.bf16.msra.mxu0 %v2024
    %3236 = vmatpush.bf16.msra.mxu0 %v2016
    %3237 = vmatpush.bf16.msra.mxu0 %v2008
    %3238 = vmatpush.bf16.msra.mxu0 %v2000
    %3239 = vmatpush.bf16.msra.mxu0 %v1992
    %3240 = vmatpush.bf16.msra.mxu0 %v1984
    %3241 = vmatpush.bf16.msra.mxu0 %v1976
    %3242 = vmatpush.bf16.msra.mxu0 %v1968
    %3243 = vmatmul.bf16.gmra.mxu0 %v520
    %v3244 = vpop.f32.mrf.mxu0
    %v3245 = vadd.f32 %v3231, %v3244
    %v3246 = vpop.f32.mrf.mxu0
    %v3247 = vadd.f32 %v3233, %v3246
    %3248 = vdwg.mxu0
    %3249 = vmatpush.bf16.msra.mxu0 %v2088
    %3250 = vmatpush.bf16.msra.mxu0 %v2080
    %3251 = vmatpush.bf16.msra.mxu0 %v2072
    %3252 = vmatpush.bf16.msra.mxu0 %v2064
    %3253 = vmatpush.bf16.msra.mxu0 %v2056
    %3254 = vmatpush.bf16.msra.mxu0 %v2048
    %3255 = vmatpush.bf16.msra.mxu0 %v2040
    %3256 = vmatpush.bf16.msra.mxu0 %v2032
    %3257 = vmatmul.bf16.gmra.mxu0 %v521
    %v3258 = vpop.f32.mrf.mxu0
    %v3259 = vadd.f32 %v3245, %v3258
    %v3260 = vpop.f32.mrf.mxu0
    %v3261 = vadd.f32 %v3247, %v3260
    %3262 = vdwg.mxu0
    %3263 = vmatpush.bf16.msra.mxu0 0
    %3264 = vmatpush.bf16.msra.mxu0 0
    %3265 = vmatpush.bf16.msra.mxu0 0
    %3266 = vmatpush.bf16.msra.mxu0 0
    %3267 = vmatpush.bf16.msra.mxu0 0
    %3268 = vmatpush.bf16.msra.mxu0 0
    %3269 = vmatpush.bf16.msra.mxu0 0
    %3270 = vmatpush.bf16.msra.mxu0 %v2096
    %3271 = vmatmul.bf16.gmra.mxu0 %v2491
    %v3272 = vpop.f32.mrf.mxu0
    %v3273 = vadd.f32 %v3259, %v3272
    %v3274 = vpop.f32.mrf.mxu0
    %v3275 = vadd.f32 %v3261, %v3274
    %3276 = vdwg.mxu0
    %v3277 = vadd.f32 %v2587, %v2589
    %v3278 = vrot.slane %v3277, 4
    %v3279 = vadd.f32 %v3277, %v3278
    %v3280 = vrot.slane %v3279, 2
    %v3281 = vadd.f32 %v3279, %v3280
    %v3282 = vrot.slane %v3281, 1
    %v3283 = vadd.f32 %v3281, %v3282
    %v3284 = vadd.f32 %v2685, %v2687
    %v3285 = vrot.slane %v3284, 4
    %v3286 = vadd.f32 %v3284, %v3285
    %v3287 = vrot.slane %v3286, 2
    %v3288 = vadd.f32 %v3286, %v3287
    %v3289 = vrot.slane %v3288, 1
    %v3290 = vadd.f32 %v3288, %v3289
    %v3291 = vadd.f32 %v2783, %v2785
    %v3292 = vrot.slane %v3291, 4
    %v3293 = vadd.f32 %v3291, %v3292
    %v3294 = vrot.slane %v3293, 2
    %v3295 = vadd.f32 %v3293, %v3294
    %v3296 = vrot.slane %v3295, 1
    %v3297 = vadd.f32 %v3295, %v3296
    %v3298 = vadd.f32 %v2881, %v2883
    %v3299 = vrot.slane %v3298, 4
    %v3300 = vadd.f32 %v3298, %v3299
    %v3301 = vrot.slane %v3300, 2
    %v3302 = vadd.f32 %v3300, %v3301
    %v3303 = vrot.slane %v3302, 1
    %v3304 = vadd.f32 %v3302, %v3303
    %v3305 = vadd.f32 %v2979, %v2981
    %v3306 = vrot.slane %v3305, 4
    %v3307 = vadd.f32 %v3305, %v3306
    %v3308 = vrot.slane %v3307, 2
    %v3309 = vadd.f32 %v3307, %v3308
    %v3310 = vrot.slane %v3309, 1
    %v3311 = vadd.f32 %v3309, %v3310
    %v3312 = vadd.f32 %v3077, %v3079
    %v3313 = vrot.slane %v3312, 4
    %v3314 = vadd.f32 %v3312, %v3313
    %v3315 = vrot.slane %v3314, 2
    %v3316 = vadd.f32 %v3314, %v3315
    %v3317 = vrot.slane %v3316, 1
    %v3318 = vadd.f32 %v3316, %v3317
    %v3319 = vadd.f32 %v3175, %v3177
    %v3320 = vrot.slane %v3319, 4
    %v3321 = vadd.f32 %v3319, %v3320
    %v3322 = vrot.slane %v3321, 2
    %v3323 = vadd.f32 %v3321, %v3322
    %v3324 = vrot.slane %v3323, 1
    %v3325 = vadd.f32 %v3323, %v3324
    %v3326 = vadd.f32 %v3273, %v3275
    %v3327 = vrot.slane %v3326, 4
    %v3328 = vadd.f32 %v3326, %v3327
    %v3329 = vrot.slane %v3328, 2
    %v3330 = vadd.f32 %v3328, %v3329
    %v3331 = vrot.slane %v3330, 1
    %v3332 = vadd.f32 %v3330, %v3331
    %v3333 = vmul.f32 %v3283, 0.0625
    %v3334 = vmul.f32 %v3290, 0.0625
    %v3335 = vmul.f32 %v3297, 0.0625
    %v3336 = vmul.f32 %v3304, 0.0625
    %v3337 = vmul.f32 %v3311, 0.0625
    %v3338 = vmul.f32 %v3318, 0.0625
    %v3339 = vmul.f32 %v3325, 0.0625
    %v3340 = vmul.f32 %v3332, 0.0625
    %v3341 = vsub.f32 %v2587, %v3333
    %v3342 = vsub.f32 %v2685, %v3334
    %v3343 = vsub.f32 %v2783, %v3335
    %v3344 = vsub.f32 %v2881, %v3336
    %v3345 = vsub.f32 %v2979, %v3337
    %v3346 = vsub.f32 %v3077, %v3338
    %v3347 = vsub.f32 %v3175, %v3339
    %v3348 = vsub.f32 %v3273, %v3340
    %v3349 = vsub.f32 %v2589, %v3333
    %v3350 = vsub.f32 %v2687, %v3334
    %v3351 = vsub.f32 %v2785, %v3335
    %v3352 = vsub.f32 %v2883, %v3336
    %v3353 = vsub.f32 %v2981, %v3337
    %v3354 = vsub.f32 %v3079, %v3338
    %v3355 = vsub.f32 %v3177, %v3339
    %v3356 = vsub.f32 %v3275, %v3340
    %v3357 = vmul.f32 %v3341, %v3341
    %v3358 = vmul.f32 %v3342, %v3342
    %v3359 = vmul.f32 %v3343, %v3343
    %v3360 = vmul.f32 %v3344, %v3344
    %v3361 = vmul.f32 %v3345, %v3345
    %v3362 = vmul.f32 %v3346, %v3346
    %v3363 = vmul.f32 %v3347, %v3347
    %v3364 = vmul.f32 %v3348, %v3348
    %v3365 = vmul.f32 %v3349, %v3349
    %v3366 = vmul.f32 %v3350, %v3350
    %v3367 = vmul.f32 %v3351, %v3351
    %v3368 = vmul.f32 %v3352, %v3352
    %v3369 = vmul.f32 %v3353, %v3353
    %v3370 = vmul.f32 %v3354, %v3354
    %v3371 = vmul.f32 %v3355, %v3355
    %v3372 = vmul.f32 %v3356, %v3356
    %v3373 = vadd.f32 %v3357, %v3365
    %v3374 = vrot.slane %v3373, 4
    %v3375 = vadd.f32 %v3373, %v3374
    %v3376 = vrot.slane %v3375, 2
    %v3377 = vadd.f32 %v3375, %v3376
    %v3378 = vrot.slane %v3377, 1
    %v3379 = vadd.f32 %v3377, %v3378
    %v3380 = vadd.f32 %v3358, %v3366
    %v3381 = vrot.slane %v3380, 4
    %v3382 = vadd.f32 %v3380, %v3381
    %v3383 = vrot.slane %v3382, 2
    %v3384 = vadd.f32 %v3382, %v3383
    %v3385 = vrot.slane %v3384, 1
    %v3386 = vadd.f32 %v3384, %v3385
    %v3387 = vadd.f32 %v3359, %v3367
    %v3388 = vrot.slane %v3387, 4
    %v3389 = vadd.f32 %v3387, %v3388
    %v3390 = vrot.slane %v3389, 2
    %v3391 = vadd.f32 %v3389, %v3390
    %v3392 = vrot.slane %v3391, 1
    %v3393 = vadd.f32 %v3391, %v3392
    %v3394 = vadd.f32 %v3360, %v3368
    %v3395 = vrot.slane %v3394, 4
    %v3396 = vadd.f32 %v3394, %v3395
    %v3397 = vrot.slane %v3396, 2
    %v3398 = vadd.f32 %v3396, %v3397
    %v3399 = vrot.slane %v3398, 1
    %v3400 = vadd.f32 %v3398, %v3399
    %v3401 = vadd.f32 %v3361, %v3369
    %v3402 = vrot.slane %v3401, 4
    %v3403 = vadd.f32 %v3401, %v3402
    %v3404 = vrot.slane %v3403, 2
    %v3405 = vadd.f32 %v3403, %v3404
    %v3406 = vrot.slane %v3405, 1
    %v3407 = vadd.f32 %v3405, %v3406
    %v3408 = vadd.f32 %v3362, %v3370
    %v3409 = vrot.slane %v3408, 4
    %v3410 = vadd.f32 %v3408, %v3409
    %v3411 = vrot.slane %v3410, 2
    %v3412 = vadd.f32 %v3410, %v3411
    %v3413 = vrot.slane %v3412, 1
    %v3414 = vadd.f32 %v3412, %v3413
    %v3415 = vadd.f32 %v3363, %v3371
    %v3416 = vrot.slane %v3415, 4
    %v3417 = vadd.f32 %v3415, %v3416
    %v3418 = vrot.slane %v3417, 2
    %v3419 = vadd.f32 %v3417, %v3418
    %v3420 = vrot.slane %v3419, 1
    %v3421 = vadd.f32 %v3419, %v3420
    %v3422 = vadd.f32 %v3364, %v3372
    %v3423 = vrot.slane %v3422, 4
    %v3424 = vadd.f32 %v3422, %v3423
    %v3425 = vrot.slane %v3424, 2
    %v3426 = vadd.f32 %v3424, %v3425
    %v3427 = vrot.slane %v3426, 1
    %v3428 = vadd.f32 %v3426, %v3427
    %v3429 = vmul.f32 %v3379, 0.0625
    %v3430 = vmul.f32 %v3386, 0.0625
    %v3431 = vmul.f32 %v3393, 0.0625
    %v3432 = vmul.f32 %v3400, 0.0625
    %v3433 = vmul.f32 %v3407, 0.0625
    %v3434 = vmul.f32 %v3414, 0.0625
    %v3435 = vmul.f32 %v3421, 0.0625
    %v3436 = vmul.f32 %v3428, 0.0625
    %v3437 = vadd.f32 %v3429, 1e-05
    %v3438 = vadd.f32 %v3430, 1e-05
    %v3439 = vadd.f32 %v3431, 1e-05
    %v3440 = vadd.f32 %v3432, 1e-05
    %v3441 = vadd.f32 %v3433, 1e-05
    %v3442 = vadd.f32 %v3434, 1e-05
    %v3443 = vadd.f32 %v3435, 1e-05
    %v3444 = vadd.f32 %v3436, 1e-05
    %v3445 = vrsqrt.pop %v3437
    %v3446 = vmul.f32 %v3445, %v3437
    %v3447 = vmul.f32 %v3446, %v3445
    %v3448 = vmul.f32 0.5, %v3447
    %v3449 = vsub.f32 1.5, %v3448
    %v3450 = vmul.f32 %v3445, %v3449
    %vm3451 = vweird.f32 %v3437
    %vm3452 = vweird.f32 %v3445
    %vm3453 = vmor %vm3451, %vm3452
    %v3454 = vsel %vm3453, %v3445, %v3450
    %v3455 = vrsqrt.pop %v3438
    %v3456 = vmul.f32 %v3455, %v3438
    %v3457 = vmul.f32 %v3456, %v3455
    %v3458 = vmul.f32 0.5, %v3457
    %v3459 = vsub.f32 1.5, %v3458
    %v3460 = vmul.f32 %v3455, %v3459
    %vm3461 = vweird.f32 %v3438
    %vm3462 = vweird.f32 %v3455
    %vm3463 = vmor %vm3461, %vm3462
    %v3464 = vsel %vm3463, %v3455, %v3460
    %v3465 = vrsqrt.pop %v3439
    %v3466 = vmul.f32 %v3465, %v3439
    %v3467 = vmul.f32 %v3466, %v3465
    %v3468 = vmul.f32 0.5, %v3467
    %v3469 = vsub.f32 1.5, %v3468
    %v3470 = vmul.f32 %v3465, %v3469
    %vm3471 = vweird.f32 %v3439
    %vm3472 = vweird.f32 %v3465
    %vm3473 = vmor %vm3471, %vm3472
    %v3474 = vsel %vm3473, %v3465, %v3470
    %v3475 = vrsqrt.pop %v3440
    %v3476 = vmul.f32 %v3475, %v3440
    %v3477 = vmul.f32 %v3476, %v3475
    %v3478 = vmul.f32 0.5, %v3477
    %v3479 = vsub.f32 1.5, %v3478
    %v3480 = vmul.f32 %v3475, %v3479
    %vm3481 = vweird.f32 %v3440
    %vm3482 = vweird.f32 %v3475
    %vm3483 = vmor %vm3481, %vm3482
    %v3484 = vsel %vm3483, %v3475, %v3480
    %v3485 = vrsqrt.pop %v3441
    %v3486 = vmul.f32 %v3485, %v3441
    %v3487 = vmul.f32 %v3486, %v3485
    %v3488 = vmul.f32 0.5, %v3487
    %v3489 = vsub.f32 1.5, %v3488
    %v3490 = vmul.f32 %v3485, %v3489
    %vm3491 = vweird.f32 %v3441
    %vm3492 = vweird.f32 %v3485
    %vm3493 = vmor %vm3491, %vm3492
    %v3494 = vsel %vm3493, %v3485, %v3490
    %v3495 = vrsqrt.pop %v3442
    %v3496 = vmul.f32 %v3495, %v3442
    %v3497 = vmul.f32 %v3496, %v3495
    %v3498 = vmul.f32 0.5, %v3497
    %v3499 = vsub.f32 1.5, %v3498
    %v3500 = vmul.f32 %v3495, %v3499
    %vm3501 = vweird.f32 %v3442
    %vm3502 = vweird.f32 %v3495
    %vm3503 = vmor %vm3501, %vm3502
    %v3504 = vsel %vm3503, %v3495, %v3500
    %v3505 = vrsqrt.pop %v3443
    %v3506 = vmul.f32 %v3505, %v3443
    %v3507 = vmul.f32 %v3506, %v3505
    %v3508 = vmul.f32 0.5, %v3507
    %v3509 = vsub.f32 1.5, %v3508
    %v3510 = vmul.f32 %v3505, %v3509
    %vm3511 = vweird.f32 %v3443
    %vm3512 = vweird.f32 %v3505
    %vm3513 = vmor %vm3511, %vm3512
    %v3514 = vsel %vm3513, %v3505, %v3510
    %v3515 = vrsqrt.pop %v3444
    %v3516 = vmul.f32 %v3515, %v3444
    %v3517 = vmul.f32 %v3516, %v3515
    %v3518 = vmul.f32 0.5, %v3517
    %v3519 = vsub.f32 1.5, %v3518
    %v3520 = vmul.f32 %v3515, %v3519
    %vm3521 = vweird.f32 %v3444
    %vm3522 = vweird.f32 %v3515
    %vm3523 = vmor %vm3521, %vm3522
    %v3524 = vsel %vm3523, %v3515, %v3520
    %v3533 = vrot.slane %v3464, 6
    %v3534 = vrot.slane %v3474, 4
    %v3535 = vrot.slane %v3484, 2
    %v3536 = vrot.slane %v3504, 6
    %v3537 = vrot.slane %v3514, 4
    %v3538 = vrot.slane %v3524, 2
    %vm3539 = vcmask 1041408
    %v3540 = vsel %vm3539, %v3454, %v3533
    %vm3541 = vcmask 1045508
    %v3542 = vsel %vm3541, %v3534, %v3535
    %vm3543 = vcmask 1043456
    %v3544 = vsel %vm3543, %v3540, %v3542
    %v3545 = vsel %vm3539, %v3494, %v3536
    %v3546 = vsel %vm3541, %v3537, %v3538
    %v3547 = vsel %vm3543, %v3545, %v3546
    %v3550 = vmul.f32 %v91, %v3544
    %v3551 = vmul.f32 %v92, %v3547
    %v3554 = vperm.slane %v3550, 0
    %v3555 = vperm.slane %v3550, 2
    %v3556 = vperm.slane %v3550, 4
    %v3557 = vperm.slane %v3550, 6
    %v3558 = vperm.slane %v3551, 0
    %v3559 = vperm.slane %v3551, 2
    %v3560 = vperm.slane %v3551, 4
    %v3561 = vperm.slane %v3551, 6
    %v3570 = vperm.slane %v3554, 0
    %v3571 = vperm.slane %v3555, 0
    %v3572 = vperm.slane %v3556, 0
    %v3573 = vperm.slane %v3557, 0
    %v3574 = vperm.slane %v3558, 0
    %v3575 = vperm.slane %v3559, 0
    %v3576 = vperm.slane %v3560, 0
    %v3577 = vperm.slane %v3561, 0
    %v3578 = vmul.f32 %v3341, %v3570
    %v3579 = vmul.f32 %v3342, %v3571
    %v3580 = vmul.f32 %v3343, %v3572
    %v3581 = vmul.f32 %v3344, %v3573
    %v3582 = vmul.f32 %v3345, %v3574
    %v3583 = vmul.f32 %v3346, %v3575
    %v3584 = vmul.f32 %v3347, %v3576
    %v3585 = vmul.f32 %v3348, %v3577
    %v3586 = vmul.f32 %v3349, %v3570
    %v3587 = vmul.f32 %v3350, %v3571
    %v3588 = vmul.f32 %v3351, %v3572
    %v3589 = vmul.f32 %v3352, %v3573
    %v3590 = vmul.f32 %v3353, %v3574
    %v3591 = vmul.f32 %v3354, %v3575
    %v3592 = vmul.f32 %v3355, %v3576
    %v3593 = vmul.f32 %v3356, %v3577
    %v3596 = vperm.slane %v91, 1
    %v3597 = vperm.slane %v91, 3
    %v3598 = vperm.slane %v91, 5
    %v3599 = vperm.slane %v91, 7
    %v3600 = vperm.slane %v92, 1
    %v3601 = vperm.slane %v92, 3
    %v3602 = vperm.slane %v92, 5
    %v3603 = vperm.slane %v92, 7
    %v3612 = vperm.slane %v3596, 1
    %v3613 = vperm.slane %v3597, 1
    %v3614 = vperm.slane %v3598, 1
    %v3615 = vperm.slane %v3599, 1
    %v3616 = vperm.slane %v3600, 1
    %v3617 = vperm.slane %v3601, 1
    %v3618 = vperm.slane %v3602, 1
    %v3619 = vperm.slane %v3603, 1
    %v3620 = vadd.f32 %v3578, %v3612
    %v3621 = vadd.f32 %v3579, %v3613
    %v3622 = vadd.f32 %v3580, %v3614
    %v3623 = vadd.f32 %v3581, %v3615
    %v3624 = vadd.f32 %v3582, %v3616
    %v3625 = vadd.f32 %v3583, %v3617
    %v3626 = vadd.f32 %v3584, %v3618
    %v3627 = vadd.f32 %v3585, %v3619
    %v3628 = vadd.f32 %v3586, %v3612
    %v3629 = vadd.f32 %v3587, %v3613
    %v3630 = vadd.f32 %v3588, %v3614
    %v3631 = vadd.f32 %v3589, %v3615
    %v3632 = vadd.f32 %v3590, %v3616
    %v3633 = vadd.f32 %v3591, %v3617
    %v3634 = vadd.f32 %v3592, %v3618
    %v3635 = vadd.f32 %v3593, %v3619
    %v3636 = vmax.f32 %v3620, 0.0
    %v3637 = vmax.f32 %v3621, 0.0
    %v3638 = vmax.f32 %v3622, 0.0
    %v3639 = vmax.f32 %v3623, 0.0
    %v3640 = vmax.f32 %v3624, 0.0
    %v3641 = vmax.f32 %v3625, 0.0
    %v3642 = vmax.f32 %v3626, 0.0
    %v3643 = vmax.f32 %v3627, 0.0
    %v3644 = vmax.f32 %v3628, 0.0
    %v3645 = vmax.f32 %v3629, 0.0
    %v3646 = vmax.f32 %v3630, 0.0
    %v3647 = vmax.f32 %v3631, 0.0
    %v3648 = vmax.f32 %v3632, 0.0
    %v3649 = vmax.f32 %v3633, 0.0
    %v3650 = vmax.f32 %v3634, 0.0
    %v3651 = vmax.f32 %v3635, 0.0
    %v3652 = vpack.c.bf16 %v3644, %v3636
    %v3653 = vpack.c.bf16 %v3645, %v3637
    %v3654 = vpack.c.bf16 %v3646, %v3638
    %v3655 = vpack.c.bf16 %v3647, %v3639
    %v3656 = vpack.c.bf16 %v3648, %v3640
    %v3657 = vpack.c.bf16 %v3649, %v3641
    %v3658 = vpack.c.bf16 %v3650, %v3642
    %v3659 = vpack.c.bf16 %v3651, %v3643
    %s3660 = smul.u32 4, 128
    %s3661 = smul.u32 %s3660, 1
    %s3662 = sshll.u32 %s3661, 4
    %3663 = dma.done [#allocation4], %s3662
    %v3664 = vld [vmem:[#allocation2] sm:$0xf]
    %v3665 = vld [vmem:[#allocation2 + $0x4] sm:$0xf]
    %v3666 = vld [vmem:[#allocation2 + $0x8] sm:$0xf]
    %v3667 = vld [vmem:[#allocation2 + $0xc] sm:$0xf]
    %v3668 = vld [vmem:[#allocation2 + $0x10] sm:$0xf]
    %v3669 = vld [vmem:[#allocation2 + $0x14] sm:$0xf]
    %v3670 = vld [vmem:[#allocation2 + $0x18] sm:$0xf]
    %v3671 = vld [vmem:[#allocation2 + $0x1c] sm:$0xf]
    %v3672 = vld [vmem:[#allocation2 + $0x20] sm:$0xf]
    %v3673 = vld [vmem:[#allocation2 + $0x24] sm:$0xf]
    %v3674 = vld [vmem:[#allocation2 + $0x28] sm:$0xf]
    %v3675 = vld [vmem:[#allocation2 + $0x2c] sm:$0xf]
    %v3676 = vld [vmem:[#allocation2 + $0x30] sm:$0xf]
    %v3677 = vld [vmem:[#allocation2 + $0x34] sm:$0xf]
    %v3678 = vld [vmem:[#allocation2 + $0x38] sm:$0xf]
    %v3679 = vld [vmem:[#allocation2 + $0x3c] sm:$0xf]
    %v3680 = vld [vmem:[#allocation2 + $0x40] sm:$0xf]
    %v3681 = vld [vmem:[#allocation2 + $0x44] sm:$0xf]
    %v3682 = vld [vmem:[#allocation2 + $0x48] sm:$0xf]
    %v3683 = vld [vmem:[#allocation2 + $0x4c] sm:$0xf]
    %v3684 = vld [vmem:[#allocation2 + $0x50] sm:$0xf]
    %v3685 = vld [vmem:[#allocation2 + $0x54] sm:$0xf]
    %v3686 = vld [vmem:[#allocation2 + $0x58] sm:$0xf]
    %v3687 = vld [vmem:[#allocation2 + $0x5c] sm:$0xf]
    %v3688 = vld [vmem:[#allocation2 + $0x60] sm:$0xf]
    %v3689 = vld [vmem:[#allocation2 + $0x64] sm:$0xf]
    %v3690 = vld [vmem:[#allocation2 + $0x68] sm:$0xf]
    %v3691 = vld [vmem:[#allocation2 + $0x6c] sm:$0xf]
    %v3692 = vld [vmem:[#allocation2 + $0x70] sm:$0xf]
    %v3693 = vld [vmem:[#allocation2 + $0x74] sm:$0xf]
    %v3694 = vld [vmem:[#allocation2 + $0x78] sm:$0xf]
    %v3695 = vld [vmem:[#allocation2 + $0x7c] sm:$0xf]
    %v3696 = vld [vmem:[#allocation2 + $0x80] sm:$0xf]
    %v3697 = vld [vmem:[#allocation2 + $0x84] sm:$0xf]
    %v3698 = vld [vmem:[#allocation2 + $0x88] sm:$0xf]
    %v3699 = vld [vmem:[#allocation2 + $0x8c] sm:$0xf]
    %v3700 = vld [vmem:[#allocation2 + $0x90] sm:$0xf]
    %v3701 = vld [vmem:[#allocation2 + $0x94] sm:$0xf]
    %v3702 = vld [vmem:[#allocation2 + $0x98] sm:$0xf]
    %v3703 = vld [vmem:[#allocation2 + $0x9c] sm:$0xf]
    %v3704 = vld [vmem:[#allocation2 + $0xa0] sm:$0xf]
    %v3705 = vld [vmem:[#allocation2 + $0xa4] sm:$0xf]
    %v3706 = vld [vmem:[#allocation2 + $0xa8] sm:$0xf]
    %v3707 = vld [vmem:[#allocation2 + $0xac] sm:$0xf]
    %v3708 = vld [vmem:[#allocation2 + $0xb0] sm:$0xf]
    %v3709 = vld [vmem:[#allocation2 + $0xb4] sm:$0xf]
    %v3710 = vld [vmem:[#allocation2 + $0xb8] sm:$0xf]
    %v3711 = vld [vmem:[#allocation2 + $0xbc] sm:$0xf]
    %v3712 = vld [vmem:[#allocation2 + $0xc0] sm:$0xf]
    %v3713 = vld [vmem:[#allocation2 + $0xc4] sm:$0xf]
    %v3714 = vld [vmem:[#allocation2 + $0xc8] sm:$0xf]
    %v3715 = vld [vmem:[#allocation2 + $0xcc] sm:$0xf]
    %v3716 = vld [vmem:[#allocation2 + $0xd0] sm:$0xf]
    %v3717 = vld [vmem:[#allocation2 + $0xd4] sm:$0xf]
    %v3718 = vld [vmem:[#allocation2 + $0xd8] sm:$0xf]
    %v3719 = vld [vmem:[#allocation2 + $0xdc] sm:$0xf]
    %v3720 = vld [vmem:[#allocation2 + $0xe0] sm:$0xf]
    %v3721 = vld [vmem:[#allocation2 + $0xe4] sm:$0xf]
    %v3722 = vld [vmem:[#allocation2 + $0xe8] sm:$0xf]
    %v3723 = vld [vmem:[#allocation2 + $0xec] sm:$0xf]
    %v3724 = vld [vmem:[#allocation2 + $0xf0] sm:$0xf]
    %v3725 = vld [vmem:[#allocation2 + $0xf4] sm:$0xf]
    %v3726 = vld [vmem:[#allocation2 + $0xf8] sm:$0xf]
    %v3727 = vld [vmem:[#allocation2 + $0xfc] sm:$0xf]
    %v3728 = vld [vmem:[#allocation2 + $0x100] sm:$0xf]
    %v3729 = vld [vmem:[#allocation2 + $0x104] sm:$0xf]
    %v3730 = vld [vmem:[#allocation2 + $0x108] sm:$0xf]
    %v3731 = vld [vmem:[#allocation2 + $0x10c] sm:$0xf]
    %v3732 = vld [vmem:[#allocation2 + $0x110] sm:$0xf]
    %v3733 = vld [vmem:[#allocation2 + $0x114] sm:$0xf]
    %v3734 = vld [vmem:[#allocation2 + $0x118] sm:$0xf]
    %v3735 = vld [vmem:[#allocation2 + $0x11c] sm:$0xf]
    %v3736 = vld [vmem:[#allocation2 + $0x120] sm:$0xf]
    %v3737 = vld [vmem:[#allocation2 + $0x124] sm:$0xf]
    %v3738 = vld [vmem:[#allocation2 + $0x128] sm:$0xf]
    %v3739 = vld [vmem:[#allocation2 + $0x12c] sm:$0xf]
    %v3740 = vld [vmem:[#allocation2 + $0x130] sm:$0xf]
    %v3741 = vld [vmem:[#allocation2 + $0x134] sm:$0xf]
    %v3742 = vld [vmem:[#allocation2 + $0x138] sm:$0xf]
    %v3743 = vld [vmem:[#allocation2 + $0x13c] sm:$0xf]
    %v3744 = vld [vmem:[#allocation2 + $0x140] sm:$0xf]
    %v3745 = vld [vmem:[#allocation2 + $0x144] sm:$0xf]
    %v3746 = vld [vmem:[#allocation2 + $0x148] sm:$0xf]
    %v3747 = vld [vmem:[#allocation2 + $0x14c] sm:$0xf]
    %v3748 = vld [vmem:[#allocation2 + $0x150] sm:$0xf]
    %v3749 = vld [vmem:[#allocation2 + $0x154] sm:$0xf]
    %v3750 = vld [vmem:[#allocation2 + $0x158] sm:$0xf]
    %v3751 = vld [vmem:[#allocation2 + $0x15c] sm:$0xf]
    %v3752 = vld [vmem:[#allocation2 + $0x160] sm:$0xf]
    %v3753 = vld [vmem:[#allocation2 + $0x164] sm:$0xf]
    %v3754 = vld [vmem:[#allocation2 + $0x168] sm:$0xf]
    %v3755 = vld [vmem:[#allocation2 + $0x16c] sm:$0xf]
    %v3756 = vld [vmem:[#allocation2 + $0x170] sm:$0xf]
    %v3757 = vld [vmem:[#allocation2 + $0x174] sm:$0xf]
    %v3758 = vld [vmem:[#allocation2 + $0x178] sm:$0xf]
    %v3759 = vld [vmem:[#allocation2 + $0x17c] sm:$0xf]
    %v3760 = vld [vmem:[#allocation2 + $0x180] sm:$0xf]
    %v3761 = vld [vmem:[#allocation2 + $0x184] sm:$0xf]
    %v3762 = vld [vmem:[#allocation2 + $0x188] sm:$0xf]
    %v3763 = vld [vmem:[#allocation2 + $0x18c] sm:$0xf]
    %v3764 = vld [vmem:[#allocation2 + $0x190] sm:$0xf]
    %v3765 = vld [vmem:[#allocation2 + $0x194] sm:$0xf]
    %v3766 = vld [vmem:[#allocation2 + $0x198] sm:$0xf]
    %v3767 = vld [vmem:[#allocation2 + $0x19c] sm:$0xf]
    %v3768 = vld [vmem:[#allocation2 + $0x1a0] sm:$0xf]
    %v3769 = vld [vmem:[#allocation2 + $0x1a4] sm:$0xf]
    %v3770 = vld [vmem:[#allocation2 + $0x1a8] sm:$0xf]
    %v3771 = vld [vmem:[#allocation2 + $0x1ac] sm:$0xf]
    %v3772 = vld [vmem:[#allocation2 + $0x1b0] sm:$0xf]
    %v3773 = vld [vmem:[#allocation2 + $0x1b4] sm:$0xf]
    %v3774 = vld [vmem:[#allocation2 + $0x1b8] sm:$0xf]
    %v3775 = vld [vmem:[#allocation2 + $0x1bc] sm:$0xf]
    %v3776 = vld [vmem:[#allocation2 + $0x1c0] sm:$0xf]
    %v3777 = vld [vmem:[#allocation2 + $0x1c4] sm:$0xf]
    %v3778 = vld [vmem:[#allocation2 + $0x1c8] sm:$0xf]
    %v3779 = vld [vmem:[#allocation2 + $0x1cc] sm:$0xf]
    %v3780 = vld [vmem:[#allocation2 + $0x1d0] sm:$0xf]
    %v3781 = vld [vmem:[#allocation2 + $0x1d4] sm:$0xf]
    %v3782 = vld [vmem:[#allocation2 + $0x1d8] sm:$0xf]
    %v3783 = vld [vmem:[#allocation2 + $0x1dc] sm:$0xf]
    %v3784 = vld [vmem:[#allocation2 + $0x1e0] sm:$0xf]
    %v3785 = vld [vmem:[#allocation2 + $0x1e4] sm:$0xf]
    %v3786 = vld [vmem:[#allocation2 + $0x1e8] sm:$0xf]
    %v3787 = vld [vmem:[#allocation2 + $0x1ec] sm:$0xf]
    %v3788 = vld [vmem:[#allocation2 + $0x1f0] sm:$0xf]
    %v3789 = vld [vmem:[#allocation2 + $0x1f4] sm:$0xf]
    %v3790 = vld [vmem:[#allocation2 + $0x1f8] sm:$0xf]
    %v3791 = vld [vmem:[#allocation2 + $0x1fc] sm:$0xf]
    %v3920 = vunpack.c.l.b16 %v3664
    %v3921 = vunpack.c.l.b16 %v3665
    %v3922 = vunpack.c.l.b16 %v3666
    %v3923 = vunpack.c.l.b16 %v3667
    %v3924 = vunpack.c.l.b16 %v3668
    %v3925 = vunpack.c.l.b16 %v3669
    %v3926 = vunpack.c.l.b16 %v3670
    %v3927 = vunpack.c.l.b16 %v3671
    %v3928 = vunpack.c.l.b16 %v3672
    %v3929 = vunpack.c.l.b16 %v3673
    %v3930 = vunpack.c.l.b16 %v3674
    %v3931 = vunpack.c.l.b16 %v3675
    %v3932 = vunpack.c.l.b16 %v3676
    %v3933 = vunpack.c.l.b16 %v3677
    %v3934 = vunpack.c.l.b16 %v3678
    %v3935 = vunpack.c.l.b16 %v3679
    %v3936 = vunpack.c.l.b16 %v3680
    %v3937 = vunpack.c.l.b16 %v3681
    %v3938 = vunpack.c.l.b16 %v3682
    %v3939 = vunpack.c.l.b16 %v3683
    %v3940 = vunpack.c.l.b16 %v3684
    %v3941 = vunpack.c.l.b16 %v3685
    %v3942 = vunpack.c.l.b16 %v3686
    %v3943 = vunpack.c.l.b16 %v3687
    %v3944 = vunpack.c.l.b16 %v3688
    %v3945 = vunpack.c.l.b16 %v3689
    %v3946 = vunpack.c.l.b16 %v3690
    %v3947 = vunpack.c.l.b16 %v3691
    %v3948 = vunpack.c.l.b16 %v3692
    %v3949 = vunpack.c.l.b16 %v3693
    %v3950 = vunpack.c.l.b16 %v3694
    %v3951 = vunpack.c.l.b16 %v3695
    %v3952 = vunpack.c.l.b16 %v3696
    %v3953 = vunpack.c.l.b16 %v3697
    %v3954 = vunpack.c.l.b16 %v3698
    %v3955 = vunpack.c.l.b16 %v3699
    %v3956 = vunpack.c.l.b16 %v3700
    %v3957 = vunpack.c.l.b16 %v3701
    %v3958 = vunpack.c.l.b16 %v3702
    %v3959 = vunpack.c.l.b16 %v3703
    %v3960 = vunpack.c.l.b16 %v3704
    %v3961 = vunpack.c.l.b16 %v3705
    %v3962 = vunpack.c.l.b16 %v3706
    %v3963 = vunpack.c.l.b16 %v3707
    %v3964 = vunpack.c.l.b16 %v3708
    %v3965 = vunpack.c.l.b16 %v3709
    %v3966 = vunpack.c.l.b16 %v3710
    %v3967 = vunpack.c.l.b16 %v3711
    %v3968 = vunpack.c.l.b16 %v3712
    %v3969 = vunpack.c.l.b16 %v3713
    %v3970 = vunpack.c.l.b16 %v3714
    %v3971 = vunpack.c.l.b16 %v3715
    %v3972 = vunpack.c.l.b16 %v3716
    %v3973 = vunpack.c.l.b16 %v3717
    %v3974 = vunpack.c.l.b16 %v3718
    %v3975 = vunpack.c.l.b16 %v3719
    %v3976 = vunpack.c.l.b16 %v3720
    %v3977 = vunpack.c.l.b16 %v3721
    %v3978 = vunpack.c.l.b16 %v3722
    %v3979 = vunpack.c.l.b16 %v3723
    %v3980 = vunpack.c.l.b16 %v3724
    %v3981 = vunpack.c.l.b16 %v3725
    %v3982 = vunpack.c.l.b16 %v3726
    %v3983 = vunpack.c.l.b16 %v3727
    %v3984 = vunpack.c.l.b16 %v3728
    %v3985 = vunpack.c.l.b16 %v3729
    %v3986 = vunpack.c.l.b16 %v3730
    %v3987 = vunpack.c.l.b16 %v3731
    %v3988 = vunpack.c.l.b16 %v3732
    %v3989 = vunpack.c.l.b16 %v3733
    %v3990 = vunpack.c.l.b16 %v3734
    %v3991 = vunpack.c.l.b16 %v3735
    %v3992 = vunpack.c.l.b16 %v3736
    %v3993 = vunpack.c.l.b16 %v3737
    %v3994 = vunpack.c.l.b16 %v3738
    %v3995 = vunpack.c.l.b16 %v3739
    %v3996 = vunpack.c.l.b16 %v3740
    %v3997 = vunpack.c.l.b16 %v3741
    %v3998 = vunpack.c.l.b16 %v3742
    %v3999 = vunpack.c.l.b16 %v3743
    %v4000 = vunpack.c.l.b16 %v3744
    %v4001 = vunpack.c.l.b16 %v3745
    %v4002 = vunpack.c.l.b16 %v3746
    %v4003 = vunpack.c.l.b16 %v3747
    %v4004 = vunpack.c.l.b16 %v3748
    %v4005 = vunpack.c.l.b16 %v3749
    %v4006 = vunpack.c.l.b16 %v3750
    %v4007 = vunpack.c.l.b16 %v3751
    %v4008 = vunpack.c.l.b16 %v3752
    %v4009 = vunpack.c.l.b16 %v3753
    %v4010 = vunpack.c.l.b16 %v3754
    %v4011 = vunpack.c.l.b16 %v3755
    %v4012 = vunpack.c.l.b16 %v3756
    %v4013 = vunpack.c.l.b16 %v3757
    %v4014 = vunpack.c.l.b16 %v3758
    %v4015 = vunpack.c.l.b16 %v3759
    %v4016 = vunpack.c.l.b16 %v3760
    %v4017 = vunpack.c.l.b16 %v3761
    %v4018 = vunpack.c.l.b16 %v3762
    %v4019 = vunpack.c.l.b16 %v3763
    %v4020 = vunpack.c.l.b16 %v3764
    %v4021 = vunpack.c.l.b16 %v3765
    %v4022 = vunpack.c.l.b16 %v3766
    %v4023 = vunpack.c.l.b16 %v3767
    %v4024 = vunpack.c.l.b16 %v3768
    %v4025 = vunpack.c.l.b16 %v3769
    %v4026 = vunpack.c.l.b16 %v3770
    %v4027 = vunpack.c.l.b16 %v3771
    %v4028 = vunpack.c.l.b16 %v3772
    %v4029 = vunpack.c.l.b16 %v3773
    %v4030 = vunpack.c.l.b16 %v3774
    %v4031 = vunpack.c.l.b16 %v3775
    %v4032 = vunpack.c.l.b16 %v3776
    %v4033 = vunpack.c.l.b16 %v3777
    %v4034 = vunpack.c.l.b16 %v3778
    %v4035 = vunpack.c.l.b16 %v3779
    %v4036 = vunpack.c.l.b16 %v3780
    %v4037 = vunpack.c.l.b16 %v3781
    %v4038 = vunpack.c.l.b16 %v3782
    %v4039 = vunpack.c.l.b16 %v3783
    %v4040 = vunpack.c.l.b16 %v3784
    %v4041 = vunpack.c.l.b16 %v3785
    %v4042 = vunpack.c.l.b16 %v3786
    %v4043 = vunpack.c.l.b16 %v3787
    %v4044 = vunpack.c.l.b16 %v3788
    %v4045 = vunpack.c.l.b16 %v3789
    %v4046 = vunpack.c.l.b16 %v3790
    %v4047 = vunpack.c.l.b16 %v3791
    %v4048 = vpack.c.b16 %v3921, %v3920
    %v4049 = vpack.c.b16 %v3923, %v3922
    %v4050 = vpack.c.b16 %v3925, %v3924
    %v4051 = vpack.c.b16 %v3927, %v3926
    %v4052 = vpack.c.b16 %v3929, %v3928
    %v4053 = vpack.c.b16 %v3931, %v3930
    %v4054 = vpack.c.b16 %v3933, %v3932
    %v4055 = vpack.c.b16 %v3935, %v3934
    %v4056 = vpack.c.b16 %v3937, %v3936
    %v4057 = vpack.c.b16 %v3939, %v3938
    %v4058 = vpack.c.b16 %v3941, %v3940
    %v4059 = vpack.c.b16 %v3943, %v3942
    %v4060 = vpack.c.b16 %v3945, %v3944
    %v4061 = vpack.c.b16 %v3947, %v3946
    %v4062 = vpack.c.b16 %v3949, %v3948
    %v4063 = vpack.c.b16 %v3951, %v3950
    %v4064 = vpack.c.b16 %v3953, %v3952
    %v4065 = vpack.c.b16 %v3955, %v3954
    %v4066 = vpack.c.b16 %v3957, %v3956
    %v4067 = vpack.c.b16 %v3959, %v3958
    %v4068 = vpack.c.b16 %v3961, %v3960
    %v4069 = vpack.c.b16 %v3963, %v3962
    %v4070 = vpack.c.b16 %v3965, %v3964
    %v4071 = vpack.c.b16 %v3967, %v3966
    %v4072 = vpack.c.b16 %v3969, %v3968
    %v4073 = vpack.c.b16 %v3971, %v3970
    %v4074 = vpack.c.b16 %v3973, %v3972
    %v4075 = vpack.c.b16 %v3975, %v3974
    %v4076 = vpack.c.b16 %v3977, %v3976
    %v4077 = vpack.c.b16 %v3979, %v3978
    %v4078 = vpack.c.b16 %v3981, %v3980
    %v4079 = vpack.c.b16 %v3983, %v3982
    %v4080 = vpack.c.b16 %v3985, %v3984
    %v4081 = vpack.c.b16 %v3987, %v3986
    %v4082 = vpack.c.b16 %v3989, %v3988
    %v4083 = vpack.c.b16 %v3991, %v3990
    %v4084 = vpack.c.b16 %v3993, %v3992
    %v4085 = vpack.c.b16 %v3995, %v3994
    %v4086 = vpack.c.b16 %v3997, %v3996
    %v4087 = vpack.c.b16 %v3999, %v3998
    %v4088 = vpack.c.b16 %v4001, %v4000
    %v4089 = vpack.c.b16 %v4003, %v4002
    %v4090 = vpack.c.b16 %v4005, %v4004
    %v4091 = vpack.c.b16 %v4007, %v4006
    %v4092 = vpack.c.b16 %v4009, %v4008
    %v4093 = vpack.c.b16 %v4011, %v4010
    %v4094 = vpack.c.b16 %v4013, %v4012
    %v4095 = vpack.c.b16 %v4015, %v4014
    %v4096 = vpack.c.b16 %v4017, %v4016
    %v4097 = vpack.c.b16 %v4019, %v4018
    %v4098 = vpack.c.b16 %v4021, %v4020
    %v4099 = vpack.c.b16 %v4023, %v4022
    %v4100 = vpack.c.b16 %v4025, %v4024
    %v4101 = vpack.c.b16 %v4027, %v4026
    %v4102 = vpack.c.b16 %v4029, %v4028
    %v4103 = vpack.c.b16 %v4031, %v4030
    %v4104 = vpack.c.b16 %v4033, %v4032
    %v4105 = vpack.c.b16 %v4035, %v4034
    %v4106 = vpack.c.b16 %v4037, %v4036
    %v4107 = vpack.c.b16 %v4039, %v4038
    %v4108 = vpack.c.b16 %v4041, %v4040
    %v4109 = vpack.c.b16 %v4043, %v4042
    %v4110 = vpack.c.b16 %v4045, %v4044
    %v4111 = vpack.c.b16 %v4047, %v4046
    %4176 = vmatpush.bf16.msra.mxu0 %v4055
    %4177 = vmatpush.bf16.msra.mxu0 %v4054
    %4178 = vmatpush.bf16.msra.mxu0 %v4053
    %4179 = vmatpush.bf16.msra.mxu0 %v4052
    %4180 = vmatpush.bf16.msra.mxu0 %v4051
    %4181 = vmatpush.bf16.msra.mxu0 %v4050
    %4182 = vmatpush.bf16.msra.mxu0 %v4049
    %4183 = vmatpush.bf16.msra.mxu0 %v4048
    %4184 = vmatmul.bf16.gmra.mxu0 %v3652
    %v4185 = vpop.f32.mrf.mxu0
    %v4186 = vadd.f32 0.0, %v4185
    %v4187 = vpop.f32.mrf.mxu0
    %v4188 = vadd.f32 0.0, %v4187
    %4189 = vdwg.mxu0
    %4190 = vmatpush.bf16.msra.mxu0 %v4063
    %4191 = vmatpush.bf16.msra.mxu0 %v4062
    %4192 = vmatpush.bf16.msra.mxu0 %v4061
    %4193 = vmatpush.bf16.msra.mxu0 %v4060
    %4194 = vmatpush.bf16.msra.mxu0 %v4059
    %4195 = vmatpush.bf16.msra.mxu0 %v4058
    %4196 = vmatpush.bf16.msra.mxu0 %v4057
    %4197 = vmatpush.bf16.msra.mxu0 %v4056
    %4198 = vmatmul.bf16.gmra.mxu0 %v3653
    %v4199 = vpop.f32.mrf.mxu0
    %v4200 = vadd.f32 %v4186, %v4199
    %v4201 = vpop.f32.mrf.mxu0
    %v4202 = vadd.f32 %v4188, %v4201
    %4203 = vdwg.mxu0
    %4204 = vmatpush.bf16.msra.mxu0 %v4071
    %4205 = vmatpush.bf16.msra.mxu0 %v4070
    %4206 = vmatpush.bf16.msra.mxu0 %v4069
    %4207 = vmatpush.bf16.msra.mxu0 %v4068
    %4208 = vmatpush.bf16.msra.mxu0 %v4067
    %4209 = vmatpush.bf16.msra.mxu0 %v4066
    %4210 = vmatpush.bf16.msra.mxu0 %v4065
    %4211 = vmatpush.bf16.msra.mxu0 %v4064
    %4212 = vmatmul.bf16.gmra.mxu0 %v3654
    %v4213 = vpop.f32.mrf.mxu0
    %v4214 = vadd.f32 %v4200, %v4213
    %v4215 = vpop.f32.mrf.mxu0
    %v4216 = vadd.f32 %v4202, %v4215
    %4217 = vdwg.mxu0
    %4218 = vmatpush.bf16.msra.mxu0 %v4079
    %4219 = vmatpush.bf16.msra.mxu0 %v4078
    %4220 = vmatpush.bf16.msra.mxu0 %v4077
    %4221 = vmatpush.bf16.msra.mxu0 %v4076
    %4222 = vmatpush.bf16.msra.mxu0 %v4075
    %4223 = vmatpush.bf16.msra.mxu0 %v4074
    %4224 = vmatpush.bf16.msra.mxu0 %v4073
    %4225 = vmatpush.bf16.msra.mxu0 %v4072
    %4226 = vmatmul.bf16.gmra.mxu0 %v3655
    %v4227 = vpop.f32.mrf.mxu0
    %v4228 = vadd.f32 %v4214, %v4227
    %v4229 = vpop.f32.mrf.mxu0
    %v4230 = vadd.f32 %v4216, %v4229
    %4231 = vdwg.mxu0
    %4232 = vmatpush.bf16.msra.mxu0 %v4087
    %4233 = vmatpush.bf16.msra.mxu0 %v4086
    %4234 = vmatpush.bf16.msra.mxu0 %v4085
    %4235 = vmatpush.bf16.msra.mxu0 %v4084
    %4236 = vmatpush.bf16.msra.mxu0 %v4083
    %4237 = vmatpush.bf16.msra.mxu0 %v4082
    %4238 = vmatpush.bf16.msra.mxu0 %v4081
    %4239 = vmatpush.bf16.msra.mxu0 %v4080
    %4240 = vmatmul.bf16.gmra.mxu0 %v3656
    %v4241 = vpop.f32.mrf.mxu0
    %v4242 = vadd.f32 %v4228, %v4241
    %v4243 = vpop.f32.mrf.mxu0
    %v4244 = vadd.f32 %v4230, %v4243
    %4245 = vdwg.mxu0
    %4246 = vmatpush.bf16.msra.mxu0 %v4095
    %4247 = vmatpush.bf16.msra.mxu0 %v4094
    %4248 = vmatpush.bf16.msra.mxu0 %v4093
    %4249 = vmatpush.bf16.msra.mxu0 %v4092
    %4250 = vmatpush.bf16.msra.mxu0 %v4091
    %4251 = vmatpush.bf16.msra.mxu0 %v4090
    %4252 = vmatpush.bf16.msra.mxu0 %v4089
    %4253 = vmatpush.bf16.msra.mxu0 %v4088
    %4254 = vmatmul.bf16.gmra.mxu0 %v3657
    %v4255 = vpop.f32.mrf.mxu0
    %v4256 = vadd.f32 %v4242, %v4255
    %v4257 = vpop.f32.mrf.mxu0
    %v4258 = vadd.f32 %v4244, %v4257
    %4259 = vdwg.mxu0
    %4260 = vmatpush.bf16.msra.mxu0 %v4103
    %4261 = vmatpush.bf16.msra.mxu0 %v4102
    %4262 = vmatpush.bf16.msra.mxu0 %v4101
    %4263 = vmatpush.bf16.msra.mxu0 %v4100
    %4264 = vmatpush.bf16.msra.mxu0 %v4099
    %4265 = vmatpush.bf16.msra.mxu0 %v4098
    %4266 = vmatpush.bf16.msra.mxu0 %v4097
    %4267 = vmatpush.bf16.msra.mxu0 %v4096
    %4268 = vmatmul.bf16.gmra.mxu0 %v3658
    %v4269 = vpop.f32.mrf.mxu0
    %v4270 = vadd.f32 %v4256, %v4269
    %v4271 = vpop.f32.mrf.mxu0
    %v4272 = vadd.f32 %v4258, %v4271
    %4273 = vdwg.mxu0
    %4274 = vmatpush.bf16.msra.mxu0 %v4111
    %4275 = vmatpush.bf16.msra.mxu0 %v4110
    %4276 = vmatpush.bf16.msra.mxu0 %v4109
    %4277 = vmatpush.bf16.msra.mxu0 %v4108
    %4278 = vmatpush.bf16.msra.mxu0 %v4107
    %4279 = vmatpush.bf16.msra.mxu0 %v4106
    %4280 = vmatpush.bf16.msra.mxu0 %v4105
    %4281 = vmatpush.bf16.msra.mxu0 %v4104
    %4282 = vmatmul.bf16.gmra.mxu0 %v3659
    %v4283 = vpop.f32.mrf.mxu0
    %v4284 = vadd.f32 %v4270, %v4283
    %v4285 = vpop.f32.mrf.mxu0
    %v4286 = vadd.f32 %v4272, %v4285
    %4287 = vdwg.mxu0
    %v4288 = vadd.f32 %v4284, %v4286
    %v4289 = vrot.slane %v4288, 4
    %v4290 = vadd.f32 %v4288, %v4289
    %v4291 = vrot.slane %v4290, 2
    %v4292 = vadd.f32 %v4290, %v4291
    %v4293 = vrot.slane %v4292, 1
    %v4294 = vadd.f32 %v4292, %v4293
    %v4295 = vmul.f32 %v4294, 0.0625
    %v4296 = vsub.f32 %v4284, %v4295
    %v4297 = vsub.f32 %v4286, %v4295
    %v4298 = vmul.f32 %v4296, %v4296
    %v4299 = vmul.f32 %v4297, %v4297
    %v4300 = vadd.f32 %v4298, %v4299
    %v4301 = vrot.slane %v4300, 4
    %v4302 = vadd.f32 %v4300, %v4301
    %v4303 = vrot.slane %v4302, 2
    %v4304 = vadd.f32 %v4302, %v4303
    %v4305 = vrot.slane %v4304, 1
    %v4306 = vadd.f32 %v4304, %v4305
    %v4307 = vmul.f32 %v4306, 0.0625
    %v4308 = vadd.f32 %v4307, 1e-05
    %v4309 = vrsqrt.pop %v4308
    %v4310 = vmul.f32 %v4309, %v4308
    %v4311 = vmul.f32 %v4310, %v4309
    %v4312 = vmul.f32 0.5, %v4311
    %v4313 = vsub.f32 1.5, %v4312
    %v4314 = vmul.f32 %v4309, %v4313
    %vm4315 = vweird.f32 %v4308
    %vm4316 = vweird.f32 %v4309
    %vm4317 = vmor %vm4315, %vm4316
    %v4318 = vsel %vm4317, %v4309, %v4314
    %v4319 = vmul.f32 %v93, %v4318
    %v4320 = vperm.slane %v4319, 0
    %v4321 = vmul.f32 %v4296, %v4320
    %v4322 = vmul.f32 %v4297, %v4320
    %v4323 = vperm.slane %v93, 1
    %v4324 = vadd.f32 %v4321, %v4323
    %v4325 = vadd.f32 %v4322, %v4323
    %v4326 = vmax.f32 %v4324, 0.0
    %v4327 = vmax.f32 %v4325, 0.0
    %v4328 = vpack.c.bf16 %v4327, %v4326
    %s4329 = smul.u32 4, 16
    %s4330 = smul.u32 %s4329, 1
    %s4331 = sshll.u32 %s4330, 4
    %4332 = dma.done %s77, %s4331
    %v4333 = vld [vmem:[#allocation3] sm:$0xf]
    %v4334 = vld [vmem:[#allocation3 + $0x4] sm:$0xf]
    %v4335 = vld [vmem:[#allocation3 + $0x8] sm:$0xf]
    %v4336 = vld [vmem:[#allocation3 + $0xc] sm:$0xf]
    %v4337 = vld [vmem:[#allocation3 + $0x10] sm:$0xf]
    %v4338 = vld [vmem:[#allocation3 + $0x14] sm:$0xf]
    %v4339 = vld [vmem:[#allocation3 + $0x18] sm:$0xf]
    %v4340 = vld [vmem:[#allocation3 + $0x1c] sm:$0xf]
    %v4341 = vld [vmem:[#allocation3 + $0x20] sm:$0xf]
    %v4342 = vld [vmem:[#allocation3 + $0x24] sm:$0xf]
    %v4343 = vld [vmem:[#allocation3 + $0x28] sm:$0xf]
    %v4344 = vld [vmem:[#allocation3 + $0x2c] sm:$0xf]
    %v4345 = vld [vmem:[#allocation3 + $0x30] sm:$0xf]
    %v4346 = vld [vmem:[#allocation3 + $0x34] sm:$0xf]
    %v4347 = vld [vmem:[#allocation3 + $0x38] sm:$0xf]
    %v4348 = vld [vmem:[#allocation3 + $0x3c] sm:$0xf]
    %v4349 = vperm.slane %v93, 2
    %v4366 = vunpack.c.l.b16 %v4333
    %v4367 = vunpack.c.l.b16 %v4334
    %v4368 = vunpack.c.l.b16 %v4335
    %v4369 = vunpack.c.l.b16 %v4336
    %v4370 = vunpack.c.l.b16 %v4337
    %v4371 = vunpack.c.l.b16 %v4338
    %v4372 = vunpack.c.l.b16 %v4339
    %v4373 = vunpack.c.l.b16 %v4340
    %v4374 = vunpack.c.l.b16 %v4341
    %v4375 = vunpack.c.l.b16 %v4342
    %v4376 = vunpack.c.l.b16 %v4343
    %v4377 = vunpack.c.l.b16 %v4344
    %v4378 = vunpack.c.l.b16 %v4345
    %v4379 = vunpack.c.l.b16 %v4346
    %v4380 = vunpack.c.l.b16 %v4347
    %v4381 = vunpack.c.l.b16 %v4348
    %v4382 = vpack.c.b16 %v4367, %v4366
    %v4383 = vpack.c.b16 %v4369, %v4368
    %v4384 = vpack.c.b16 %v4371, %v4370
    %v4385 = vpack.c.b16 %v4373, %v4372
    %v4386 = vpack.c.b16 %v4375, %v4374
    %v4387 = vpack.c.b16 %v4377, %v4376
    %v4388 = vpack.c.b16 %v4379, %v4378
    %v4389 = vpack.c.b16 %v4381, %v4380
    %4398 = vmatpush.bf16.msra.mxu0 %v4389
    %4399 = vmatpush.bf16.msra.mxu0 %v4388
    %4400 = vmatpush.bf16.msra.mxu0 %v4387
    %4401 = vmatpush.bf16.msra.mxu0 %v4386
    %4402 = vmatpush.bf16.msra.mxu0 %v4385
    %4403 = vmatpush.bf16.msra.mxu0 %v4384
    %4404 = vmatpush.bf16.msra.mxu0 %v4383
    %4405 = vmatpush.bf16.msra.mxu0 %v4382
    %4406 = vmatmul.bf16.gmra.mxu0 %v4328
    %v4407 = vpop.f32.mrf.mxu0
    %v4408 = vadd.f32 %v4349, %v4407
    %v4409 = vpop.f32.mrf.mxu0
    %v4410 = vadd.f32 %v4349, %v4409
    %4411 = vdwg.mxu0
    %4412 = vst [vmem:[#allocation11] sm:$0xff] %v4408
    %4413 = vst [vmem:[#allocation11 + $0x8] sm:$0xff] %v4410
    // Predicated region
    $region38: #{batch_net_forward.1} parent=1 // pred_check
      _
    $region39: #{batch_net_forward.1} parent=1 // pred_check_branch
      %4415 = sbr.rel (0) target = $region41
    $region40: #{batch_net_forward.1} parent=1 // pred_region
      %4417 = vsyncadd [#allocation7], 0
      %s4418 = sshll.u32 [#allocation11], 4
      %s4419 = int_to_ptr.vmem [resolvable:$true] %s4418
      %s4420 = sshll.u32 %s6, 4
      %s4421 = int_to_ptr.hbm [resolvable:$true] %s4420
      %4426 = dma.vmem_to_hbm [thread:$0]  %s4419, 256, %s4421, [#allocation7], 128, 128, 8
    $region41: #{batch_net_forward.1} parent=1 // pred_fallthru
      _
    // Predicated region
    $region42: #{batch_net_forward.1} parent=1 // pred_check
      _
    $region43: #{batch_net_forward.1} parent=1 // pred_check_branch
      %4428 = sbr.rel (0) target = $region45
    $region44: #{batch_net_forward.1} parent=1 // pred_region
      %4430 = dma.done [#allocation7], 256
    $region45: #{batch_net_forward.1} parent=1 // pred_fallthru
      _
    %4431 = vsyncpa [#allocation6], 1
    %4432 = vsyncpa [#allocation9], 1
    %4433 = vsyncpa [#allocation7], 1
  %4434 = vsyncmov [#allocation4]
  %s4435 = vpop.sfrf %4434
  %p4436 = scmp.eq.s32.totalorder %s4435, 0
  %p4437 = pneg %p4436
  %4439 = shalt.err (%p4437)
  %s4440 = scalar_lea.sflag [#allocation4], 1
  %4441 = vsyncmov %s4440
  %s4442 = vpop.sfrf %4441
  %p4443 = scmp.eq.s32.totalorder %s4442, 0
  %p4444 = pneg %p4443
  %4446 = shalt.err (%p4444)

</llo_original>
